<compile_context>
chip_gen: v6e
topology: v6e:2x2x1
jax: 0.10.0
libtpu: 0.0.40
codegen_flags: <defaults>
</compile_context>

<pallas_src>
import functools

import jax
import jax.numpy as jnp
import numpy as np
from jax.experimental import pallas as pl
from jax.experimental.pallas import tpu as pltpu

H = W = 4
P_SPATIAL = H * W        # 16
IN_CH = 17
BN_EPS = 1e-5
PAD = 8                  # zero-pad rows on each side of the activation scratch
HEAD_W = 128             # lane-dense combined head width (4 actor + 1 critic + pad)


def _grouping(C):
    """Taps/positions per 128-lane group and derived padded K sizes."""
    tpg = 128 // C if (128 % C == 0 and C <= 128) else 1     # taps per im2col group
    n_groups = -(-9 // tpg)
    k_pad = n_groups * tpg * C
    ppg = tpg                                                # spatial positions per head group
    n_hgroups = -(-P_SPATIAL // ppg)
    hf_k = n_hgroups * ppg * C
    return tpg, n_groups, k_pad, ppg, n_hgroups, hf_k


# ----------------------------------------------------------------------------
# Pallas kernel: whole network in one grid step (trunk loop unrolled in-kernel)
# ----------------------------------------------------------------------------
def make_kernel(use_bn, batch, channels, layer_num):
    C = channels
    BP = batch * P_SPATIAL
    tpg, n_groups, _, ppg, n_hgroups, _ = _grouping(C)

    def kernel(x_ref, mask_ref, wt_ref, bt_ref, g_ref, be_ref, wh_ref, bh_ref,
               out_ref, h_pad, im, hf):
        # Zero only the pad rows of the activation scratch (uninitialized VMEM may
        # contain NaN bit patterns; mask * NaN = NaN otherwise).
        h_pad[0:PAD, :] = jnp.zeros((PAD, C), jnp.float32)
        h_pad[PAD + BP:PAD + BP + PAD, :] = jnp.zeros((PAD, C), jnp.float32)

        for l in range(layer_num):
            src = x_ref if l == 0 else h_pad        # both are (BP + 2*PAD, C), zero-padded

            # ---- conv3x3 via im2col: statically shifted, pre-broadcast-masked reads,
            #      packed into full 128-lane stores -----------------------------------
            for g in range(n_groups):
                parts = []
                for t in range(tpg):
                    k = g * tpg + t
                    if k < 9:
                        dy, dx = k // 3 - 1, k % 3 - 1
                        d = dy * W + dx                      # row shift inside a 16-row board
                        sh = src[PAD + d:PAD + d + BP, :]    # static sublane slice
                        parts.append((sh * mask_ref[k]).astype(jnp.bfloat16))
                    else:
                        parts.append(jnp.zeros((BP, C), jnp.bfloat16))   # K padding
                blk = parts[0] if tpg == 1 else jnp.concatenate(parts, axis=1)
                im[:, g * tpg * C:(g + 1) * tpg * C] = blk

            # single MXU matmul per layer: (BP, K_PAD) @ (K_PAD, C), bf16 in / f32 acc
            acc = jnp.dot(im[...], wt_ref[l], preferred_element_type=jnp.float32)

            if use_bn:
                # Training-mode BatchNorm2d over (N, H, W) per channel == axis 0 here.
                # Conv bias skipped: exactly cancelled by the mean subtraction.
                mu = jnp.mean(acc, axis=0, keepdims=True)
                msq = jnp.mean(acc * acc, axis=0, keepdims=True)
                var = jnp.maximum(msq - mu * mu, 0.0)        # clamp bf16 cancellation
                scale = g_ref[l] * jax.lax.rsqrt(var + BN_EPS)       # (1, C)
                acc = acc * scale + (be_ref[l] - mu * scale)         # fused scale/shift
            else:
                acc = acc + bt_ref[l]

            h_pad[PAD:PAD + BP, :] = jnp.maximum(acc, 0.0)           # ReLU, f32

        # ---- 4x4-conv heads == one (B, 16C) @ (16C, 128) matmul --------------------
        for g in range(n_hgroups):
            parts = []
            for t in range(ppg):
                p = g * ppg + t
                if p < P_SPATIAL:
                    parts.append(h_pad[pl.ds(PAD + p, batch, stride=P_SPATIAL), :]
                                 .astype(jnp.bfloat16))
                else:
                    parts.append(jnp.zeros((batch, C), jnp.bfloat16))
            blk = parts[0] if ppg == 1 else jnp.concatenate(parts, axis=1)
            hf[:, g * ppg * C:(g + 1) * ppg * C] = blk
        out = jnp.dot(hf[...], wh_ref[...], preferred_element_type=jnp.float32)
        out_ref[...] = out + bh_ref[...]                     # lane-dense (B, 128) store

    return kernel


# ----------------------------------------------------------------------------
# Glue: precompute (pre-broadcast) boundary masks and repack weights (bf16 MXU)
# ----------------------------------------------------------------------------
def build_tap_masks(batch, channels):
    """mask[k, b*16 + y*4 + x, :] = 1 iff neighbor (y+dy, x+dx) is inside the 4x4 board."""
    m = np.zeros((9, batch * P_SPATIAL, 1), np.float32)
    for k in range(9):
        dy, dx = k // 3 - 1, k % 3 - 1
        for y in range(H):
            for x in range(W):
                if 0 <= y + dy < H and 0 <= x + dx < W:
                    p = y * W + x
                    for b in range(batch):
                        m[k, b * P_SPATIAL + p, 0] = 1.0
    # pre-broadcast across channels so the kernel does a plain elementwise multiply
    m = np.broadcast_to(m, (9, batch * P_SPATIAL, channels)).copy()
    return jnp.asarray(m)


def normal_actor_critic_forward(x_nchw, params, layer_num, channel_num, use_bn):
    """Returns (actor_logits (B,4), critic (B,1,1,1)) -- compute_actor_critic_values."""
    B = x_nchw.shape[0]
    C = channel_num
    assert C >= IN_CH, "channel_num must be >= 17 so input channels can be zero-padded"
    BP = B * P_SPATIAL
    _, _, K_PAD, _, _, HF_K = _grouping(C)

    # NCHW -> NHWC -> (B*16, 17) -> zero-pad channels to C, then pad PAD rows each side
    x = jnp.transpose(x_nchw, (0, 2, 3, 1)).reshape(BP, IN_CH).astype(jnp.float32)
    x = jnp.pad(x, ((PAD, PAD), (0, C - IN_CH)))                  # (BP + 2*PAD, C)

    mask = build_tap_masks(B, C)                                  # (9, BP, C) f32

    # trunk weights: (Cout, Cin, 3, 3) -> (9*C, C) -> K-pad to (K_PAD, C), bf16
    wt = []
    for l in range(layer_num):
        w = params[f"conv{l}_w"]
        if l == 0:
            w = jnp.pad(w, ((0, 0), (0, C - IN_CH), (0, 0), (0, 0)))
        w = jnp.transpose(w, (2, 3, 1, 0)).reshape(9 * C, C)
        wt.append(jnp.pad(w, ((0, K_PAD - 9 * C), (0, 0))))
    W_trunk = jnp.stack(wt).astype(jnp.bfloat16)                  # (L, K_PAD, C)
    bias_t = jnp.stack([params[f"conv{l}_b"] for l in range(layer_num)]).reshape(layer_num, 1, C)
    gamma_t = jnp.stack([params[f"bn{l}_g"] for l in range(layer_num)]).reshape(layer_num, 1, C)
    beta_t = jnp.stack([params[f"bn{l}_b"] for l in range(layer_num)]).reshape(layer_num, 1, C)

    # combined heads: (Cout, Cin, 4, 4) -> (16*C, Cout); actor(4) | critic(1) | zero pad
    Wa = jnp.transpose(params["actor_w"], (2, 3, 1, 0)).reshape(P_SPATIAL * C, 4)
    Wc = jnp.transpose(params["critic_w"], (2, 3, 1, 0)).reshape(P_SPATIAL * C, 1)
    W_head = jnp.pad(jnp.concatenate([Wa, Wc], axis=1),
                     ((0, HF_K - P_SPATIAL * C), (0, HEAD_W - 5))).astype(jnp.bfloat16)
    b_head = jnp.concatenate([params["actor_b"], params["critic_b"],
                              jnp.zeros((HEAD_W - 5,), jnp.float32)]).reshape(1, HEAD_W)

    kernel = make_kernel(use_bn, B, C, layer_num)

    out = pl.pallas_call(
        kernel,
        grid=(1,),                                                 # single step: no per-layer
        in_specs=[                                                 # grid overhead; all resident
            pl.BlockSpec((BP + 2 * PAD, C), lambda i: (0, 0)),     # pre-padded input
            pl.BlockSpec((9, BP, C), lambda i: (0, 0, 0)),         # pre-broadcast masks
            pl.BlockSpec((layer_num, K_PAD, C), lambda i: (0, 0, 0)),   # trunk W (resident)
            pl.BlockSpec((layer_num, 1, C), lambda i: (0, 0, 0)),  # conv bias
            pl.BlockSpec((layer_num, 1, C), lambda i: (0, 0, 0)),  # bn gamma
            pl.BlockSpec((layer_num, 1, C), lambda i: (0, 0, 0)),  # bn beta
            pl.BlockSpec((HF_K, HEAD_W), lambda i: (0, 0)),        # combined head W
            pl.BlockSpec((1, HEAD_W), lambda i: (0, 0)),           # combined head bias
        ],
        out_specs=pl.BlockSpec((B, HEAD_W), lambda i: (0, 0)),
        out_shape=jax.ShapeDtypeStruct((B, HEAD_W), jnp.float32),
        scratch_shapes=[
            pltpu.VMEM((BP + 2 * PAD, C), jnp.float32),     # zero-padded activations
            pltpu.VMEM((BP, K_PAD), jnp.bfloat16),          # im2col buffer (128-lane stores)
            pltpu.VMEM((B, HF_K), jnp.bfloat16),            # flattened head input
        ],
        compiler_params=pltpu.CompilerParams(
            dimension_semantics=("arbitrary",),
            vmem_limit_bytes=32 * 1024 * 1024,
        ),
    )(x, mask, W_trunk, bias_t, gamma_t, beta_t, W_head, b_head)

    actor = out[:, :4]
    critic = out[:, 4:5].reshape(B, 1, 1, 1)
    return actor, critic


# ----------------------------------------------------------------------------
# Pure-JAX reference (lax.conv on NCHW, f32) for correctness checking
# ----------------------------------------------------------------------------
def reference_forward(x, params, layer_num, use_bn):
    dn = ("NCHW", "OIHW", "NCHW")
    h = x.astype(jnp.float32)
    for l in range(layer_num):
        w, b = params[f"conv{l}_w"], params[f"conv{l}_b"]
        h = jax.lax.conv_general_dilated(h, w, (1, 1), ((1, 1), (1, 1)),
                                         dimension_numbers=dn) + b[None, :, None, None]
        if use_bn:
            mu = jnp.mean(h, axis=(0, 2, 3), keepdims=True)
            var = jnp.mean((h - mu) ** 2, axis=(0, 2, 3), keepdims=True)
            g = params[f"bn{l}_g"][None, :, None, None]
            be = params[f"bn{l}_b"][None, :, None, None]
            h = (h - mu) * jax.lax.rsqrt(var + BN_EPS) * g + be
        h = jnp.maximum(h, 0.0)
    a = jax.lax.conv_general_dilated(h, params["actor_w"], (1, 1), "VALID",
                                     dimension_numbers=dn) + params["actor_b"][None, :, None, None]
    c = jax.lax.conv_general_dilated(h, params["critic_w"], (1, 1), "VALID",
                                     dimension_numbers=dn) + params["critic_b"][None, :, None, None]
    return a.reshape(x.shape[0], 4), c


# ----------------------------------------------------------------------------
# Deterministic parameter init (shapes per NormalActorCritic.__init__)
# ----------------------------------------------------------------------------
def init_params(key, layer_num, channel_num):
    keys = iter(jax.random.split(key, 64))

    def rnd(shape, scale=0.1):
        return scale * jax.random.normal(next(keys), shape, jnp.float32)

    params = {}
    for l in range(layer_num):
        cin = IN_CH if l == 0 else channel_num
        params[f"conv{l}_w"] = rnd((channel_num, cin, 3, 3))
        params[f"conv{l}_b"] = rnd((channel_num,))
        params[f"bn{l}_g"] = 1.0 + rnd((channel_num,), 0.05)
        params[f"bn{l}_b"] = rnd((channel_num,), 0.05)
    params["actor_w"] = rnd((4, channel_num, 4, 4))
    params["actor_b"] = rnd((4,))
    params["critic_w"] = rnd((1, channel_num, 4, 4))
    params["critic_b"] = rnd((1,))
    return params


if __name__ == "__main__":
    # 8 boards -> 128 activation rows (full sublane tiles), C=32 channels.
    LAYER_NUM, CHANNEL_NUM, USE_BN, BATCH = 2, 32, True, 8

    key = jax.random.PRNGKey(0)
    k_board, k_params = jax.random.split(key)

    # Build a batch of 2048 boards and one-hot encode them like `to_3d` (17 planes).
    exps = jax.random.randint(k_board, (BATCH, H, W), 0, 11)
    board = jnp.where(exps == 0, 0, 2 ** exps)
    x = jnp.stack(
        [(board == 0) if i == 0 else (board == 2 ** i) for i in range(IN_CH)],
        axis=1,
    ).astype(jnp.float32)                                        # (B, 17, 4, 4) NCHW

    params = init_params(k_params, LAYER_NUM, CHANNEL_NUM)

    fwd = jax.jit(functools.partial(normal_actor_critic_forward,
                                    layer_num=LAYER_NUM,
                                    channel_num=CHANNEL_NUM,
                                    use_bn=USE_BN))
    actor_logits, critic_vals = fwd(x, params)
    jax.block_until_ready((actor_logits, critic_vals))

    ref_actor, ref_critic = reference_forward(x, params, LAYER_NUM, USE_BN)
    assert actor_logits.shape == (BATCH, 4)
    assert critic_vals.shape == (BATCH, 1, 1, 1)
    # Tolerance reflects bf16 MXU operands (f32 accumulation) vs the f32 reference,
    # plus the documented bias-skip-under-BN equivalence.
    assert jnp.allclose(actor_logits, ref_actor, atol=5e-2, rtol=5e-2)
    assert jnp.allclose(critic_vals, ref_critic, atol=5e-2, rtol=5e-2)

    # TODO(synk): act()'s legal-move masking / Categorical sampling and the 2048 game
    # move helpers (up/down/left/right) are host-side control flow, not kernel compute.
    print("KERNEL_OK")
</pallas_src>

<mosaic_0001>
module attributes {stable_mosaic.version = 11 : i64} {
  func.func @kernel(%arg0: i32, %arg1: memref<144x32xf32, #tpu.memory_space<vmem>>, %arg2: memref<9x128x32xf32, #tpu.memory_space<vmem>>, %arg3: memref<2x384x32xbf16, #tpu.memory_space<vmem>>, %arg4: memref<2x1x32xf32, #tpu.memory_space<vmem>>, %arg5: memref<2x1x32xf32, #tpu.memory_space<vmem>>, %arg6: memref<2x1x32xf32, #tpu.memory_space<vmem>>, %arg7: memref<512x128xbf16, #tpu.memory_space<vmem>>, %arg8: memref<1x128xf32, #tpu.memory_space<vmem>>, %arg9: memref<8x128xf32, #tpu.memory_space<vmem>>, %arg10: memref<144x32xf32, #tpu.memory_space<vmem>>, %arg11: memref<128x384xbf16, #tpu.memory_space<vmem>>, %arg12: memref<8x512xbf16, #tpu.memory_space<vmem>>) attributes {dimension_semantics = [#tpu.dimension_semantics<arbitrary>], iteration_bounds = array<i64: 1>, scalar_prefetch = 0 : i64, scratch_operands = 3 : i64, tpu.core_type = #tpu.core_type<tc>, window_params = [{pipeline_mode = #tpu.pipeline_mode<synchronous>, transform_indices = @transform_0, window_bounds = array<i64: 144, 32>}, {pipeline_mode = #tpu.pipeline_mode<synchronous>, transform_indices = @transform_1, window_bounds = array<i64: 9, 128, 32>}, {pipeline_mode = #tpu.pipeline_mode<synchronous>, transform_indices = @transform_2, window_bounds = array<i64: 2, 384, 32>}, {pipeline_mode = #tpu.pipeline_mode<synchronous>, transform_indices = @transform_3, window_bounds = array<i64: 2, 1, 32>}, {pipeline_mode = #tpu.pipeline_mode<synchronous>, transform_indices = @transform_4, window_bounds = array<i64: 2, 1, 32>}, {pipeline_mode = #tpu.pipeline_mode<synchronous>, transform_indices = @transform_5, window_bounds = array<i64: 2, 1, 32>}, {pipeline_mode = #tpu.pipeline_mode<synchronous>, transform_indices = @transform_6, window_bounds = array<i64: 512, 128>}, {pipeline_mode = #tpu.pipeline_mode<synchronous>, transform_indices = @transform_7, window_bounds = array<i64: 1, 128>}, {pipeline_mode = #tpu.pipeline_mode<synchronous>, transform_indices = @transform_8, window_bounds = array<i64: 8, 128>}]} {
    %cst = arith.constant 0.000000e+00 : f32
    %0 = vector.broadcast %cst : f32 to vector<8x32xf32>
    %c0 = arith.constant 0 : index
    %c0_0 = arith.constant 0 : index
    %1 = vector.load %arg10[%c0, %c0_0] : memref<144x32xf32, #tpu.memory_space<vmem>>, vector<8x32xf32>
    tpu.vector_store %arg10[%c0, %c0_0], %0 {strides = array<i32>} : memref<144x32xf32, #tpu.memory_space<vmem>>, vector<8x32xf32>,
    %cst_1 = arith.constant 0.000000e+00 : f32
    %2 = vector.broadcast %cst_1 : f32 to vector<8x32xf32>
    %c136 = arith.constant 136 : index
    %c0_2 = arith.constant 0 : index
    %3 = vector.load %arg10[%c136, %c0_2] : memref<144x32xf32, #tpu.memory_space<vmem>>, vector<8x32xf32>
    tpu.vector_store %arg10[%c136, %c0_2], %2 {strides = array<i32>} : memref<144x32xf32, #tpu.memory_space<vmem>>, vector<8x32xf32>,
    %c3 = arith.constant 3 : index
    %c0_3 = arith.constant 0 : index
    %4 = vector.load %arg1[%c3, %c0_3] : memref<144x32xf32, #tpu.memory_space<vmem>>, vector<128x32xf32>
    %c0_4 = arith.constant 0 : index
    %c0_5 = arith.constant 0 : index
    %c0_6 = arith.constant 0 : index
    %5 = vector.load %arg2[%c0_4, %c0_5, %c0_6] : memref<9x128x32xf32, #tpu.memory_space<vmem>>, vector<1x128x32xf32>
    %6 = vector.shape_cast %5 : vector<1x128x32xf32> to vector<128x32xf32>
    %7 = arith.mulf %4, %6 : vector<128x32xf32>
    %8 = arith.truncf %7 : vector<128x32xf32> to vector<128x32xbf16>
    %c4 = arith.constant 4 : index
    %c0_7 = arith.constant 0 : index
    %9 = vector.load %arg1[%c4, %c0_7] : memref<144x32xf32, #tpu.memory_space<vmem>>, vector<128x32xf32>
    %c1 = arith.constant 1 : index
    %c0_8 = arith.constant 0 : index
    %c0_9 = arith.constant 0 : index
    %10 = vector.load %arg2[%c1, %c0_8, %c0_9] : memref<9x128x32xf32, #tpu.memory_space<vmem>>, vector<1x128x32xf32>
    %11 = vector.shape_cast %10 : vector<1x128x32xf32> to vector<128x32xf32>
    %12 = arith.mulf %9, %11 : vector<128x32xf32>
    %13 = arith.truncf %12 : vector<128x32xf32> to vector<128x32xbf16>
    %c5 = arith.constant 5 : index
    %c0_10 = arith.constant 0 : index
    %14 = vector.load %arg1[%c5, %c0_10] : memref<144x32xf32, #tpu.memory_space<vmem>>, vector<128x32xf32>
    %c2 = arith.constant 2 : index
    %c0_11 = arith.constant 0 : index
    %c0_12 = arith.constant 0 : index
    %15 = vector.load %arg2[%c2, %c0_11, %c0_12] : memref<9x128x32xf32, #tpu.memory_space<vmem>>, vector<1x128x32xf32>
    %16 = vector.shape_cast %15 : vector<1x128x32xf32> to vector<128x32xf32>
    %17 = arith.mulf %14, %16 : vector<128x32xf32>
    %18 = arith.truncf %17 : vector<128x32xf32> to vector<128x32xbf16>
    %c7 = arith.constant 7 : index
    %c0_13 = arith.constant 0 : index
    %19 = vector.load %arg1[%c7, %c0_13] : memref<144x32xf32, #tpu.memory_space<vmem>>, vector<128x32xf32>
    %c3_14 = arith.constant 3 : index
    %c0_15 = arith.constant 0 : index
    %c0_16 = arith.constant 0 : index
    %20 = vector.load %arg2[%c3_14, %c0_15, %c0_16] : memref<9x128x32xf32, #tpu.memory_space<vmem>>, vector<1x128x32xf32>
    %21 = vector.shape_cast %20 : vector<1x128x32xf32> to vector<128x32xf32>
    %22 = arith.mulf %19, %21 : vector<128x32xf32>
    %23 = arith.truncf %22 : vector<128x32xf32> to vector<128x32xbf16>
    %24 = tpu.concatenate %8, %13, %18, %23 in 1 : vector<128x32xbf16>, vector<128x32xbf16>, vector<128x32xbf16>, vector<128x32xbf16> -> vector<128x128xbf16>
    %c0_17 = arith.constant 0 : index
    %c0_18 = arith.constant 0 : index
    %25 = vector.load %arg11[%c0_17, %c0_18] : memref<128x384xbf16, #tpu.memory_space<vmem>>, vector<128x128xbf16>
    tpu.vector_store %arg11[%c0_17, %c0_18], %24 {strides = array<i32>} : memref<128x384xbf16, #tpu.memory_space<vmem>>, vector<128x128xbf16>,
    %c8 = arith.constant 8 : index
    %c0_19 = arith.constant 0 : index
    %26 = vector.load %arg1[%c8, %c0_19] : memref<144x32xf32, #tpu.memory_space<vmem>>, vector<128x32xf32>
    %c4_20 = arith.constant 4 : index
    %c0_21 = arith.constant 0 : index
    %c0_22 = arith.constant 0 : index
    %27 = vector.load %arg2[%c4_20, %c0_21, %c0_22] : memref<9x128x32xf32, #tpu.memory_space<vmem>>, vector<1x128x32xf32>
    %28 = vector.shape_cast %27 : vector<1x128x32xf32> to vector<128x32xf32>
    %29 = arith.mulf %26, %28 : vector<128x32xf32>
    %30 = arith.truncf %29 : vector<128x32xf32> to vector<128x32xbf16>
    %c9 = arith.constant 9 : index
    %c0_23 = arith.constant 0 : index
    %31 = vector.load %arg1[%c9, %c0_23] : memref<144x32xf32, #tpu.memory_space<vmem>>, vector<128x32xf32>
    %c5_24 = arith.constant 5 : index
    %c0_25 = arith.constant 0 : index
    %c0_26 = arith.constant 0 : index
    %32 = vector.load %arg2[%c5_24, %c0_25, %c0_26] : memref<9x128x32xf32, #tpu.memory_space<vmem>>, vector<1x128x32xf32>
    %33 = vector.shape_cast %32 : vector<1x128x32xf32> to vector<128x32xf32>
    %34 = arith.mulf %31, %33 : vector<128x32xf32>
    %35 = arith.truncf %34 : vector<128x32xf32> to vector<128x32xbf16>
    %c11 = arith.constant 11 : index
    %c0_27 = arith.constant 0 : index
    %36 = vector.load %arg1[%c11, %c0_27] : memref<144x32xf32, #tpu.memory_space<vmem>>, vector<128x32xf32>
    %c6 = arith.constant 6 : index
    %c0_28 = arith.constant 0 : index
    %c0_29 = arith.constant 0 : index
    %37 = vector.load %arg2[%c6, %c0_28, %c0_29] : memref<9x128x32xf32, #tpu.memory_space<vmem>>, vector<1x128x32xf32>
    %38 = vector.shape_cast %37 : vector<1x128x32xf32> to vector<128x32xf32>
    %39 = arith.mulf %36, %38 : vector<128x32xf32>
    %40 = arith.truncf %39 : vector<128x32xf32> to vector<128x32xbf16>
    %c12 = arith.constant 12 : index
    %c0_30 = arith.constant 0 : index
    %41 = vector.load %arg1[%c12, %c0_30] : memref<144x32xf32, #tpu.memory_space<vmem>>, vector<128x32xf32>
    %c7_31 = arith.constant 7 : index
    %c0_32 = arith.constant 0 : index
    %c0_33 = arith.constant 0 : index
    %42 = vector.load %arg2[%c7_31, %c0_32, %c0_33] : memref<9x128x32xf32, #tpu.memory_space<vmem>>, vector<1x128x32xf32>
    %43 = vector.shape_cast %42 : vector<1x128x32xf32> to vector<128x32xf32>
    %44 = arith.mulf %41, %43 : vector<128x32xf32>
    %45 = arith.truncf %44 : vector<128x32xf32> to vector<128x32xbf16>
    %46 = tpu.concatenate %30, %35, %40, %45 in 1 : vector<128x32xbf16>, vector<128x32xbf16>, vector<128x32xbf16>, vector<128x32xbf16> -> vector<128x128xbf16>
    %c0_34 = arith.constant 0 : index
    %c128 = arith.constant 128 : index
    %47 = vector.load %arg11[%c0_34, %c128] : memref<128x384xbf16, #tpu.memory_space<vmem>>, vector<128x128xbf16>
    tpu.vector_store %arg11[%c0_34, %c128], %46 {strides = array<i32>} : memref<128x384xbf16, #tpu.memory_space<vmem>>, vector<128x128xbf16>,
    %c13 = arith.constant 13 : index
    %c0_35 = arith.constant 0 : index
    %48 = vector.load %arg1[%c13, %c0_35] : memref<144x32xf32, #tpu.memory_space<vmem>>, vector<128x32xf32>
    %c8_36 = arith.constant 8 : index
    %c0_37 = arith.constant 0 : index
    %c0_38 = arith.constant 0 : index
    %49 = vector.load %arg2[%c8_36, %c0_37, %c0_38] : memref<9x128x32xf32, #tpu.memory_space<vmem>>, vector<1x128x32xf32>
    %50 = vector.shape_cast %49 : vector<1x128x32xf32> to vector<128x32xf32>
    %51 = arith.mulf %48, %50 : vector<128x32xf32>
    %52 = arith.truncf %51 : vector<128x32xf32> to vector<128x32xbf16>
    %cst_39 = arith.constant 0.000000e+00 : bf16
    %53 = vector.broadcast %cst_39 : bf16 to vector<128x32xbf16>
    %cst_40 = arith.constant 0.000000e+00 : bf16
    %54 = vector.broadcast %cst_40 : bf16 to vector<128x32xbf16>
    %cst_41 = arith.constant 0.000000e+00 : bf16
    %55 = vector.broadcast %cst_41 : bf16 to vector<128x32xbf16>
    %56 = tpu.concatenate %52, %53, %54, %55 in 1 : vector<128x32xbf16>, vector<128x32xbf16>, vector<128x32xbf16>, vector<128x32xbf16> -> vector<128x128xbf16>
    %c0_42 = arith.constant 0 : index
    %c256 = arith.constant 256 : index
    %57 = vector.load %arg11[%c0_42, %c256] : memref<128x384xbf16, #tpu.memory_space<vmem>>, vector<128x128xbf16>
    tpu.vector_store %arg11[%c0_42, %c256], %56 {strides = array<i32>} : memref<128x384xbf16, #tpu.memory_space<vmem>>, vector<128x128xbf16>,
    %c0_43 = arith.constant 0 : index
    %c0_44 = arith.constant 0 : index
    %58 = vector.load %arg11[%c0_43, %c0_44] : memref<128x384xbf16, #tpu.memory_space<vmem>>, vector<128x384xbf16>
    %c0_45 = arith.constant 0 : index
    %c0_46 = arith.constant 0 : index
    %c0_47 = arith.constant 0 : index
    %59 = vector.load %arg3[%c0_45, %c0_46, %c0_47] : memref<2x384x32xbf16, #tpu.memory_space<vmem>>, vector<1x384x32xbf16>
    %60 = vector.shape_cast %59 : vector<1x384x32xbf16> to vector<384x32xbf16>
    %cst_48 = arith.constant dense<0.000000e+00> : vector<128x32xf32>
    %61 = tpu.matmul %58, %60, %cst_48 {dimension_numbers = #tpu.dot_dimension_numbers<[1], [0], [0], [1], [0, 0, 1, 1], [], []>} : vector<128x384xbf16>, vector<384x32xbf16>, vector<128x32xf32> -> vector<128x32xf32>
    %cst_49 = arith.constant dense<0.000000e+00> : vector<32xf32>
    %62 = vector.multi_reduction <add>, %61, %cst_49 [0] : vector<128x32xf32> to vector<32xf32>
    %63 = vector.shape_cast %62 : vector<32xf32> to vector<1x32xf32>
    %cst_50 = arith.constant 1.280000e+02 : f32
    %64 = vector.broadcast %cst_50 : f32 to vector<1x32xf32>
    %65 = arith.divf %63, %64 : vector<1x32xf32>
    %66 = arith.mulf %61, %61 : vector<128x32xf32>
    %cst_51 = arith.constant dense<0.000000e+00> : vector<32xf32>
    %67 = vector.multi_reduction <add>, %66, %cst_51 [0] : vector<128x32xf32> to vector<32xf32>
    %68 = vector.shape_cast %67 : vector<32xf32> to vector<1x32xf32>
    %cst_52 = arith.constant 1.280000e+02 : f32
    %69 = vector.broadcast %cst_52 : f32 to vector<1x32xf32>
    %70 = arith.divf %68, %69 : vector<1x32xf32>
    %71 = arith.mulf %65, %65 : vector<1x32xf32>
    %72 = arith.subf %70, %71 : vector<1x32xf32>
    %cst_53 = arith.constant 0.000000e+00 : f32
    %73 = vector.broadcast %cst_53 : f32 to vector<1x32xf32>
    %74 = arith.maximumf %72, %73 : vector<1x32xf32>
    %c0_54 = arith.constant 0 : index
    %c0_55 = arith.constant 0 : index
    %c0_56 = arith.constant 0 : index
    %75 = vector.load %arg5[%c0_54, %c0_55, %c0_56] : memref<2x1x32xf32, #tpu.memory_space<vmem>>, vector<1x1x32xf32>
    %76 = vector.shape_cast %75 : vector<1x1x32xf32> to vector<1x32xf32>
    %cst_57 = arith.constant 9.99999974E-6 : f32
    %77 = vector.broadcast %cst_57 : f32 to vector<1x32xf32>
    %78 = arith.addf %74, %77 : vector<1x32xf32>
    %79 = math.rsqrt %78 : vector<1x32xf32>
    %80 = arith.mulf %76, %79 : vector<1x32xf32>
    %81 = vector.broadcast %80 : vector<1x32xf32> to vector<128x32xf32>
    %82 = arith.mulf %61, %81 : vector<128x32xf32>
    %c0_58 = arith.constant 0 : index
    %c0_59 = arith.constant 0 : index
    %c0_60 = arith.constant 0 : index
    %83 = vector.load %arg6[%c0_58, %c0_59, %c0_60] : memref<2x1x32xf32, #tpu.memory_space<vmem>>, vector<1x1x32xf32>
    %84 = vector.shape_cast %83 : vector<1x1x32xf32> to vector<1x32xf32>
    %85 = arith.mulf %65, %80 : vector<1x32xf32>
    %86 = arith.subf %84, %85 : vector<1x32xf32>
    %87 = vector.broadcast %86 : vector<1x32xf32> to vector<128x32xf32>
    %88 = arith.addf %82, %87 : vector<128x32xf32>
    %cst_61 = arith.constant 0.000000e+00 : f32
    %89 = vector.broadcast %cst_61 : f32 to vector<128x32xf32>
    %90 = arith.maximumf %88, %89 : vector<128x32xf32>
    %c8_62 = arith.constant 8 : index
    %c0_63 = arith.constant 0 : index
    %91 = vector.load %arg10[%c8_62, %c0_63] : memref<144x32xf32, #tpu.memory_space<vmem>>, vector<128x32xf32>
    tpu.vector_store %arg10[%c8_62, %c0_63], %90 {strides = array<i32>} : memref<144x32xf32, #tpu.memory_space<vmem>>, vector<128x32xf32>,
    %c3_64 = arith.constant 3 : index
    %c0_65 = arith.constant 0 : index
    %92 = vector.load %arg10[%c3_64, %c0_65] : memref<144x32xf32, #tpu.memory_space<vmem>>, vector<128x32xf32>
    %c0_66 = arith.constant 0 : index
    %c0_67 = arith.constant 0 : index
    %c0_68 = arith.constant 0 : index
    %93 = vector.load %arg2[%c0_66, %c0_67, %c0_68] : memref<9x128x32xf32, #tpu.memory_space<vmem>>, vector<1x128x32xf32>
    %94 = vector.shape_cast %93 : vector<1x128x32xf32> to vector<128x32xf32>
    %95 = arith.mulf %92, %94 : vector<128x32xf32>
    %96 = arith.truncf %95 : vector<128x32xf32> to vector<128x32xbf16>
    %c4_69 = arith.constant 4 : index
    %c0_70 = arith.constant 0 : index
    %97 = vector.load %arg10[%c4_69, %c0_70] : memref<144x32xf32, #tpu.memory_space<vmem>>, vector<128x32xf32>
    %c1_71 = arith.constant 1 : index
    %c0_72 = arith.constant 0 : index
    %c0_73 = arith.constant 0 : index
    %98 = vector.load %arg2[%c1_71, %c0_72, %c0_73] : memref<9x128x32xf32, #tpu.memory_space<vmem>>, vector<1x128x32xf32>
    %99 = vector.shape_cast %98 : vector<1x128x32xf32> to vector<128x32xf32>
    %100 = arith.mulf %97, %99 : vector<128x32xf32>
    %101 = arith.truncf %100 : vector<128x32xf32> to vector<128x32xbf16>
    %c5_74 = arith.constant 5 : index
    %c0_75 = arith.constant 0 : index
    %102 = vector.load %arg10[%c5_74, %c0_75] : memref<144x32xf32, #tpu.memory_space<vmem>>, vector<128x32xf32>
    %c2_76 = arith.constant 2 : index
    %c0_77 = arith.constant 0 : index
    %c0_78 = arith.constant 0 : index
    %103 = vector.load %arg2[%c2_76, %c0_77, %c0_78] : memref<9x128x32xf32, #tpu.memory_space<vmem>>, vector<1x128x32xf32>
    %104 = vector.shape_cast %103 : vector<1x128x32xf32> to vector<128x32xf32>
    %105 = arith.mulf %102, %104 : vector<128x32xf32>
    %106 = arith.truncf %105 : vector<128x32xf32> to vector<128x32xbf16>
    %c7_79 = arith.constant 7 : index
    %c0_80 = arith.constant 0 : index
    %107 = vector.load %arg10[%c7_79, %c0_80] : memref<144x32xf32, #tpu.memory_space<vmem>>, vector<128x32xf32>
    %c3_81 = arith.constant 3 : index
    %c0_82 = arith.constant 0 : index
    %c0_83 = arith.constant 0 : index
    %108 = vector.load %arg2[%c3_81, %c0_82, %c0_83] : memref<9x128x32xf32, #tpu.memory_space<vmem>>, vector<1x128x32xf32>
    %109 = vector.shape_cast %108 : vector<1x128x32xf32> to vector<128x32xf32>
    %110 = arith.mulf %107, %109 : vector<128x32xf32>
    %111 = arith.truncf %110 : vector<128x32xf32> to vector<128x32xbf16>
    %112 = tpu.concatenate %96, %101, %106, %111 in 1 : vector<128x32xbf16>, vector<128x32xbf16>, vector<128x32xbf16>, vector<128x32xbf16> -> vector<128x128xbf16>
    %c0_84 = arith.constant 0 : index
    %c0_85 = arith.constant 0 : index
    %113 = vector.load %arg11[%c0_84, %c0_85] : memref<128x384xbf16, #tpu.memory_space<vmem>>, vector<128x128xbf16>
    tpu.vector_store %arg11[%c0_84, %c0_85], %112 {strides = array<i32>} : memref<128x384xbf16, #tpu.memory_space<vmem>>, vector<128x128xbf16>,
    %c8_86 = arith.constant 8 : index
    %c0_87 = arith.constant 0 : index
    %114 = vector.load %arg10[%c8_86, %c0_87] : memref<144x32xf32, #tpu.memory_space<vmem>>, vector<128x32xf32>
    %c4_88 = arith.constant 4 : index
    %c0_89 = arith.constant 0 : index
    %c0_90 = arith.constant 0 : index
    %115 = vector.load %arg2[%c4_88, %c0_89, %c0_90] : memref<9x128x32xf32, #tpu.memory_space<vmem>>, vector<1x128x32xf32>
    %116 = vector.shape_cast %115 : vector<1x128x32xf32> to vector<128x32xf32>
    %117 = arith.mulf %114, %116 : vector<128x32xf32>
    %118 = arith.truncf %117 : vector<128x32xf32> to vector<128x32xbf16>
    %c9_91 = arith.constant 9 : index
    %c0_92 = arith.constant 0 : index
    %119 = vector.load %arg10[%c9_91, %c0_92] : memref<144x32xf32, #tpu.memory_space<vmem>>, vector<128x32xf32>
    %c5_93 = arith.constant 5 : index
    %c0_94 = arith.constant 0 : index
    %c0_95 = arith.constant 0 : index
    %120 = vector.load %arg2[%c5_93, %c0_94, %c0_95] : memref<9x128x32xf32, #tpu.memory_space<vmem>>, vector<1x128x32xf32>
    %121 = vector.shape_cast %120 : vector<1x128x32xf32> to vector<128x32xf32>
    %122 = arith.mulf %119, %121 : vector<128x32xf32>
    %123 = arith.truncf %122 : vector<128x32xf32> to vector<128x32xbf16>
    %c11_96 = arith.constant 11 : index
    %c0_97 = arith.constant 0 : index
    %124 = vector.load %arg10[%c11_96, %c0_97] : memref<144x32xf32, #tpu.memory_space<vmem>>, vector<128x32xf32>
    %c6_98 = arith.constant 6 : index
    %c0_99 = arith.constant 0 : index
    %c0_100 = arith.constant 0 : index
    %125 = vector.load %arg2[%c6_98, %c0_99, %c0_100] : memref<9x128x32xf32, #tpu.memory_space<vmem>>, vector<1x128x32xf32>
    %126 = vector.shape_cast %125 : vector<1x128x32xf32> to vector<128x32xf32>
    %127 = arith.mulf %124, %126 : vector<128x32xf32>
    %128 = arith.truncf %127 : vector<128x32xf32> to vector<128x32xbf16>
    %c12_101 = arith.constant 12 : index
    %c0_102 = arith.constant 0 : index
    %129 = vector.load %arg10[%c12_101, %c0_102] : memref<144x32xf32, #tpu.memory_space<vmem>>, vector<128x32xf32>
    %c7_103 = arith.constant 7 : index
    %c0_104 = arith.constant 0 : index
    %c0_105 = arith.constant 0 : index
    %130 = vector.load %arg2[%c7_103, %c0_104, %c0_105] : memref<9x128x32xf32, #tpu.memory_space<vmem>>, vector<1x128x32xf32>
    %131 = vector.shape_cast %130 : vector<1x128x32xf32> to vector<128x32xf32>
    %132 = arith.mulf %129, %131 : vector<128x32xf32>
    %133 = arith.truncf %132 : vector<128x32xf32> to vector<128x32xbf16>
    %134 = tpu.concatenate %118, %123, %128, %133 in 1 : vector<128x32xbf16>, vector<128x32xbf16>, vector<128x32xbf16>, vector<128x32xbf16> -> vector<128x128xbf16>
    %c0_106 = arith.constant 0 : index
    %c128_107 = arith.constant 128 : index
    %135 = vector.load %arg11[%c0_106, %c128_107] : memref<128x384xbf16, #tpu.memory_space<vmem>>, vector<128x128xbf16>
    tpu.vector_store %arg11[%c0_106, %c128_107], %134 {strides = array<i32>} : memref<128x384xbf16, #tpu.memory_space<vmem>>, vector<128x128xbf16>,
    %c13_108 = arith.constant 13 : index
    %c0_109 = arith.constant 0 : index
    %136 = vector.load %arg10[%c13_108, %c0_109] : memref<144x32xf32, #tpu.memory_space<vmem>>, vector<128x32xf32>
    %c8_110 = arith.constant 8 : index
    %c0_111 = arith.constant 0 : index
    %c0_112 = arith.constant 0 : index
    %137 = vector.load %arg2[%c8_110, %c0_111, %c0_112] : memref<9x128x32xf32, #tpu.memory_space<vmem>>, vector<1x128x32xf32>
    %138 = vector.shape_cast %137 : vector<1x128x32xf32> to vector<128x32xf32>
    %139 = arith.mulf %136, %138 : vector<128x32xf32>
    %140 = arith.truncf %139 : vector<128x32xf32> to vector<128x32xbf16>
    %cst_113 = arith.constant 0.000000e+00 : bf16
    %141 = vector.broadcast %cst_113 : bf16 to vector<128x32xbf16>
    %cst_114 = arith.constant 0.000000e+00 : bf16
    %142 = vector.broadcast %cst_114 : bf16 to vector<128x32xbf16>
    %cst_115 = arith.constant 0.000000e+00 : bf16
    %143 = vector.broadcast %cst_115 : bf16 to vector<128x32xbf16>
    %144 = tpu.concatenate %140, %141, %142, %143 in 1 : vector<128x32xbf16>, vector<128x32xbf16>, vector<128x32xbf16>, vector<128x32xbf16> -> vector<128x128xbf16>
    %c0_116 = arith.constant 0 : index
    %c256_117 = arith.constant 256 : index
    %145 = vector.load %arg11[%c0_116, %c256_117] : memref<128x384xbf16, #tpu.memory_space<vmem>>, vector<128x128xbf16>
    tpu.vector_store %arg11[%c0_116, %c256_117], %144 {strides = array<i32>} : memref<128x384xbf16, #tpu.memory_space<vmem>>, vector<128x128xbf16>,
    %c0_118 = arith.constant 0 : index
    %c0_119 = arith.constant 0 : index
    %146 = vector.load %arg11[%c0_118, %c0_119] : memref<128x384xbf16, #tpu.memory_space<vmem>>, vector<128x384xbf16>
    %c1_120 = arith.constant 1 : index
    %c0_121 = arith.constant 0 : index
    %c0_122 = arith.constant 0 : index
    %147 = vector.load %arg3[%c1_120, %c0_121, %c0_122] : memref<2x384x32xbf16, #tpu.memory_space<vmem>>, vector<1x384x32xbf16>
    %148 = vector.shape_cast %147 : vector<1x384x32xbf16> to vector<384x32xbf16>
    %cst_123 = arith.constant dense<0.000000e+00> : vector<128x32xf32>
    %149 = tpu.matmul %146, %148, %cst_123 {dimension_numbers = #tpu.dot_dimension_numbers<[1], [0], [0], [1], [0, 0, 1, 1], [], []>} : vector<128x384xbf16>, vector<384x32xbf16>, vector<128x32xf32> -> vector<128x32xf32>
    %cst_124 = arith.constant dense<0.000000e+00> : vector<32xf32>
    %150 = vector.multi_reduction <add>, %149, %cst_124 [0] : vector<128x32xf32> to vector<32xf32>
    %151 = vector.shape_cast %150 : vector<32xf32> to vector<1x32xf32>
    %cst_125 = arith.constant 1.280000e+02 : f32
    %152 = vector.broadcast %cst_125 : f32 to vector<1x32xf32>
    %153 = arith.divf %151, %152 : vector<1x32xf32>
    %154 = arith.mulf %149, %149 : vector<128x32xf32>
    %cst_126 = arith.constant dense<0.000000e+00> : vector<32xf32>
    %155 = vector.multi_reduction <add>, %154, %cst_126 [0] : vector<128x32xf32> to vector<32xf32>
    %156 = vector.shape_cast %155 : vector<32xf32> to vector<1x32xf32>
    %cst_127 = arith.constant 1.280000e+02 : f32
    %157 = vector.broadcast %cst_127 : f32 to vector<1x32xf32>
    %158 = arith.divf %156, %157 : vector<1x32xf32>
    %159 = arith.mulf %153, %153 : vector<1x32xf32>
    %160 = arith.subf %158, %159 : vector<1x32xf32>
    %cst_128 = arith.constant 0.000000e+00 : f32
    %161 = vector.broadcast %cst_128 : f32 to vector<1x32xf32>
    %162 = arith.maximumf %160, %161 : vector<1x32xf32>
    %c1_129 = arith.constant 1 : index
    %c0_130 = arith.constant 0 : index
    %c0_131 = arith.constant 0 : index
    %163 = vector.load %arg5[%c1_129, %c0_130, %c0_131] : memref<2x1x32xf32, #tpu.memory_space<vmem>>, vector<1x1x32xf32>
    %164 = vector.shape_cast %163 : vector<1x1x32xf32> to vector<1x32xf32>
    %cst_132 = arith.constant 9.99999974E-6 : f32
    %165 = vector.broadcast %cst_132 : f32 to vector<1x32xf32>
    %166 = arith.addf %162, %165 : vector<1x32xf32>
    %167 = math.rsqrt %166 : vector<1x32xf32>
    %168 = arith.mulf %164, %167 : vector<1x32xf32>
    %169 = vector.broadcast %168 : vector<1x32xf32> to vector<128x32xf32>
    %170 = arith.mulf %149, %169 : vector<128x32xf32>
    %c1_133 = arith.constant 1 : index
    %c0_134 = arith.constant 0 : index
    %c0_135 = arith.constant 0 : index
    %171 = vector.load %arg6[%c1_133, %c0_134, %c0_135] : memref<2x1x32xf32, #tpu.memory_space<vmem>>, vector<1x1x32xf32>
    %172 = vector.shape_cast %171 : vector<1x1x32xf32> to vector<1x32xf32>
    %173 = arith.mulf %153, %168 : vector<1x32xf32>
    %174 = arith.subf %172, %173 : vector<1x32xf32>
    %175 = vector.broadcast %174 : vector<1x32xf32> to vector<128x32xf32>
    %176 = arith.addf %170, %175 : vector<128x32xf32>
    %cst_136 = arith.constant 0.000000e+00 : f32
    %177 = vector.broadcast %cst_136 : f32 to vector<128x32xf32>
    %178 = arith.maximumf %176, %177 : vector<128x32xf32>
    %c8_137 = arith.constant 8 : index
    %c0_138 = arith.constant 0 : index
    %179 = vector.load %arg10[%c8_137, %c0_138] : memref<144x32xf32, #tpu.memory_space<vmem>>, vector<128x32xf32>
    tpu.vector_store %arg10[%c8_137, %c0_138], %178 {strides = array<i32>} : memref<144x32xf32, #tpu.memory_space<vmem>>, vector<128x32xf32>,
    %c8_139 = arith.constant 8 : index
    %c0_140 = arith.constant 0 : index
    %180 = tpu.strided_load %arg10[%c8_139, %c0_140] {strides = array<i32: 16, 1>} : memref<144x32xf32, #tpu.memory_space<vmem>>, vector<8x32xf32>
    %181 = arith.truncf %180 : vector<8x32xf32> to vector<8x32xbf16>
    %c9_141 = arith.constant 9 : index
    %c0_142 = arith.constant 0 : index
    %182 = tpu.strided_load %arg10[%c9_141, %c0_142] {strides = array<i32: 16, 1>} : memref<144x32xf32, #tpu.memory_space<vmem>>, vector<8x32xf32>
    %183 = arith.truncf %182 : vector<8x32xf32> to vector<8x32xbf16>
    %c10 = arith.constant 10 : index
    %c0_143 = arith.constant 0 : index
    %184 = tpu.strided_load %arg10[%c10, %c0_143] {strides = array<i32: 16, 1>} : memref<144x32xf32, #tpu.memory_space<vmem>>, vector<8x32xf32>
    %185 = arith.truncf %184 : vector<8x32xf32> to vector<8x32xbf16>
    %c11_144 = arith.constant 11 : index
    %c0_145 = arith.constant 0 : index
    %186 = tpu.strided_load %arg10[%c11_144, %c0_145] {strides = array<i32: 16, 1>} : memref<144x32xf32, #tpu.memory_space<vmem>>, vector<8x32xf32>
    %187 = arith.truncf %186 : vector<8x32xf32> to vector<8x32xbf16>
    %188 = tpu.concatenate %181, %183, %185, %187 in 1 : vector<8x32xbf16>, vector<8x32xbf16>, vector<8x32xbf16>, vector<8x32xbf16> -> vector<8x128xbf16>
    %c0_146 = arith.constant 0 : index
    %c0_147 = arith.constant 0 : index
    %189 = vector.load %arg12[%c0_146, %c0_147] : memref<8x512xbf16, #tpu.memory_space<vmem>>, vector<8x128xbf16>
    tpu.vector_store %arg12[%c0_146, %c0_147], %188 {strides = array<i32>} : memref<8x512xbf16, #tpu.memory_space<vmem>>, vector<8x128xbf16>,
    %c12_148 = arith.constant 12 : index
    %c0_149 = arith.constant 0 : index
    %190 = tpu.strided_load %arg10[%c12_148, %c0_149] {strides = array<i32: 16, 1>} : memref<144x32xf32, #tpu.memory_space<vmem>>, vector<8x32xf32>
    %191 = arith.truncf %190 : vector<8x32xf32> to vector<8x32xbf16>
    %c13_150 = arith.constant 13 : index
    %c0_151 = arith.constant 0 : index
    %192 = tpu.strided_load %arg10[%c13_150, %c0_151] {strides = array<i32: 16, 1>} : memref<144x32xf32, #tpu.memory_space<vmem>>, vector<8x32xf32>
    %193 = arith.truncf %192 : vector<8x32xf32> to vector<8x32xbf16>
    %c14 = arith.constant 14 : index
    %c0_152 = arith.constant 0 : index
    %194 = tpu.strided_load %arg10[%c14, %c0_152] {strides = array<i32: 16, 1>} : memref<144x32xf32, #tpu.memory_space<vmem>>, vector<8x32xf32>
    %195 = arith.truncf %194 : vector<8x32xf32> to vector<8x32xbf16>
    %c15 = arith.constant 15 : index
    %c0_153 = arith.constant 0 : index
    %196 = tpu.strided_load %arg10[%c15, %c0_153] {strides = array<i32: 16, 1>} : memref<144x32xf32, #tpu.memory_space<vmem>>, vector<8x32xf32>
    %197 = arith.truncf %196 : vector<8x32xf32> to vector<8x32xbf16>
    %198 = tpu.concatenate %191, %193, %195, %197 in 1 : vector<8x32xbf16>, vector<8x32xbf16>, vector<8x32xbf16>, vector<8x32xbf16> -> vector<8x128xbf16>
    %c0_154 = arith.constant 0 : index
    %c128_155 = arith.constant 128 : index
    %199 = vector.load %arg12[%c0_154, %c128_155] : memref<8x512xbf16, #tpu.memory_space<vmem>>, vector<8x128xbf16>
    tpu.vector_store %arg12[%c0_154, %c128_155], %198 {strides = array<i32>} : memref<8x512xbf16, #tpu.memory_space<vmem>>, vector<8x128xbf16>,
    %c16 = arith.constant 16 : index
    %c0_156 = arith.constant 0 : index
    %200 = tpu.strided_load %arg10[%c16, %c0_156] {strides = array<i32: 16, 1>} : memref<144x32xf32, #tpu.memory_space<vmem>>, vector<8x32xf32>
    %201 = arith.truncf %200 : vector<8x32xf32> to vector<8x32xbf16>
    %c17 = arith.constant 17 : index
    %c0_157 = arith.constant 0 : index
    %202 = tpu.strided_load %arg10[%c17, %c0_157] {strides = array<i32: 16, 1>} : memref<144x32xf32, #tpu.memory_space<vmem>>, vector<8x32xf32>
    %203 = arith.truncf %202 : vector<8x32xf32> to vector<8x32xbf16>
    %c18 = arith.constant 18 : index
    %c0_158 = arith.constant 0 : index
    %204 = tpu.strided_load %arg10[%c18, %c0_158] {strides = array<i32: 16, 1>} : memref<144x32xf32, #tpu.memory_space<vmem>>, vector<8x32xf32>
    %205 = arith.truncf %204 : vector<8x32xf32> to vector<8x32xbf16>
    %c19 = arith.constant 19 : index
    %c0_159 = arith.constant 0 : index
    %206 = tpu.strided_load %arg10[%c19, %c0_159] {strides = array<i32: 16, 1>} : memref<144x32xf32, #tpu.memory_space<vmem>>, vector<8x32xf32>
    %207 = arith.truncf %206 : vector<8x32xf32> to vector<8x32xbf16>
    %208 = tpu.concatenate %201, %203, %205, %207 in 1 : vector<8x32xbf16>, vector<8x32xbf16>, vector<8x32xbf16>, vector<8x32xbf16> -> vector<8x128xbf16>
    %c0_160 = arith.constant 0 : index
    %c256_161 = arith.constant 256 : index
    %209 = vector.load %arg12[%c0_160, %c256_161] : memref<8x512xbf16, #tpu.memory_space<vmem>>, vector<8x128xbf16>
    tpu.vector_store %arg12[%c0_160, %c256_161], %208 {strides = array<i32>} : memref<8x512xbf16, #tpu.memory_space<vmem>>, vector<8x128xbf16>,
    %c20 = arith.constant 20 : index
    %c0_162 = arith.constant 0 : index
    %210 = tpu.strided_load %arg10[%c20, %c0_162] {strides = array<i32: 16, 1>} : memref<144x32xf32, #tpu.memory_space<vmem>>, vector<8x32xf32>
    %211 = arith.truncf %210 : vector<8x32xf32> to vector<8x32xbf16>
    %c21 = arith.constant 21 : index
    %c0_163 = arith.constant 0 : index
    %212 = tpu.strided_load %arg10[%c21, %c0_163] {strides = array<i32: 16, 1>} : memref<144x32xf32, #tpu.memory_space<vmem>>, vector<8x32xf32>
    %213 = arith.truncf %212 : vector<8x32xf32> to vector<8x32xbf16>
    %c22 = arith.constant 22 : index
    %c0_164 = arith.constant 0 : index
    %214 = tpu.strided_load %arg10[%c22, %c0_164] {strides = array<i32: 16, 1>} : memref<144x32xf32, #tpu.memory_space<vmem>>, vector<8x32xf32>
    %215 = arith.truncf %214 : vector<8x32xf32> to vector<8x32xbf16>
    %c23 = arith.constant 23 : index
    %c0_165 = arith.constant 0 : index
    %216 = tpu.strided_load %arg10[%c23, %c0_165] {strides = array<i32: 16, 1>} : memref<144x32xf32, #tpu.memory_space<vmem>>, vector<8x32xf32>
    %217 = arith.truncf %216 : vector<8x32xf32> to vector<8x32xbf16>
    %218 = tpu.concatenate %211, %213, %215, %217 in 1 : vector<8x32xbf16>, vector<8x32xbf16>, vector<8x32xbf16>, vector<8x32xbf16> -> vector<8x128xbf16>
    %c0_166 = arith.constant 0 : index
    %c384 = arith.constant 384 : index
    %219 = vector.load %arg12[%c0_166, %c384] : memref<8x512xbf16, #tpu.memory_space<vmem>>, vector<8x128xbf16>
    tpu.vector_store %arg12[%c0_166, %c384], %218 {strides = array<i32>} : memref<8x512xbf16, #tpu.memory_space<vmem>>, vector<8x128xbf16>,
    %c0_167 = arith.constant 0 : index
    %c0_168 = arith.constant 0 : index
    %220 = vector.load %arg12[%c0_167, %c0_168] : memref<8x512xbf16, #tpu.memory_space<vmem>>, vector<8x512xbf16>
    %c0_169 = arith.constant 0 : index
    %c0_170 = arith.constant 0 : index
    %221 = vector.load %arg7[%c0_169, %c0_170] : memref<512x128xbf16, #tpu.memory_space<vmem>>, vector<512x128xbf16>
    %cst_171 = arith.constant dense<0.000000e+00> : vector<8x128xf32>
    %222 = tpu.matmul %220, %221, %cst_171 {dimension_numbers = #tpu.dot_dimension_numbers<[1], [0], [0], [1], [0, 0, 1, 1], [], []>} : vector<8x512xbf16>, vector<512x128xbf16>, vector<8x128xf32> -> vector<8x128xf32>
    %c0_172 = arith.constant 0 : index
    %c0_173 = arith.constant 0 : index
    %223 = vector.load %arg8[%c0_172, %c0_173] : memref<1x128xf32, #tpu.memory_space<vmem>>, vector<1x128xf32>
    %224 = vector.broadcast %223 : vector<1x128xf32> to vector<8x128xf32>
    %225 = arith.addf %222, %224 : vector<8x128xf32>
    %c0_174 = arith.constant 0 : index
    %c0_175 = arith.constant 0 : index
    %226 = vector.load %arg9[%c0_174, %c0_175] : memref<8x128xf32, #tpu.memory_space<vmem>>, vector<8x128xf32>
    tpu.vector_store %arg9[%c0_174, %c0_175], %225 {strides = array<i32>} : memref<8x128xf32, #tpu.memory_space<vmem>>, vector<8x128xf32>,
    return
  }
  func.func @transform_0(%arg0: i32) -> (i32, i32) {
    %c0_i32 = arith.constant 0 : i32
    %c0_i32_0 = arith.constant 0 : i32
    %c0_i32_1 = arith.constant 0 : i32
    return %c0_i32, %c0_i32_0 : i32, i32
  }
  func.func @transform_1(%arg0: i32) -> (i32, i32, i32) {
    %c0_i32 = arith.constant 0 : i32
    %c0_i32_0 = arith.constant 0 : i32
    %c0_i32_1 = arith.constant 0 : i32
    %c0_i32_2 = arith.constant 0 : i32
    return %c0_i32, %c0_i32_0, %c0_i32_1 : i32, i32, i32
  }
  func.func @transform_2(%arg0: i32) -> (i32, i32, i32) {
    %c0_i32 = arith.constant 0 : i32
    %c0_i32_0 = arith.constant 0 : i32
    %c0_i32_1 = arith.constant 0 : i32
    %c0_i32_2 = arith.constant 0 : i32
    return %c0_i32, %c0_i32_0, %c0_i32_1 : i32, i32, i32
  }
  func.func @transform_3(%arg0: i32) -> (i32, i32, i32) {
    %c0_i32 = arith.constant 0 : i32
    %c0_i32_0 = arith.constant 0 : i32
    %c0_i32_1 = arith.constant 0 : i32
    %c0_i32_2 = arith.constant 0 : i32
    return %c0_i32, %c0_i32_0, %c0_i32_1 : i32, i32, i32
  }
  func.func @transform_4(%arg0: i32) -> (i32, i32, i32) {
    %c0_i32 = arith.constant 0 : i32
    %c0_i32_0 = arith.constant 0 : i32
    %c0_i32_1 = arith.constant 0 : i32
    %c0_i32_2 = arith.constant 0 : i32
    return %c0_i32, %c0_i32_0, %c0_i32_1 : i32, i32, i32
  }
  func.func @transform_5(%arg0: i32) -> (i32, i32, i32) {
    %c0_i32 = arith.constant 0 : i32
    %c0_i32_0 = arith.constant 0 : i32
    %c0_i32_1 = arith.constant 0 : i32
    %c0_i32_2 = arith.constant 0 : i32
    return %c0_i32, %c0_i32_0, %c0_i32_1 : i32, i32, i32
  }
  func.func @transform_6(%arg0: i32) -> (i32, i32) {
    %c0_i32 = arith.constant 0 : i32
    %c0_i32_0 = arith.constant 0 : i32
    %c0_i32_1 = arith.constant 0 : i32
    return %c0_i32, %c0_i32_0 : i32, i32
  }
  func.func @transform_7(%arg0: i32) -> (i32, i32) {
    %c0_i32 = arith.constant 0 : i32
    %c0_i32_0 = arith.constant 0 : i32
    %c0_i32_1 = arith.constant 0 : i32
    return %c0_i32, %c0_i32_0 : i32, i32
  }
  func.func @transform_8(%arg0: i32) -> (i32, i32) {
    %c0_i32 = arith.constant 0 : i32
    %c0_i32_0 = arith.constant 0 : i32
    %c0_i32_1 = arith.constant 0 : i32
    return %c0_i32, %c0_i32_0 : i32, i32
  }
}

</mosaic_0001>

<llo_original>
// kernel: normal_actor_critic_forward.1
$region0: #{normal_actor_critic_forward.1}
  #allocation0 [shape = 'u32[]', space=smem, size = 0x4, offset = 0x4, fixed_abs, tag = 'smem constant byte address 0x4 - core index']
  #allocation1 [shape = 'u32[144,128]{1,0:T(1,128)}', space=vmem, size = 0x12000, scoped, tag = 'internal scratch']
  #allocation2 [shape = 'f32[144,32]{1,0:T(8,128)}', space=vmem, size = 0x12000, scoped, tag = 'scratch operand']
  #allocation3 [shape = 'bf16[128,384]{1,0:T(8,128)(2,1)}', space=vmem, size = 0x18000, scoped, tag = 'scratch operand']
  #allocation4 [shape = 'bf16[8,512]{1,0:T(8,128)(2,1)}', space=vmem, size = 0x2000, scoped, tag = 'scratch operand']
  %s0 = inlined_call_operand.vmem [shape: f32[144,32], index: 0, kind: input, shape index: {}]
  %s1 = inlined_call_operand.vmem [shape: f32[9,128,32], index: 1, kind: input, shape index: {}]
  %s2 = inlined_call_operand.vmem [shape: bf16[2,384,32], index: 2, kind: input, shape index: {}]
  %s3 = inlined_call_operand.vmem [shape: f32[2,1,32], index: 3, kind: input, shape index: {}]
  %s4 = inlined_call_operand.vmem [shape: f32[2,1,32], index: 4, kind: input, shape index: {}]
  %s5 = inlined_call_operand.vmem [shape: f32[2,1,32], index: 5, kind: input, shape index: {}]
  %s6 = inlined_call_operand.vmem [shape: bf16[512,128], index: 6, kind: input, shape index: {}]
  %s7 = inlined_call_operand.vmem [shape: f32[1,128], index: 7, kind: input, shape index: {}]
  %s8 = inlined_call_operand.vmem [shape: f32[8,128], index: 8, kind: output, shape index: {}]
  %s9 = sld [smem:[#allocation0]]
  $region42: #{normal_actor_critic_forward.1} parent=0
    _
  %s11 = ssub.s32 1, %s9
  %s12 = scalar_select 0, %s11, %s9
  // Predicated region
  $region2: #{normal_actor_critic_forward.1} parent=0 // pred_check
    _
  $region3: #{normal_actor_critic_forward.1} parent=0 // pred_check_branch
    %14 = sbr.rel (0) target = $region5
  $region4: #{normal_actor_critic_forward.1} parent=0 // pred_region
    _
  $region5: #{normal_actor_critic_forward.1} parent=0 // pred_fallthru
    _
  // Predicated region
  $region6: #{normal_actor_critic_forward.1} parent=0 // pred_check
    _
  $region7: #{normal_actor_critic_forward.1} parent=0 // pred_check_branch
    %16 = sbr.rel (0) target = $region9
  $region8: #{normal_actor_critic_forward.1} parent=0 // pred_region
    _
  $region9: #{normal_actor_critic_forward.1} parent=0 // pred_fallthru
    _
  // Predicated region
  $region10: #{normal_actor_critic_forward.1} parent=0 // pred_check
    _
  $region11: #{normal_actor_critic_forward.1} parent=0 // pred_check_branch
    %18 = sbr.rel (0) target = $region13
  $region12: #{normal_actor_critic_forward.1} parent=0 // pred_region
    _
  $region13: #{normal_actor_critic_forward.1} parent=0 // pred_fallthru
    _
  // Predicated region
  $region14: #{normal_actor_critic_forward.1} parent=0 // pred_check
    _
  $region15: #{normal_actor_critic_forward.1} parent=0 // pred_check_branch
    %20 = sbr.rel (0) target = $region17
  $region16: #{normal_actor_critic_forward.1} parent=0 // pred_region
    _
  $region17: #{normal_actor_critic_forward.1} parent=0 // pred_fallthru
    _
  // Predicated region
  $region18: #{normal_actor_critic_forward.1} parent=0 // pred_check
    _
  $region19: #{normal_actor_critic_forward.1} parent=0 // pred_check_branch
    %22 = sbr.rel (0) target = $region21
  $region20: #{normal_actor_critic_forward.1} parent=0 // pred_region
    _
  $region21: #{normal_actor_critic_forward.1} parent=0 // pred_fallthru
    _
  // Predicated region
  $region22: #{normal_actor_critic_forward.1} parent=0 // pred_check
    _
  $region23: #{normal_actor_critic_forward.1} parent=0 // pred_check_branch
    %24 = sbr.rel (0) target = $region25
  $region24: #{normal_actor_critic_forward.1} parent=0 // pred_region
    _
  $region25: #{normal_actor_critic_forward.1} parent=0 // pred_fallthru
    _
  // Predicated region
  $region26: #{normal_actor_critic_forward.1} parent=0 // pred_check
    _
  $region27: #{normal_actor_critic_forward.1} parent=0 // pred_check_branch
    %26 = sbr.rel (0) target = $region29
  $region28: #{normal_actor_critic_forward.1} parent=0 // pred_region
    _
  $region29: #{normal_actor_critic_forward.1} parent=0 // pred_fallthru
    _
  // Predicated region
  $region30: #{normal_actor_critic_forward.1} parent=0 // pred_check
    _
  $region31: #{normal_actor_critic_forward.1} parent=0 // pred_check_branch
    %28 = sbr.rel (0) target = $region33
  $region32: #{normal_actor_critic_forward.1} parent=0 // pred_region
    _
  $region33: #{normal_actor_critic_forward.1} parent=0 // pred_fallthru
    _
  %vm30 = vcmask 261120
  %31 = vst.msk [vmem:[#allocation2] sm:$0xff] %vm30, 0.0
  %32 = vst.msk [vmem:[#allocation2 + $0x88] sm:$0xff] %vm30, 0.0
  %v33 = vld [vmem:[%s0 + $0x3] sm:$0xff]
  %v34 = vld [vmem:[%s0 + $0xb] sm:$0xff]
  %v35 = vld [vmem:[%s0 + $0x13] sm:$0xff]
  %v36 = vld [vmem:[%s0 + $0x1b] sm:$0xff]
  %v37 = vld [vmem:[%s0 + $0x23] sm:$0xff]
  %v38 = vld [vmem:[%s0 + $0x2b] sm:$0xff]
  %v39 = vld [vmem:[%s0 + $0x33] sm:$0xff]
  %v40 = vld [vmem:[%s0 + $0x3b] sm:$0xff]
  %v41 = vld [vmem:[%s0 + $0x43] sm:$0xff]
  %v42 = vld [vmem:[%s0 + $0x4b] sm:$0xff]
  %v43 = vld [vmem:[%s0 + $0x53] sm:$0xff]
  %v44 = vld [vmem:[%s0 + $0x5b] sm:$0xff]
  %v45 = vld [vmem:[%s0 + $0x63] sm:$0xff]
  %v46 = vld [vmem:[%s0 + $0x6b] sm:$0xff]
  %v47 = vld [vmem:[%s0 + $0x73] sm:$0xff]
  %v48 = vld [vmem:[%s0 + $0x7b] sm:$0xff]
  %v49 = vld [vmem:[%s1] sm:$0xff]
  %v50 = vld [vmem:[%s1 + $0x8] sm:$0xff]
  %v51 = vld [vmem:[%s1 + $0x10] sm:$0xff]
  %v52 = vld [vmem:[%s1 + $0x18] sm:$0xff]
  %v53 = vld [vmem:[%s1 + $0x20] sm:$0xff]
  %v54 = vld [vmem:[%s1 + $0x28] sm:$0xff]
  %v55 = vld [vmem:[%s1 + $0x30] sm:$0xff]
  %v56 = vld [vmem:[%s1 + $0x38] sm:$0xff]
  %v57 = vld [vmem:[%s1 + $0x40] sm:$0xff]
  %v58 = vld [vmem:[%s1 + $0x48] sm:$0xff]
  %v59 = vld [vmem:[%s1 + $0x50] sm:$0xff]
  %v60 = vld [vmem:[%s1 + $0x58] sm:$0xff]
  %v61 = vld [vmem:[%s1 + $0x60] sm:$0xff]
  %v62 = vld [vmem:[%s1 + $0x68] sm:$0xff]
  %v63 = vld [vmem:[%s1 + $0x70] sm:$0xff]
  %v64 = vld [vmem:[%s1 + $0x78] sm:$0xff]
  %v65 = vmul.f32 %v33, %v49
  %v66 = vmul.f32 %v34, %v50
  %v67 = vmul.f32 %v35, %v51
  %v68 = vmul.f32 %v36, %v52
  %v69 = vmul.f32 %v37, %v53
  %v70 = vmul.f32 %v38, %v54
  %v71 = vmul.f32 %v39, %v55
  %v72 = vmul.f32 %v40, %v56
  %v73 = vmul.f32 %v41, %v57
  %v74 = vmul.f32 %v42, %v58
  %v75 = vmul.f32 %v43, %v59
  %v76 = vmul.f32 %v44, %v60
  %v77 = vmul.f32 %v45, %v61
  %v78 = vmul.f32 %v46, %v62
  %v79 = vmul.f32 %v47, %v63
  %v80 = vmul.f32 %v48, %v64
  %v81 = vpack.c.bf16 %v66, %v65
  %v82 = vpack.c.bf16 %v68, %v67
  %v83 = vpack.c.bf16 %v70, %v69
  %v84 = vpack.c.bf16 %v72, %v71
  %v85 = vpack.c.bf16 %v74, %v73
  %v86 = vpack.c.bf16 %v76, %v75
  %v87 = vpack.c.bf16 %v78, %v77
  %v88 = vpack.c.bf16 %v80, %v79
  %v89 = vld [vmem:[%s0 + $0x4] sm:$0xff]
  %v90 = vld [vmem:[%s0 + $0xc] sm:$0xff]
  %v91 = vld [vmem:[%s0 + $0x14] sm:$0xff]
  %v92 = vld [vmem:[%s0 + $0x1c] sm:$0xff]
  %v93 = vld [vmem:[%s0 + $0x24] sm:$0xff]
  %v94 = vld [vmem:[%s0 + $0x2c] sm:$0xff]
  %v95 = vld [vmem:[%s0 + $0x34] sm:$0xff]
  %v96 = vld [vmem:[%s0 + $0x3c] sm:$0xff]
  %v97 = vld [vmem:[%s0 + $0x44] sm:$0xff]
  %v98 = vld [vmem:[%s0 + $0x4c] sm:$0xff]
  %v99 = vld [vmem:[%s0 + $0x54] sm:$0xff]
  %v100 = vld [vmem:[%s0 + $0x5c] sm:$0xff]
  %v101 = vld [vmem:[%s0 + $0x64] sm:$0xff]
  %v102 = vld [vmem:[%s0 + $0x6c] sm:$0xff]
  %v103 = vld [vmem:[%s0 + $0x74] sm:$0xff]
  %v104 = vld [vmem:[%s0 + $0x7c] sm:$0xff]
  %s105 = scalar_lea.vmem %s1, 128
  %v106 = vld [vmem:[%s105] sm:$0xff]
  %v107 = vld [vmem:[%s105 + $0x8] sm:$0xff]
  %v108 = vld [vmem:[%s105 + $0x10] sm:$0xff]
  %v109 = vld [vmem:[%s105 + $0x18] sm:$0xff]
  %v110 = vld [vmem:[%s105 + $0x20] sm:$0xff]
  %v111 = vld [vmem:[%s105 + $0x28] sm:$0xff]
  %v112 = vld [vmem:[%s105 + $0x30] sm:$0xff]
  %v113 = vld [vmem:[%s105 + $0x38] sm:$0xff]
  %v114 = vld [vmem:[%s105 + $0x40] sm:$0xff]
  %v115 = vld [vmem:[%s105 + $0x48] sm:$0xff]
  %v116 = vld [vmem:[%s105 + $0x50] sm:$0xff]
  %v117 = vld [vmem:[%s105 + $0x58] sm:$0xff]
  %v118 = vld [vmem:[%s105 + $0x60] sm:$0xff]
  %v119 = vld [vmem:[%s105 + $0x68] sm:$0xff]
  %v120 = vld [vmem:[%s105 + $0x70] sm:$0xff]
  %v121 = vld [vmem:[%s105 + $0x78] sm:$0xff]
  %v122 = vmul.f32 %v89, %v106
  %v123 = vmul.f32 %v90, %v107
  %v124 = vmul.f32 %v91, %v108
  %v125 = vmul.f32 %v92, %v109
  %v126 = vmul.f32 %v93, %v110
  %v127 = vmul.f32 %v94, %v111
  %v128 = vmul.f32 %v95, %v112
  %v129 = vmul.f32 %v96, %v113
  %v130 = vmul.f32 %v97, %v114
  %v131 = vmul.f32 %v98, %v115
  %v132 = vmul.f32 %v99, %v116
  %v133 = vmul.f32 %v100, %v117
  %v134 = vmul.f32 %v101, %v118
  %v135 = vmul.f32 %v102, %v119
  %v136 = vmul.f32 %v103, %v120
  %v137 = vmul.f32 %v104, %v121
  %v138 = vpack.c.bf16 %v123, %v122
  %v139 = vpack.c.bf16 %v125, %v124
  %v140 = vpack.c.bf16 %v127, %v126
  %v141 = vpack.c.bf16 %v129, %v128
  %v142 = vpack.c.bf16 %v131, %v130
  %v143 = vpack.c.bf16 %v133, %v132
  %v144 = vpack.c.bf16 %v135, %v134
  %v145 = vpack.c.bf16 %v137, %v136
  %v146 = vld [vmem:[%s0 + $0x5] sm:$0xff]
  %v147 = vld [vmem:[%s0 + $0xd] sm:$0xff]
  %v148 = vld [vmem:[%s0 + $0x15] sm:$0xff]
  %v149 = vld [vmem:[%s0 + $0x1d] sm:$0xff]
  %v150 = vld [vmem:[%s0 + $0x25] sm:$0xff]
  %v151 = vld [vmem:[%s0 + $0x2d] sm:$0xff]
  %v152 = vld [vmem:[%s0 + $0x35] sm:$0xff]
  %v153 = vld [vmem:[%s0 + $0x3d] sm:$0xff]
  %v154 = vld [vmem:[%s0 + $0x45] sm:$0xff]
  %v155 = vld [vmem:[%s0 + $0x4d] sm:$0xff]
  %v156 = vld [vmem:[%s0 + $0x55] sm:$0xff]
  %v157 = vld [vmem:[%s0 + $0x5d] sm:$0xff]
  %v158 = vld [vmem:[%s0 + $0x65] sm:$0xff]
  %v159 = vld [vmem:[%s0 + $0x6d] sm:$0xff]
  %v160 = vld [vmem:[%s0 + $0x75] sm:$0xff]
  %v161 = vld [vmem:[%s0 + $0x7d] sm:$0xff]
  %s162 = scalar_lea.vmem %s1, 256
  %v163 = vld [vmem:[%s162] sm:$0xff]
  %v164 = vld [vmem:[%s162 + $0x8] sm:$0xff]
  %v165 = vld [vmem:[%s162 + $0x10] sm:$0xff]
  %v166 = vld [vmem:[%s162 + $0x18] sm:$0xff]
  %v167 = vld [vmem:[%s162 + $0x20] sm:$0xff]
  %v168 = vld [vmem:[%s162 + $0x28] sm:$0xff]
  %v169 = vld [vmem:[%s162 + $0x30] sm:$0xff]
  %v170 = vld [vmem:[%s162 + $0x38] sm:$0xff]
  %v171 = vld [vmem:[%s162 + $0x40] sm:$0xff]
  %v172 = vld [vmem:[%s162 + $0x48] sm:$0xff]
  %v173 = vld [vmem:[%s162 + $0x50] sm:$0xff]
  %v174 = vld [vmem:[%s162 + $0x58] sm:$0xff]
  %v175 = vld [vmem:[%s162 + $0x60] sm:$0xff]
  %v176 = vld [vmem:[%s162 + $0x68] sm:$0xff]
  %v177 = vld [vmem:[%s162 + $0x70] sm:$0xff]
  %v178 = vld [vmem:[%s162 + $0x78] sm:$0xff]
  %v179 = vmul.f32 %v146, %v163
  %v180 = vmul.f32 %v147, %v164
  %v181 = vmul.f32 %v148, %v165
  %v182 = vmul.f32 %v149, %v166
  %v183 = vmul.f32 %v150, %v167
  %v184 = vmul.f32 %v151, %v168
  %v185 = vmul.f32 %v152, %v169
  %v186 = vmul.f32 %v153, %v170
  %v187 = vmul.f32 %v154, %v171
  %v188 = vmul.f32 %v155, %v172
  %v189 = vmul.f32 %v156, %v173
  %v190 = vmul.f32 %v157, %v174
  %v191 = vmul.f32 %v158, %v175
  %v192 = vmul.f32 %v159, %v176
  %v193 = vmul.f32 %v160, %v177
  %v194 = vmul.f32 %v161, %v178
  %v195 = vpack.c.bf16 %v180, %v179
  %v196 = vpack.c.bf16 %v182, %v181
  %v197 = vpack.c.bf16 %v184, %v183
  %v198 = vpack.c.bf16 %v186, %v185
  %v199 = vpack.c.bf16 %v188, %v187
  %v200 = vpack.c.bf16 %v190, %v189
  %v201 = vpack.c.bf16 %v192, %v191
  %v202 = vpack.c.bf16 %v194, %v193
  %v203 = vld [vmem:[%s0 + $0x7] sm:$0xff]
  %v204 = vld [vmem:[%s0 + $0xf] sm:$0xff]
  %v205 = vld [vmem:[%s0 + $0x17] sm:$0xff]
  %v206 = vld [vmem:[%s0 + $0x1f] sm:$0xff]
  %v207 = vld [vmem:[%s0 + $0x27] sm:$0xff]
  %v208 = vld [vmem:[%s0 + $0x2f] sm:$0xff]
  %v209 = vld [vmem:[%s0 + $0x37] sm:$0xff]
  %v210 = vld [vmem:[%s0 + $0x3f] sm:$0xff]
  %v211 = vld [vmem:[%s0 + $0x47] sm:$0xff]
  %v212 = vld [vmem:[%s0 + $0x4f] sm:$0xff]
  %v213 = vld [vmem:[%s0 + $0x57] sm:$0xff]
  %v214 = vld [vmem:[%s0 + $0x5f] sm:$0xff]
  %v215 = vld [vmem:[%s0 + $0x67] sm:$0xff]
  %v216 = vld [vmem:[%s0 + $0x6f] sm:$0xff]
  %v217 = vld [vmem:[%s0 + $0x77] sm:$0xff]
  %v218 = vld [vmem:[%s0 + $0x7f] sm:$0xff]
  %s219 = scalar_lea.vmem %s1, 384
  %v220 = vld [vmem:[%s219] sm:$0xff]
  %v221 = vld [vmem:[%s219 + $0x8] sm:$0xff]
  %v222 = vld [vmem:[%s219 + $0x10] sm:$0xff]
  %v223 = vld [vmem:[%s219 + $0x18] sm:$0xff]
  %v224 = vld [vmem:[%s219 + $0x20] sm:$0xff]
  %v225 = vld [vmem:[%s219 + $0x28] sm:$0xff]
  %v226 = vld [vmem:[%s219 + $0x30] sm:$0xff]
  %v227 = vld [vmem:[%s219 + $0x38] sm:$0xff]
  %v228 = vld [vmem:[%s219 + $0x40] sm:$0xff]
  %v229 = vld [vmem:[%s219 + $0x48] sm:$0xff]
  %v230 = vld [vmem:[%s219 + $0x50] sm:$0xff]
  %v231 = vld [vmem:[%s219 + $0x58] sm:$0xff]
  %v232 = vld [vmem:[%s219 + $0x60] sm:$0xff]
  %v233 = vld [vmem:[%s219 + $0x68] sm:$0xff]
  %v234 = vld [vmem:[%s219 + $0x70] sm:$0xff]
  %v235 = vld [vmem:[%s219 + $0x78] sm:$0xff]
  %v236 = vmul.f32 %v203, %v220
  %v237 = vmul.f32 %v204, %v221
  %v238 = vmul.f32 %v205, %v222
  %v239 = vmul.f32 %v206, %v223
  %v240 = vmul.f32 %v207, %v224
  %v241 = vmul.f32 %v208, %v225
  %v242 = vmul.f32 %v209, %v226
  %v243 = vmul.f32 %v210, %v227
  %v244 = vmul.f32 %v211, %v228
  %v245 = vmul.f32 %v212, %v229
  %v246 = vmul.f32 %v213, %v230
  %v247 = vmul.f32 %v214, %v231
  %v248 = vmul.f32 %v215, %v232
  %v249 = vmul.f32 %v216, %v233
  %v250 = vmul.f32 %v217, %v234
  %v251 = vmul.f32 %v218, %v235
  %v252 = vpack.c.bf16 %v237, %v236
  %v253 = vpack.c.bf16 %v239, %v238
  %v254 = vpack.c.bf16 %v241, %v240
  %v255 = vpack.c.bf16 %v243, %v242
  %v256 = vpack.c.bf16 %v245, %v244
  %v257 = vpack.c.bf16 %v247, %v246
  %v258 = vpack.c.bf16 %v249, %v248
  %v259 = vpack.c.bf16 %v251, %v250
  %268 = vrot.lane.b32.xlu0 %v138, 32
  %v269 = vpop.permute.xlu0 %268
  %270 = vrot.lane.b32.xlu0 %v139, 32
  %v271 = vpop.permute.xlu0 %270
  %272 = vrot.lane.b32.xlu0 %v140, 32
  %v273 = vpop.permute.xlu0 %272
  %274 = vrot.lane.b32.xlu0 %v141, 32
  %v275 = vpop.permute.xlu0 %274
  %276 = vrot.lane.b32.xlu0 %v142, 32
  %v277 = vpop.permute.xlu0 %276
  %278 = vrot.lane.b32.xlu0 %v143, 32
  %v279 = vpop.permute.xlu0 %278
  %280 = vrot.lane.b32.xlu0 %v144, 32
  %v281 = vpop.permute.xlu0 %280
  %282 = vrot.lane.b32.xlu0 %v145, 32
  %v283 = vpop.permute.xlu0 %282
  %292 = vrot.lane.b32.xlu0 %v195, 64
  %v293 = vpop.permute.xlu0 %292
  %294 = vrot.lane.b32.xlu0 %v196, 64
  %v295 = vpop.permute.xlu0 %294
  %296 = vrot.lane.b32.xlu0 %v197, 64
  %v297 = vpop.permute.xlu0 %296
  %298 = vrot.lane.b32.xlu0 %v198, 64
  %v299 = vpop.permute.xlu0 %298
  %300 = vrot.lane.b32.xlu0 %v199, 64
  %v301 = vpop.permute.xlu0 %300
  %302 = vrot.lane.b32.xlu0 %v200, 64
  %v303 = vpop.permute.xlu0 %302
  %304 = vrot.lane.b32.xlu0 %v201, 64
  %v305 = vpop.permute.xlu0 %304
  %306 = vrot.lane.b32.xlu0 %v202, 64
  %v307 = vpop.permute.xlu0 %306
  %316 = vrot.lane.b32.xlu0 %v252, 96
  %v317 = vpop.permute.xlu0 %316
  %318 = vrot.lane.b32.xlu0 %v253, 96
  %v319 = vpop.permute.xlu0 %318
  %320 = vrot.lane.b32.xlu0 %v254, 96
  %v321 = vpop.permute.xlu0 %320
  %322 = vrot.lane.b32.xlu0 %v255, 96
  %v323 = vpop.permute.xlu0 %322
  %324 = vrot.lane.b32.xlu0 %v256, 96
  %v325 = vpop.permute.xlu0 %324
  %326 = vrot.lane.b32.xlu0 %v257, 96
  %v327 = vpop.permute.xlu0 %326
  %328 = vrot.lane.b32.xlu0 %v258, 96
  %v329 = vpop.permute.xlu0 %328
  %330 = vrot.lane.b32.xlu0 %v259, 96
  %v331 = vpop.permute.xlu0 %330
  %v334 = vsel %vm30, %v81, %v269
  %v337 = vsel %vm30, %v82, %v271
  %v340 = vsel %vm30, %v83, %v273
  %v343 = vsel %vm30, %v84, %v275
  %v346 = vsel %vm30, %v85, %v277
  %v349 = vsel %vm30, %v86, %v279
  %v352 = vsel %vm30, %v87, %v281
  %v355 = vsel %vm30, %v88, %v283
  %vm356 = vcmask 523264
  %v358 = vsel %vm356, %v334, %v293
  %v360 = vsel %vm356, %v337, %v295
  %v362 = vsel %vm356, %v340, %v297
  %v364 = vsel %vm356, %v343, %v299
  %v366 = vsel %vm356, %v346, %v301
  %v368 = vsel %vm356, %v349, %v303
  %v370 = vsel %vm356, %v352, %v305
  %v372 = vsel %vm356, %v355, %v307
  %vm373 = vcmask 785408
  %v375 = vsel %vm373, %v358, %v317
  %v377 = vsel %vm373, %v360, %v319
  %v379 = vsel %vm373, %v362, %v321
  %v381 = vsel %vm373, %v364, %v323
  %v383 = vsel %vm373, %v366, %v325
  %v385 = vsel %vm373, %v368, %v327
  %v387 = vsel %vm373, %v370, %v329
  %v389 = vsel %vm373, %v372, %v331
  %v398 = vunpack.c.l.b16 %v375
  %v399 = vunpack.c.h.b16 %v375
  %v400 = vunpack.c.l.b16 %v377
  %v401 = vunpack.c.h.b16 %v377
  %v402 = vunpack.c.l.b16 %v379
  %v403 = vunpack.c.h.b16 %v379
  %v404 = vunpack.c.l.b16 %v381
  %v405 = vunpack.c.h.b16 %v381
  %v406 = vunpack.c.l.b16 %v383
  %v407 = vunpack.c.h.b16 %v383
  %v408 = vunpack.c.l.b16 %v385
  %v409 = vunpack.c.h.b16 %v385
  %v410 = vunpack.c.l.b16 %v387
  %v411 = vunpack.c.h.b16 %v387
  %v412 = vunpack.c.l.b16 %v389
  %v413 = vunpack.c.h.b16 %v389
  %v414 = vpack.c.b16 %v398, %v398
  %v415 = vpack.c.b16 %v399, %v399
  %v416 = vpack.c.b16 %v400, %v400
  %v417 = vpack.c.b16 %v401, %v401
  %v418 = vpack.c.b16 %v402, %v402
  %v419 = vpack.c.b16 %v403, %v403
  %v420 = vpack.c.b16 %v404, %v404
  %v421 = vpack.c.b16 %v405, %v405
  %v422 = vpack.c.b16 %v406, %v406
  %v423 = vpack.c.b16 %v407, %v407
  %v424 = vpack.c.b16 %v408, %v408
  %v425 = vpack.c.b16 %v409, %v409
  %v426 = vpack.c.b16 %v410, %v410
  %v427 = vpack.c.b16 %v411, %v411
  %v428 = vpack.c.b16 %v412, %v412
  %v429 = vpack.c.b16 %v413, %v413
  %446 = vst [vmem:[#allocation3] sm:$0xf] %v414
  %447 = vst [vmem:[#allocation3 + $0xc] sm:$0xf] %v415
  %448 = vst [vmem:[#allocation3 + $0x18] sm:$0xf] %v416
  %449 = vst [vmem:[#allocation3 + $0x24] sm:$0xf] %v417
  %450 = vst [vmem:[#allocation3 + $0x30] sm:$0xf] %v418
  %451 = vst [vmem:[#allocation3 + $0x3c] sm:$0xf] %v419
  %452 = vst [vmem:[#allocation3 + $0x48] sm:$0xf] %v420
  %453 = vst [vmem:[#allocation3 + $0x54] sm:$0xf] %v421
  %454 = vst [vmem:[#allocation3 + $0x60] sm:$0xf] %v422
  %455 = vst [vmem:[#allocation3 + $0x6c] sm:$0xf] %v423
  %456 = vst [vmem:[#allocation3 + $0x78] sm:$0xf] %v424
  %457 = vst [vmem:[#allocation3 + $0x84] sm:$0xf] %v425
  %458 = vst [vmem:[#allocation3 + $0x90] sm:$0xf] %v426
  %459 = vst [vmem:[#allocation3 + $0x9c] sm:$0xf] %v427
  %460 = vst [vmem:[#allocation3 + $0xa8] sm:$0xf] %v428
  %461 = vst [vmem:[#allocation3 + $0xb4] sm:$0xf] %v429
  %v462 = vld [vmem:[%s0 + $0x8] sm:$0xff]
  %v463 = vld [vmem:[%s0 + $0x10] sm:$0xff]
  %v464 = vld [vmem:[%s0 + $0x18] sm:$0xff]
  %v465 = vld [vmem:[%s0 + $0x20] sm:$0xff]
  %v466 = vld [vmem:[%s0 + $0x28] sm:$0xff]
  %v467 = vld [vmem:[%s0 + $0x30] sm:$0xff]
  %v468 = vld [vmem:[%s0 + $0x38] sm:$0xff]
  %v469 = vld [vmem:[%s0 + $0x40] sm:$0xff]
  %v470 = vld [vmem:[%s0 + $0x48] sm:$0xff]
  %v471 = vld [vmem:[%s0 + $0x50] sm:$0xff]
  %v472 = vld [vmem:[%s0 + $0x58] sm:$0xff]
  %v473 = vld [vmem:[%s0 + $0x60] sm:$0xff]
  %v474 = vld [vmem:[%s0 + $0x68] sm:$0xff]
  %v475 = vld [vmem:[%s0 + $0x70] sm:$0xff]
  %v476 = vld [vmem:[%s0 + $0x78] sm:$0xff]
  %v477 = vld [vmem:[%s0 + $0x80] sm:$0xff]
  %s478 = scalar_lea.vmem %s1, 512
  %v479 = vld [vmem:[%s478] sm:$0xff]
  %v480 = vld [vmem:[%s478 + $0x8] sm:$0xff]
  %v481 = vld [vmem:[%s478 + $0x10] sm:$0xff]
  %v482 = vld [vmem:[%s478 + $0x18] sm:$0xff]
  %v483 = vld [vmem:[%s478 + $0x20] sm:$0xff]
  %v484 = vld [vmem:[%s478 + $0x28] sm:$0xff]
  %v485 = vld [vmem:[%s478 + $0x30] sm:$0xff]
  %v486 = vld [vmem:[%s478 + $0x38] sm:$0xff]
  %v487 = vld [vmem:[%s478 + $0x40] sm:$0xff]
  %v488 = vld [vmem:[%s478 + $0x48] sm:$0xff]
  %v489 = vld [vmem:[%s478 + $0x50] sm:$0xff]
  %v490 = vld [vmem:[%s478 + $0x58] sm:$0xff]
  %v491 = vld [vmem:[%s478 + $0x60] sm:$0xff]
  %v492 = vld [vmem:[%s478 + $0x68] sm:$0xff]
  %v493 = vld [vmem:[%s478 + $0x70] sm:$0xff]
  %v494 = vld [vmem:[%s478 + $0x78] sm:$0xff]
  %v495 = vmul.f32 %v462, %v479
  %v496 = vmul.f32 %v463, %v480
  %v497 = vmul.f32 %v464, %v481
  %v498 = vmul.f32 %v465, %v482
  %v499 = vmul.f32 %v466, %v483
  %v500 = vmul.f32 %v467, %v484
  %v501 = vmul.f32 %v468, %v485
  %v502 = vmul.f32 %v469, %v486
  %v503 = vmul.f32 %v470, %v487
  %v504 = vmul.f32 %v471, %v488
  %v505 = vmul.f32 %v472, %v489
  %v506 = vmul.f32 %v473, %v490
  %v507 = vmul.f32 %v474, %v491
  %v508 = vmul.f32 %v475, %v492
  %v509 = vmul.f32 %v476, %v493
  %v510 = vmul.f32 %v477, %v494
  %v511 = vpack.c.bf16 %v496, %v495
  %v512 = vpack.c.bf16 %v498, %v497
  %v513 = vpack.c.bf16 %v500, %v499
  %v514 = vpack.c.bf16 %v502, %v501
  %v515 = vpack.c.bf16 %v504, %v503
  %v516 = vpack.c.bf16 %v506, %v505
  %v517 = vpack.c.bf16 %v508, %v507
  %v518 = vpack.c.bf16 %v510, %v509
  %v519 = vld [vmem:[%s0 + $0x9] sm:$0xff]
  %v520 = vld [vmem:[%s0 + $0x11] sm:$0xff]
  %v521 = vld [vmem:[%s0 + $0x19] sm:$0xff]
  %v522 = vld [vmem:[%s0 + $0x21] sm:$0xff]
  %v523 = vld [vmem:[%s0 + $0x29] sm:$0xff]
  %v524 = vld [vmem:[%s0 + $0x31] sm:$0xff]
  %v525 = vld [vmem:[%s0 + $0x39] sm:$0xff]
  %v526 = vld [vmem:[%s0 + $0x41] sm:$0xff]
  %v527 = vld [vmem:[%s0 + $0x49] sm:$0xff]
  %v528 = vld [vmem:[%s0 + $0x51] sm:$0xff]
  %v529 = vld [vmem:[%s0 + $0x59] sm:$0xff]
  %v530 = vld [vmem:[%s0 + $0x61] sm:$0xff]
  %v531 = vld [vmem:[%s0 + $0x69] sm:$0xff]
  %v532 = vld [vmem:[%s0 + $0x71] sm:$0xff]
  %v533 = vld [vmem:[%s0 + $0x79] sm:$0xff]
  %v534 = vld [vmem:[%s0 + $0x81] sm:$0xff]
  %s535 = scalar_lea.vmem %s1, 640
  %v536 = vld [vmem:[%s535] sm:$0xff]
  %v537 = vld [vmem:[%s535 + $0x8] sm:$0xff]
  %v538 = vld [vmem:[%s535 + $0x10] sm:$0xff]
  %v539 = vld [vmem:[%s535 + $0x18] sm:$0xff]
  %v540 = vld [vmem:[%s535 + $0x20] sm:$0xff]
  %v541 = vld [vmem:[%s535 + $0x28] sm:$0xff]
  %v542 = vld [vmem:[%s535 + $0x30] sm:$0xff]
  %v543 = vld [vmem:[%s535 + $0x38] sm:$0xff]
  %v544 = vld [vmem:[%s535 + $0x40] sm:$0xff]
  %v545 = vld [vmem:[%s535 + $0x48] sm:$0xff]
  %v546 = vld [vmem:[%s535 + $0x50] sm:$0xff]
  %v547 = vld [vmem:[%s535 + $0x58] sm:$0xff]
  %v548 = vld [vmem:[%s535 + $0x60] sm:$0xff]
  %v549 = vld [vmem:[%s535 + $0x68] sm:$0xff]
  %v550 = vld [vmem:[%s535 + $0x70] sm:$0xff]
  %v551 = vld [vmem:[%s535 + $0x78] sm:$0xff]
  %v552 = vmul.f32 %v519, %v536
  %v553 = vmul.f32 %v520, %v537
  %v554 = vmul.f32 %v521, %v538
  %v555 = vmul.f32 %v522, %v539
  %v556 = vmul.f32 %v523, %v540
  %v557 = vmul.f32 %v524, %v541
  %v558 = vmul.f32 %v525, %v542
  %v559 = vmul.f32 %v526, %v543
  %v560 = vmul.f32 %v527, %v544
  %v561 = vmul.f32 %v528, %v545
  %v562 = vmul.f32 %v529, %v546
  %v563 = vmul.f32 %v530, %v547
  %v564 = vmul.f32 %v531, %v548
  %v565 = vmul.f32 %v532, %v549
  %v566 = vmul.f32 %v533, %v550
  %v567 = vmul.f32 %v534, %v551
  %v568 = vpack.c.bf16 %v553, %v552
  %v569 = vpack.c.bf16 %v555, %v554
  %v570 = vpack.c.bf16 %v557, %v556
  %v571 = vpack.c.bf16 %v559, %v558
  %v572 = vpack.c.bf16 %v561, %v560
  %v573 = vpack.c.bf16 %v563, %v562
  %v574 = vpack.c.bf16 %v565, %v564
  %v575 = vpack.c.bf16 %v567, %v566
  %v576 = vld [vmem:[%s0 + $0xb] sm:$0xff]
  %v577 = vld [vmem:[%s0 + $0x13] sm:$0xff]
  %v578 = vld [vmem:[%s0 + $0x1b] sm:$0xff]
  %v579 = vld [vmem:[%s0 + $0x23] sm:$0xff]
  %v580 = vld [vmem:[%s0 + $0x2b] sm:$0xff]
  %v581 = vld [vmem:[%s0 + $0x33] sm:$0xff]
  %v582 = vld [vmem:[%s0 + $0x3b] sm:$0xff]
  %v583 = vld [vmem:[%s0 + $0x43] sm:$0xff]
  %v584 = vld [vmem:[%s0 + $0x4b] sm:$0xff]
  %v585 = vld [vmem:[%s0 + $0x53] sm:$0xff]
  %v586 = vld [vmem:[%s0 + $0x5b] sm:$0xff]
  %v587 = vld [vmem:[%s0 + $0x63] sm:$0xff]
  %v588 = vld [vmem:[%s0 + $0x6b] sm:$0xff]
  %v589 = vld [vmem:[%s0 + $0x73] sm:$0xff]
  %v590 = vld [vmem:[%s0 + $0x7b] sm:$0xff]
  %v591 = vld [vmem:[%s0 + $0x83] sm:$0xff]
  %s592 = scalar_lea.vmem %s1, 768
  %v593 = vld [vmem:[%s592] sm:$0xff]
  %v594 = vld [vmem:[%s592 + $0x8] sm:$0xff]
  %v595 = vld [vmem:[%s592 + $0x10] sm:$0xff]
  %v596 = vld [vmem:[%s592 + $0x18] sm:$0xff]
  %v597 = vld [vmem:[%s592 + $0x20] sm:$0xff]
  %v598 = vld [vmem:[%s592 + $0x28] sm:$0xff]
  %v599 = vld [vmem:[%s592 + $0x30] sm:$0xff]
  %v600 = vld [vmem:[%s592 + $0x38] sm:$0xff]
  %v601 = vld [vmem:[%s592 + $0x40] sm:$0xff]
  %v602 = vld [vmem:[%s592 + $0x48] sm:$0xff]
  %v603 = vld [vmem:[%s592 + $0x50] sm:$0xff]
  %v604 = vld [vmem:[%s592 + $0x58] sm:$0xff]
  %v605 = vld [vmem:[%s592 + $0x60] sm:$0xff]
  %v606 = vld [vmem:[%s592 + $0x68] sm:$0xff]
  %v607 = vld [vmem:[%s592 + $0x70] sm:$0xff]
  %v608 = vld [vmem:[%s592 + $0x78] sm:$0xff]
  %v609 = vmul.f32 %v576, %v593
  %v610 = vmul.f32 %v577, %v594
  %v611 = vmul.f32 %v578, %v595
  %v612 = vmul.f32 %v579, %v596
  %v613 = vmul.f32 %v580, %v597
  %v614 = vmul.f32 %v581, %v598
  %v615 = vmul.f32 %v582, %v599
  %v616 = vmul.f32 %v583, %v600
  %v617 = vmul.f32 %v584, %v601
  %v618 = vmul.f32 %v585, %v602
  %v619 = vmul.f32 %v586, %v603
  %v620 = vmul.f32 %v587, %v604
  %v621 = vmul.f32 %v588, %v605
  %v622 = vmul.f32 %v589, %v606
  %v623 = vmul.f32 %v590, %v607
  %v624 = vmul.f32 %v591, %v608
  %v625 = vpack.c.bf16 %v610, %v609
  %v626 = vpack.c.bf16 %v612, %v611
  %v627 = vpack.c.bf16 %v614, %v613
  %v628 = vpack.c.bf16 %v616, %v615
  %v629 = vpack.c.bf16 %v618, %v617
  %v630 = vpack.c.bf16 %v620, %v619
  %v631 = vpack.c.bf16 %v622, %v621
  %v632 = vpack.c.bf16 %v624, %v623
  %v633 = vld [vmem:[%s0 + $0xc] sm:$0xff]
  %v634 = vld [vmem:[%s0 + $0x14] sm:$0xff]
  %v635 = vld [vmem:[%s0 + $0x1c] sm:$0xff]
  %v636 = vld [vmem:[%s0 + $0x24] sm:$0xff]
  %v637 = vld [vmem:[%s0 + $0x2c] sm:$0xff]
  %v638 = vld [vmem:[%s0 + $0x34] sm:$0xff]
  %v639 = vld [vmem:[%s0 + $0x3c] sm:$0xff]
  %v640 = vld [vmem:[%s0 + $0x44] sm:$0xff]
  %v641 = vld [vmem:[%s0 + $0x4c] sm:$0xff]
  %v642 = vld [vmem:[%s0 + $0x54] sm:$0xff]
  %v643 = vld [vmem:[%s0 + $0x5c] sm:$0xff]
  %v644 = vld [vmem:[%s0 + $0x64] sm:$0xff]
  %v645 = vld [vmem:[%s0 + $0x6c] sm:$0xff]
  %v646 = vld [vmem:[%s0 + $0x74] sm:$0xff]
  %v647 = vld [vmem:[%s0 + $0x7c] sm:$0xff]
  %v648 = vld [vmem:[%s0 + $0x84] sm:$0xff]
  %s649 = scalar_lea.vmem %s1, 896
  %v650 = vld [vmem:[%s649] sm:$0xff]
  %v651 = vld [vmem:[%s649 + $0x8] sm:$0xff]
  %v652 = vld [vmem:[%s649 + $0x10] sm:$0xff]
  %v653 = vld [vmem:[%s649 + $0x18] sm:$0xff]
  %v654 = vld [vmem:[%s649 + $0x20] sm:$0xff]
  %v655 = vld [vmem:[%s649 + $0x28] sm:$0xff]
  %v656 = vld [vmem:[%s649 + $0x30] sm:$0xff]
  %v657 = vld [vmem:[%s649 + $0x38] sm:$0xff]
  %v658 = vld [vmem:[%s649 + $0x40] sm:$0xff]
  %v659 = vld [vmem:[%s649 + $0x48] sm:$0xff]
  %v660 = vld [vmem:[%s649 + $0x50] sm:$0xff]
  %v661 = vld [vmem:[%s649 + $0x58] sm:$0xff]
  %v662 = vld [vmem:[%s649 + $0x60] sm:$0xff]
  %v663 = vld [vmem:[%s649 + $0x68] sm:$0xff]
  %v664 = vld [vmem:[%s649 + $0x70] sm:$0xff]
  %v665 = vld [vmem:[%s649 + $0x78] sm:$0xff]
  %v666 = vmul.f32 %v633, %v650
  %v667 = vmul.f32 %v634, %v651
  %v668 = vmul.f32 %v635, %v652
  %v669 = vmul.f32 %v636, %v653
  %v670 = vmul.f32 %v637, %v654
  %v671 = vmul.f32 %v638, %v655
  %v672 = vmul.f32 %v639, %v656
  %v673 = vmul.f32 %v640, %v657
  %v674 = vmul.f32 %v641, %v658
  %v675 = vmul.f32 %v642, %v659
  %v676 = vmul.f32 %v643, %v660
  %v677 = vmul.f32 %v644, %v661
  %v678 = vmul.f32 %v645, %v662
  %v679 = vmul.f32 %v646, %v663
  %v680 = vmul.f32 %v647, %v664
  %v681 = vmul.f32 %v648, %v665
  %v682 = vpack.c.bf16 %v667, %v666
  %v683 = vpack.c.bf16 %v669, %v668
  %v684 = vpack.c.bf16 %v671, %v670
  %v685 = vpack.c.bf16 %v673, %v672
  %v686 = vpack.c.bf16 %v675, %v674
  %v687 = vpack.c.bf16 %v677, %v676
  %v688 = vpack.c.bf16 %v679, %v678
  %v689 = vpack.c.bf16 %v681, %v680
  %698 = vrot.lane.b32.xlu0 %v568, 32
  %v699 = vpop.permute.xlu0 %698
  %700 = vrot.lane.b32.xlu0 %v569, 32
  %v701 = vpop.permute.xlu0 %700
  %702 = vrot.lane.b32.xlu0 %v570, 32
  %v703 = vpop.permute.xlu0 %702
  %704 = vrot.lane.b32.xlu0 %v571, 32
  %v705 = vpop.permute.xlu0 %704
  %706 = vrot.lane.b32.xlu0 %v572, 32
  %v707 = vpop.permute.xlu0 %706
  %708 = vrot.lane.b32.xlu0 %v573, 32
  %v709 = vpop.permute.xlu0 %708
  %710 = vrot.lane.b32.xlu0 %v574, 32
  %v711 = vpop.permute.xlu0 %710
  %712 = vrot.lane.b32.xlu0 %v575, 32
  %v713 = vpop.permute.xlu0 %712
  %722 = vrot.lane.b32.xlu0 %v625, 64
  %v723 = vpop.permute.xlu0 %722
  %724 = vrot.lane.b32.xlu0 %v626, 64
  %v725 = vpop.permute.xlu0 %724
  %726 = vrot.lane.b32.xlu0 %v627, 64
  %v727 = vpop.permute.xlu0 %726
  %728 = vrot.lane.b32.xlu0 %v628, 64
  %v729 = vpop.permute.xlu0 %728
  %730 = vrot.lane.b32.xlu0 %v629, 64
  %v731 = vpop.permute.xlu0 %730
  %732 = vrot.lane.b32.xlu0 %v630, 64
  %v733 = vpop.permute.xlu0 %732
  %734 = vrot.lane.b32.xlu0 %v631, 64
  %v735 = vpop.permute.xlu0 %734
  %736 = vrot.lane.b32.xlu0 %v632, 64
  %v737 = vpop.permute.xlu0 %736
  %746 = vrot.lane.b32.xlu0 %v682, 96
  %v747 = vpop.permute.xlu0 %746
  %748 = vrot.lane.b32.xlu0 %v683, 96
  %v749 = vpop.permute.xlu0 %748
  %750 = vrot.lane.b32.xlu0 %v684, 96
  %v751 = vpop.permute.xlu0 %750
  %752 = vrot.lane.b32.xlu0 %v685, 96
  %v753 = vpop.permute.xlu0 %752
  %754 = vrot.lane.b32.xlu0 %v686, 96
  %v755 = vpop.permute.xlu0 %754
  %756 = vrot.lane.b32.xlu0 %v687, 96
  %v757 = vpop.permute.xlu0 %756
  %758 = vrot.lane.b32.xlu0 %v688, 96
  %v759 = vpop.permute.xlu0 %758
  %760 = vrot.lane.b32.xlu0 %v689, 96
  %v761 = vpop.permute.xlu0 %760
  %v764 = vsel %vm30, %v511, %v699
  %v767 = vsel %vm30, %v512, %v701
  %v770 = vsel %vm30, %v513, %v703
  %v773 = vsel %vm30, %v514, %v705
  %v776 = vsel %vm30, %v515, %v707
  %v779 = vsel %vm30, %v516, %v709
  %v782 = vsel %vm30, %v517, %v711
  %v785 = vsel %vm30, %v518, %v713
  %v787 = vsel %vm356, %v764, %v723
  %v789 = vsel %vm356, %v767, %v725
  %v791 = vsel %vm356, %v770, %v727
  %v793 = vsel %vm356, %v773, %v729
  %v795 = vsel %vm356, %v776, %v731
  %v797 = vsel %vm356, %v779, %v733
  %v799 = vsel %vm356, %v782, %v735
  %v801 = vsel %vm356, %v785, %v737
  %v803 = vsel %vm373, %v787, %v747
  %v805 = vsel %vm373, %v789, %v749
  %v807 = vsel %vm373, %v791, %v751
  %v809 = vsel %vm373, %v793, %v753
  %v811 = vsel %vm373, %v795, %v755
  %v813 = vsel %vm373, %v797, %v757
  %v815 = vsel %vm373, %v799, %v759
  %v817 = vsel %vm373, %v801, %v761
  %v826 = vunpack.c.l.b16 %v803
  %v827 = vunpack.c.h.b16 %v803
  %v828 = vunpack.c.l.b16 %v805
  %v829 = vunpack.c.h.b16 %v805
  %v830 = vunpack.c.l.b16 %v807
  %v831 = vunpack.c.h.b16 %v807
  %v832 = vunpack.c.l.b16 %v809
  %v833 = vunpack.c.h.b16 %v809
  %v834 = vunpack.c.l.b16 %v811
  %v835 = vunpack.c.h.b16 %v811
  %v836 = vunpack.c.l.b16 %v813
  %v837 = vunpack.c.h.b16 %v813
  %v838 = vunpack.c.l.b16 %v815
  %v839 = vunpack.c.h.b16 %v815
  %v840 = vunpack.c.l.b16 %v817
  %v841 = vunpack.c.h.b16 %v817
  %v842 = vpack.c.b16 %v826, %v826
  %v843 = vpack.c.b16 %v827, %v827
  %v844 = vpack.c.b16 %v828, %v828
  %v845 = vpack.c.b16 %v829, %v829
  %v846 = vpack.c.b16 %v830, %v830
  %v847 = vpack.c.b16 %v831, %v831
  %v848 = vpack.c.b16 %v832, %v832
  %v849 = vpack.c.b16 %v833, %v833
  %v850 = vpack.c.b16 %v834, %v834
  %v851 = vpack.c.b16 %v835, %v835
  %v852 = vpack.c.b16 %v836, %v836
  %v853 = vpack.c.b16 %v837, %v837
  %v854 = vpack.c.b16 %v838, %v838
  %v855 = vpack.c.b16 %v839, %v839
  %v856 = vpack.c.b16 %v840, %v840
  %v857 = vpack.c.b16 %v841, %v841
  %874 = vst [vmem:[#allocation3 + $0x4] sm:$0xf] %v842
  %875 = vst [vmem:[#allocation3 + $0x10] sm:$0xf] %v843
  %876 = vst [vmem:[#allocation3 + $0x1c] sm:$0xf] %v844
  %877 = vst [vmem:[#allocation3 + $0x28] sm:$0xf] %v845
  %878 = vst [vmem:[#allocation3 + $0x34] sm:$0xf] %v846
  %879 = vst [vmem:[#allocation3 + $0x40] sm:$0xf] %v847
  %880 = vst [vmem:[#allocation3 + $0x4c] sm:$0xf] %v848
  %881 = vst [vmem:[#allocation3 + $0x58] sm:$0xf] %v849
  %882 = vst [vmem:[#allocation3 + $0x64] sm:$0xf] %v850
  %883 = vst [vmem:[#allocation3 + $0x70] sm:$0xf] %v851
  %884 = vst [vmem:[#allocation3 + $0x7c] sm:$0xf] %v852
  %885 = vst [vmem:[#allocation3 + $0x88] sm:$0xf] %v853
  %886 = vst [vmem:[#allocation3 + $0x94] sm:$0xf] %v854
  %887 = vst [vmem:[#allocation3 + $0xa0] sm:$0xf] %v855
  %888 = vst [vmem:[#allocation3 + $0xac] sm:$0xf] %v856
  %889 = vst [vmem:[#allocation3 + $0xb8] sm:$0xf] %v857
  %v890 = vld [vmem:[%s0 + $0xd] sm:$0xff]
  %v891 = vld [vmem:[%s0 + $0x15] sm:$0xff]
  %v892 = vld [vmem:[%s0 + $0x1d] sm:$0xff]
  %v893 = vld [vmem:[%s0 + $0x25] sm:$0xff]
  %v894 = vld [vmem:[%s0 + $0x2d] sm:$0xff]
  %v895 = vld [vmem:[%s0 + $0x35] sm:$0xff]
  %v896 = vld [vmem:[%s0 + $0x3d] sm:$0xff]
  %v897 = vld [vmem:[%s0 + $0x45] sm:$0xff]
  %v898 = vld [vmem:[%s0 + $0x4d] sm:$0xff]
  %v899 = vld [vmem:[%s0 + $0x55] sm:$0xff]
  %v900 = vld [vmem:[%s0 + $0x5d] sm:$0xff]
  %v901 = vld [vmem:[%s0 + $0x65] sm:$0xff]
  %v902 = vld [vmem:[%s0 + $0x6d] sm:$0xff]
  %v903 = vld [vmem:[%s0 + $0x75] sm:$0xff]
  %v904 = vld [vmem:[%s0 + $0x7d] sm:$0xff]
  %v905 = vld [vmem:[%s0 + $0x85] sm:$0xff]
  %s906 = scalar_lea.vmem %s1, 1024
  %v907 = vld [vmem:[%s906] sm:$0xff]
  %v908 = vld [vmem:[%s906 + $0x8] sm:$0xff]
  %v909 = vld [vmem:[%s906 + $0x10] sm:$0xff]
  %v910 = vld [vmem:[%s906 + $0x18] sm:$0xff]
  %v911 = vld [vmem:[%s906 + $0x20] sm:$0xff]
  %v912 = vld [vmem:[%s906 + $0x28] sm:$0xff]
  %v913 = vld [vmem:[%s906 + $0x30] sm:$0xff]
  %v914 = vld [vmem:[%s906 + $0x38] sm:$0xff]
  %v915 = vld [vmem:[%s906 + $0x40] sm:$0xff]
  %v916 = vld [vmem:[%s906 + $0x48] sm:$0xff]
  %v917 = vld [vmem:[%s906 + $0x50] sm:$0xff]
  %v918 = vld [vmem:[%s906 + $0x58] sm:$0xff]
  %v919 = vld [vmem:[%s906 + $0x60] sm:$0xff]
  %v920 = vld [vmem:[%s906 + $0x68] sm:$0xff]
  %v921 = vld [vmem:[%s906 + $0x70] sm:$0xff]
  %v922 = vld [vmem:[%s906 + $0x78] sm:$0xff]
  %v923 = vmul.f32 %v890, %v907
  %v924 = vmul.f32 %v891, %v908
  %v925 = vmul.f32 %v892, %v909
  %v926 = vmul.f32 %v893, %v910
  %v927 = vmul.f32 %v894, %v911
  %v928 = vmul.f32 %v895, %v912
  %v929 = vmul.f32 %v896, %v913
  %v930 = vmul.f32 %v897, %v914
  %v931 = vmul.f32 %v898, %v915
  %v932 = vmul.f32 %v899, %v916
  %v933 = vmul.f32 %v900, %v917
  %v934 = vmul.f32 %v901, %v918
  %v935 = vmul.f32 %v902, %v919
  %v936 = vmul.f32 %v903, %v920
  %v937 = vmul.f32 %v904, %v921
  %v938 = vmul.f32 %v905, %v922
  %v939 = vpack.c.bf16 %v924, %v923
  %v940 = vpack.c.bf16 %v926, %v925
  %v941 = vpack.c.bf16 %v928, %v927
  %v942 = vpack.c.bf16 %v930, %v929
  %v943 = vpack.c.bf16 %v932, %v931
  %v944 = vpack.c.bf16 %v934, %v933
  %v945 = vpack.c.bf16 %v936, %v935
  %v946 = vpack.c.bf16 %v938, %v937
  %v949 = vsel %vm30, %v939, 0
  %v951 = vsel %vm30, %v940, 0
  %v953 = vsel %vm30, %v941, 0
  %v955 = vsel %vm30, %v942, 0
  %v957 = vsel %vm30, %v943, 0
  %v959 = vsel %vm30, %v944, 0
  %v961 = vsel %vm30, %v945, 0
  %v963 = vsel %vm30, %v946, 0
  %v964 = vsel %vm356, %v949, 0
  %v965 = vsel %vm356, %v951, 0
  %v966 = vsel %vm356, %v953, 0
  %v967 = vsel %vm356, %v955, 0
  %v968 = vsel %vm356, %v957, 0
  %v969 = vsel %vm356, %v959, 0
  %v970 = vsel %vm356, %v961, 0
  %v971 = vsel %vm356, %v963, 0
  %v972 = vsel %vm373, %v964, 0
  %v973 = vsel %vm373, %v965, 0
  %v974 = vsel %vm373, %v966, 0
  %v975 = vsel %vm373, %v967, 0
  %v976 = vsel %vm373, %v968, 0
  %v977 = vsel %vm373, %v969, 0
  %v978 = vsel %vm373, %v970, 0
  %v979 = vsel %vm373, %v971, 0
  %v988 = vunpack.c.l.b16 %v972
  %v989 = vunpack.c.h.b16 %v972
  %v990 = vunpack.c.l.b16 %v973
  %v991 = vunpack.c.h.b16 %v973
  %v992 = vunpack.c.l.b16 %v974
  %v993 = vunpack.c.h.b16 %v974
  %v994 = vunpack.c.l.b16 %v975
  %v995 = vunpack.c.h.b16 %v975
  %v996 = vunpack.c.l.b16 %v976
  %v997 = vunpack.c.h.b16 %v976
  %v998 = vunpack.c.l.b16 %v977
  %v999 = vunpack.c.h.b16 %v977
  %v1000 = vunpack.c.l.b16 %v978
  %v1001 = vunpack.c.h.b16 %v978
  %v1002 = vunpack.c.l.b16 %v979
  %v1003 = vunpack.c.h.b16 %v979
  %v1004 = vpack.c.b16 %v988, %v988
  %v1005 = vpack.c.b16 %v989, %v989
  %v1006 = vpack.c.b16 %v990, %v990
  %v1007 = vpack.c.b16 %v991, %v991
  %v1008 = vpack.c.b16 %v992, %v992
  %v1009 = vpack.c.b16 %v993, %v993
  %v1010 = vpack.c.b16 %v994, %v994
  %v1011 = vpack.c.b16 %v995, %v995
  %v1012 = vpack.c.b16 %v996, %v996
  %v1013 = vpack.c.b16 %v997, %v997
  %v1014 = vpack.c.b16 %v998, %v998
  %v1015 = vpack.c.b16 %v999, %v999
  %v1016 = vpack.c.b16 %v1000, %v1000
  %v1017 = vpack.c.b16 %v1001, %v1001
  %v1018 = vpack.c.b16 %v1002, %v1002
  %v1019 = vpack.c.b16 %v1003, %v1003
  %1036 = vst [vmem:[#allocation3 + $0x8] sm:$0xf] %v1004
  %1037 = vst [vmem:[#allocation3 + $0x14] sm:$0xf] %v1005
  %1038 = vst [vmem:[#allocation3 + $0x20] sm:$0xf] %v1006
  %1039 = vst [vmem:[#allocation3 + $0x2c] sm:$0xf] %v1007
  %1040 = vst [vmem:[#allocation3 + $0x38] sm:$0xf] %v1008
  %1041 = vst [vmem:[#allocation3 + $0x44] sm:$0xf] %v1009
  %1042 = vst [vmem:[#allocation3 + $0x50] sm:$0xf] %v1010
  %1043 = vst [vmem:[#allocation3 + $0x5c] sm:$0xf] %v1011
  %1044 = vst [vmem:[#allocation3 + $0x68] sm:$0xf] %v1012
  %1045 = vst [vmem:[#allocation3 + $0x74] sm:$0xf] %v1013
  %1046 = vst [vmem:[#allocation3 + $0x80] sm:$0xf] %v1014
  %1047 = vst [vmem:[#allocation3 + $0x8c] sm:$0xf] %v1015
  %1048 = vst [vmem:[#allocation3 + $0x98] sm:$0xf] %v1016
  %1049 = vst [vmem:[#allocation3 + $0xa4] sm:$0xf] %v1017
  %1050 = vst [vmem:[#allocation3 + $0xb0] sm:$0xf] %v1018
  %1051 = vst [vmem:[#allocation3 + $0xbc] sm:$0xf] %v1019
  %v1052 = vld [vmem:[#allocation3] sm:$0xff]
  %v1053 = vld [vmem:[#allocation3 + $0x8] sm:$0xf]
  %v1054 = vld [vmem:[#allocation3 + $0xc] sm:$0xff]
  %v1055 = vld [vmem:[#allocation3 + $0x14] sm:$0xf]
  %v1056 = vld [vmem:[#allocation3 + $0x18] sm:$0xff]
  %v1057 = vld [vmem:[#allocation3 + $0x20] sm:$0xf]
  %v1058 = vld [vmem:[#allocation3 + $0x24] sm:$0xff]
  %v1059 = vld [vmem:[#allocation3 + $0x2c] sm:$0xf]
  %v1060 = vld [vmem:[#allocation3 + $0x30] sm:$0xff]
  %v1061 = vld [vmem:[#allocation3 + $0x38] sm:$0xf]
  %v1062 = vld [vmem:[#allocation3 + $0x3c] sm:$0xff]
  %v1063 = vld [vmem:[#allocation3 + $0x44] sm:$0xf]
  %v1064 = vld [vmem:[#allocation3 + $0x48] sm:$0xff]
  %v1065 = vld [vmem:[#allocation3 + $0x50] sm:$0xf]
  %v1066 = vld [vmem:[#allocation3 + $0x54] sm:$0xff]
  %v1067 = vld [vmem:[#allocation3 + $0x5c] sm:$0xf]
  %v1068 = vld [vmem:[#allocation3 + $0x60] sm:$0xff]
  %v1069 = vld [vmem:[#allocation3 + $0x68] sm:$0xf]
  %v1070 = vld [vmem:[#allocation3 + $0x6c] sm:$0xff]
  %v1071 = vld [vmem:[#allocation3 + $0x74] sm:$0xf]
  %v1072 = vld [vmem:[#allocation3 + $0x78] sm:$0xff]
  %v1073 = vld [vmem:[#allocation3 + $0x80] sm:$0xf]
  %v1074 = vld [vmem:[#allocation3 + $0x84] sm:$0xff]
  %v1075 = vld [vmem:[#allocation3 + $0x8c] sm:$0xf]
  %v1076 = vld [vmem:[#allocation3 + $0x90] sm:$0xff]
  %v1077 = vld [vmem:[#allocation3 + $0x98] sm:$0xf]
  %v1078 = vld [vmem:[#allocation3 + $0x9c] sm:$0xff]
  %v1079 = vld [vmem:[#allocation3 + $0xa4] sm:$0xf]
  %v1080 = vld [vmem:[#allocation3 + $0xa8] sm:$0xff]
  %v1081 = vld [vmem:[#allocation3 + $0xb0] sm:$0xf]
  %v1082 = vld [vmem:[#allocation3 + $0xb4] sm:$0xff]
  %v1083 = vld [vmem:[#allocation3 + $0xbc] sm:$0xf]
  %v1084 = vld [vmem:[%s2] sm:$0xf]
  %v1085 = vld [vmem:[%s2 + $0x4] sm:$0xf]
  %v1086 = vld [vmem:[%s2 + $0x8] sm:$0xf]
  %v1087 = vld [vmem:[%s2 + $0xc] sm:$0xf]
  %v1088 = vld [vmem:[%s2 + $0x10] sm:$0xf]
  %v1089 = vld [vmem:[%s2 + $0x14] sm:$0xf]
  %v1090 = vld [vmem:[%s2 + $0x18] sm:$0xf]
  %v1091 = vld [vmem:[%s2 + $0x1c] sm:$0xf]
  %v1092 = vld [vmem:[%s2 + $0x20] sm:$0xf]
  %v1093 = vld [vmem:[%s2 + $0x24] sm:$0xf]
  %v1094 = vld [vmem:[%s2 + $0x28] sm:$0xf]
  %v1095 = vld [vmem:[%s2 + $0x2c] sm:$0xf]
  %v1096 = vld [vmem:[%s2 + $0x30] sm:$0xf]
  %v1097 = vld [vmem:[%s2 + $0x34] sm:$0xf]
  %v1098 = vld [vmem:[%s2 + $0x38] sm:$0xf]
  %v1099 = vld [vmem:[%s2 + $0x3c] sm:$0xf]
  %v1100 = vld [vmem:[%s2 + $0x40] sm:$0xf]
  %v1101 = vld [vmem:[%s2 + $0x44] sm:$0xf]
  %v1102 = vld [vmem:[%s2 + $0x48] sm:$0xf]
  %v1103 = vld [vmem:[%s2 + $0x4c] sm:$0xf]
  %v1104 = vld [vmem:[%s2 + $0x50] sm:$0xf]
  %v1105 = vld [vmem:[%s2 + $0x54] sm:$0xf]
  %v1106 = vld [vmem:[%s2 + $0x58] sm:$0xf]
  %v1107 = vld [vmem:[%s2 + $0x5c] sm:$0xf]
  %v1108 = vld [vmem:[%s2 + $0x60] sm:$0xf]
  %v1109 = vld [vmem:[%s2 + $0x64] sm:$0xf]
  %v1110 = vld [vmem:[%s2 + $0x68] sm:$0xf]
  %v1111 = vld [vmem:[%s2 + $0x6c] sm:$0xf]
  %v1112 = vld [vmem:[%s2 + $0x70] sm:$0xf]
  %v1113 = vld [vmem:[%s2 + $0x74] sm:$0xf]
  %v1114 = vld [vmem:[%s2 + $0x78] sm:$0xf]
  %v1115 = vld [vmem:[%s2 + $0x7c] sm:$0xf]
  %v1116 = vld [vmem:[%s2 + $0x80] sm:$0xf]
  %v1117 = vld [vmem:[%s2 + $0x84] sm:$0xf]
  %v1118 = vld [vmem:[%s2 + $0x88] sm:$0xf]
  %v1119 = vld [vmem:[%s2 + $0x8c] sm:$0xf]
  %v1120 = vld [vmem:[%s2 + $0x90] sm:$0xf]
  %v1121 = vld [vmem:[%s2 + $0x94] sm:$0xf]
  %v1122 = vld [vmem:[%s2 + $0x98] sm:$0xf]
  %v1123 = vld [vmem:[%s2 + $0x9c] sm:$0xf]
  %v1124 = vld [vmem:[%s2 + $0xa0] sm:$0xf]
  %v1125 = vld [vmem:[%s2 + $0xa4] sm:$0xf]
  %v1126 = vld [vmem:[%s2 + $0xa8] sm:$0xf]
  %v1127 = vld [vmem:[%s2 + $0xac] sm:$0xf]
  %v1128 = vld [vmem:[%s2 + $0xb0] sm:$0xf]
  %v1129 = vld [vmem:[%s2 + $0xb4] sm:$0xf]
  %v1130 = vld [vmem:[%s2 + $0xb8] sm:$0xf]
  %v1131 = vld [vmem:[%s2 + $0xbc] sm:$0xf]
  %v1164 = vunpack.c.l.b16 %v1052
  %v1165 = vunpack.c.h.b16 %v1052
  %v1166 = vunpack.c.l.b16 %v1053
  %v1167 = vunpack.c.l.b16 %v1054
  %v1168 = vunpack.c.h.b16 %v1054
  %v1169 = vunpack.c.l.b16 %v1055
  %v1170 = vunpack.c.l.b16 %v1056
  %v1171 = vunpack.c.h.b16 %v1056
  %v1172 = vunpack.c.l.b16 %v1057
  %v1173 = vunpack.c.l.b16 %v1058
  %v1174 = vunpack.c.h.b16 %v1058
  %v1175 = vunpack.c.l.b16 %v1059
  %v1176 = vunpack.c.l.b16 %v1060
  %v1177 = vunpack.c.h.b16 %v1060
  %v1178 = vunpack.c.l.b16 %v1061
  %v1179 = vunpack.c.l.b16 %v1062
  %v1180 = vunpack.c.h.b16 %v1062
  %v1181 = vunpack.c.l.b16 %v1063
  %v1182 = vunpack.c.l.b16 %v1064
  %v1183 = vunpack.c.h.b16 %v1064
  %v1184 = vunpack.c.l.b16 %v1065
  %v1185 = vunpack.c.l.b16 %v1066
  %v1186 = vunpack.c.h.b16 %v1066
  %v1187 = vunpack.c.l.b16 %v1067
  %v1188 = vunpack.c.l.b16 %v1068
  %v1189 = vunpack.c.h.b16 %v1068
  %v1190 = vunpack.c.l.b16 %v1069
  %v1191 = vunpack.c.l.b16 %v1070
  %v1192 = vunpack.c.h.b16 %v1070
  %v1193 = vunpack.c.l.b16 %v1071
  %v1194 = vunpack.c.l.b16 %v1072
  %v1195 = vunpack.c.h.b16 %v1072
  %v1196 = vunpack.c.l.b16 %v1073
  %v1197 = vunpack.c.l.b16 %v1074
  %v1198 = vunpack.c.h.b16 %v1074
  %v1199 = vunpack.c.l.b16 %v1075
  %v1200 = vunpack.c.l.b16 %v1076
  %v1201 = vunpack.c.h.b16 %v1076
  %v1202 = vunpack.c.l.b16 %v1077
  %v1203 = vunpack.c.l.b16 %v1078
  %v1204 = vunpack.c.h.b16 %v1078
  %v1205 = vunpack.c.l.b16 %v1079
  %v1206 = vunpack.c.l.b16 %v1080
  %v1207 = vunpack.c.h.b16 %v1080
  %v1208 = vunpack.c.l.b16 %v1081
  %v1209 = vunpack.c.l.b16 %v1082
  %v1210 = vunpack.c.h.b16 %v1082
  %v1211 = vunpack.c.l.b16 %v1083
  %v1212 = vpack.c.b16 %v1167, %v1164
  %v1213 = vpack.c.b16 %v1168, %v1165
  %v1214 = vpack.c.b16 %v1169, %v1166
  %v1215 = vpack.c.b16 %v1173, %v1170
  %v1216 = vpack.c.b16 %v1174, %v1171
  %v1217 = vpack.c.b16 %v1175, %v1172
  %v1218 = vpack.c.b16 %v1179, %v1176
  %v1219 = vpack.c.b16 %v1180, %v1177
  %v1220 = vpack.c.b16 %v1181, %v1178
  %v1221 = vpack.c.b16 %v1185, %v1182
  %v1222 = vpack.c.b16 %v1186, %v1183
  %v1223 = vpack.c.b16 %v1187, %v1184
  %v1224 = vpack.c.b16 %v1191, %v1188
  %v1225 = vpack.c.b16 %v1192, %v1189
  %v1226 = vpack.c.b16 %v1193, %v1190
  %v1227 = vpack.c.b16 %v1197, %v1194
  %v1228 = vpack.c.b16 %v1198, %v1195
  %v1229 = vpack.c.b16 %v1199, %v1196
  %v1230 = vpack.c.b16 %v1203, %v1200
  %v1231 = vpack.c.b16 %v1204, %v1201
  %v1232 = vpack.c.b16 %v1205, %v1202
  %v1233 = vpack.c.b16 %v1209, %v1206
  %v1234 = vpack.c.b16 %v1210, %v1207
  %v1235 = vpack.c.b16 %v1211, %v1208
  %v1308 = vunpack.c.l.b16 %v1084
  %v1309 = vunpack.c.l.b16 %v1085
  %v1310 = vunpack.c.l.b16 %v1086
  %v1311 = vunpack.c.l.b16 %v1087
  %v1312 = vunpack.c.l.b16 %v1088
  %v1313 = vunpack.c.l.b16 %v1089
  %v1314 = vunpack.c.l.b16 %v1090
  %v1315 = vunpack.c.l.b16 %v1091
  %v1316 = vunpack.c.l.b16 %v1092
  %v1317 = vunpack.c.l.b16 %v1093
  %v1318 = vunpack.c.l.b16 %v1094
  %v1319 = vunpack.c.l.b16 %v1095
  %v1320 = vunpack.c.l.b16 %v1096
  %v1321 = vunpack.c.l.b16 %v1097
  %v1322 = vunpack.c.l.b16 %v1098
  %v1323 = vunpack.c.l.b16 %v1099
  %v1324 = vunpack.c.l.b16 %v1100
  %v1325 = vunpack.c.l.b16 %v1101
  %v1326 = vunpack.c.l.b16 %v1102
  %v1327 = vunpack.c.l.b16 %v1103
  %v1328 = vunpack.c.l.b16 %v1104
  %v1329 = vunpack.c.l.b16 %v1105
  %v1330 = vunpack.c.l.b16 %v1106
  %v1331 = vunpack.c.l.b16 %v1107
  %v1332 = vunpack.c.l.b16 %v1108
  %v1333 = vunpack.c.l.b16 %v1109
  %v1334 = vunpack.c.l.b16 %v1110
  %v1335 = vunpack.c.l.b16 %v1111
  %v1336 = vunpack.c.l.b16 %v1112
  %v1337 = vunpack.c.l.b16 %v1113
  %v1338 = vunpack.c.l.b16 %v1114
  %v1339 = vunpack.c.l.b16 %v1115
  %v1340 = vunpack.c.l.b16 %v1116
  %v1341 = vunpack.c.l.b16 %v1117
  %v1342 = vunpack.c.l.b16 %v1118
  %v1343 = vunpack.c.l.b16 %v1119
  %v1344 = vunpack.c.l.b16 %v1120
  %v1345 = vunpack.c.l.b16 %v1121
  %v1346 = vunpack.c.l.b16 %v1122
  %v1347 = vunpack.c.l.b16 %v1123
  %v1348 = vunpack.c.l.b16 %v1124
  %v1349 = vunpack.c.l.b16 %v1125
  %v1350 = vunpack.c.l.b16 %v1126
  %v1351 = vunpack.c.l.b16 %v1127
  %v1352 = vunpack.c.l.b16 %v1128
  %v1353 = vunpack.c.l.b16 %v1129
  %v1354 = vunpack.c.l.b16 %v1130
  %v1355 = vunpack.c.l.b16 %v1131
  %v1356 = vpack.c.b16 %v1309, %v1308
  %v1357 = vpack.c.b16 %v1311, %v1310
  %v1358 = vpack.c.b16 %v1313, %v1312
  %v1359 = vpack.c.b16 %v1315, %v1314
  %v1360 = vpack.c.b16 %v1317, %v1316
  %v1361 = vpack.c.b16 %v1319, %v1318
  %v1362 = vpack.c.b16 %v1321, %v1320
  %v1363 = vpack.c.b16 %v1323, %v1322
  %v1364 = vpack.c.b16 %v1325, %v1324
  %v1365 = vpack.c.b16 %v1327, %v1326
  %v1366 = vpack.c.b16 %v1329, %v1328
  %v1367 = vpack.c.b16 %v1331, %v1330
  %v1368 = vpack.c.b16 %v1333, %v1332
  %v1369 = vpack.c.b16 %v1335, %v1334
  %v1370 = vpack.c.b16 %v1337, %v1336
  %v1371 = vpack.c.b16 %v1339, %v1338
  %v1372 = vpack.c.b16 %v1341, %v1340
  %v1373 = vpack.c.b16 %v1343, %v1342
  %v1374 = vpack.c.b16 %v1345, %v1344
  %v1375 = vpack.c.b16 %v1347, %v1346
  %v1376 = vpack.c.b16 %v1349, %v1348
  %v1377 = vpack.c.b16 %v1351, %v1350
  %v1378 = vpack.c.b16 %v1353, %v1352
  %v1379 = vpack.c.b16 %v1355, %v1354
  %1404 = vmatprep.subr.bf16.mxu0 0
  %1405 = vmatpush1.bf16.msra.mxu0 %v1363
  %1406 = vmatprep.subr.bf16.mxu0 0
  %1407 = vmatpush1.bf16.msra.mxu0 %v1362
  %1408 = vmatprep.subr.bf16.mxu0 0
  %1409 = vmatpush1.bf16.msra.mxu0 %v1361
  %1410 = vmatprep.subr.bf16.mxu0 0
  %1411 = vmatpush1.bf16.msra.mxu0 %v1360
  %1412 = vmatprep.subr.bf16.mxu0 0
  %1413 = vmatpush1.bf16.msra.mxu0 %v1359
  %1414 = vmatprep.subr.bf16.mxu0 0
  %1415 = vmatpush1.bf16.msra.mxu0 %v1358
  %1416 = vmatprep.subr.bf16.mxu0 0
  %1417 = vmatpush1.bf16.msra.mxu0 %v1357
  %1418 = vmatprep.subr.bf16.mxu0 0
  %1419 = vmatpush1.bf16.msra.mxu0 %v1356
  %1420 = vmatprep.subr.bf16.mxu0 0
  %1421 = vmatpush2.bf16.msra.mxu0 %v1371
  %1422 = vmatprep.subr.bf16.mxu0 0
  %1423 = vmatpush2.bf16.msra.mxu0 %v1370
  %1424 = vmatprep.subr.bf16.mxu0 0
  %1425 = vmatpush2.bf16.msra.mxu0 %v1369
  %1426 = vmatprep.subr.bf16.mxu0 0
  %1427 = vmatpush2.bf16.msra.mxu0 %v1368
  %1428 = vmatprep.subr.bf16.mxu0 0
  %1429 = vmatpush2.bf16.msra.mxu0 %v1367
  %1430 = vmatprep.subr.bf16.mxu0 0
  %1431 = vmatpush2.bf16.msra.mxu0 %v1366
  %1432 = vmatprep.subr.bf16.mxu0 0
  %1433 = vmatpush2.bf16.msra.mxu0 %v1365
  %1434 = vmatprep.subr.bf16.mxu0 0
  %1435 = vmatpush2.bf16.msra.mxu0 %v1364
  %1436 = vmatprep.mubr.bf16.mxu0 %v1213
  %1437 = vmatmul.mubr.bf16.gmra.mxu0 %v1212
  %v1438 = vpop.f32.mrf.mxu0
  %v1439 = vadd.f32 0.0, %v1438
  %v1440 = vpop.f32.mrf.mxu0
  %v1441 = vpop.f32.mrf.mxu0
  %v1442 = vadd.f32 0.0, %v1441
  %v1443 = vpop.f32.mrf.mxu0
  %1444 = vmatprep.mubr.bf16.mxu0 %v1216
  %1445 = vmatmul.mubr.bf16.gmra.mxu0 %v1215
  %v1446 = vpop.f32.mrf.mxu0
  %v1447 = vadd.f32 0.0, %v1446
  %v1448 = vpop.f32.mrf.mxu0
  %v1449 = vpop.f32.mrf.mxu0
  %v1450 = vadd.f32 0.0, %v1449
  %v1451 = vpop.f32.mrf.mxu0
  %1452 = vmatprep.mubr.bf16.mxu0 %v1219
  %1453 = vmatmul.mubr.bf16.gmra.mxu0 %v1218
  %v1454 = vpop.f32.mrf.mxu0
  %v1455 = vadd.f32 0.0, %v1454
  %v1456 = vpop.f32.mrf.mxu0
  %v1457 = vpop.f32.mrf.mxu0
  %v1458 = vadd.f32 0.0, %v1457
  %v1459 = vpop.f32.mrf.mxu0
  %1460 = vmatprep.mubr.bf16.mxu0 %v1222
  %1461 = vmatmul.mubr.bf16.gmra.mxu0 %v1221
  %v1462 = vpop.f32.mrf.mxu0
  %v1463 = vadd.f32 0.0, %v1462
  %v1464 = vpop.f32.mrf.mxu0
  %v1465 = vpop.f32.mrf.mxu0
  %v1466 = vadd.f32 0.0, %v1465
  %v1467 = vpop.f32.mrf.mxu0
  %1468 = vmatprep.mubr.bf16.mxu0 %v1225
  %1469 = vmatmul.mubr.bf16.gmra.mxu0 %v1224
  %v1470 = vpop.f32.mrf.mxu0
  %v1471 = vadd.f32 0.0, %v1470
  %v1472 = vpop.f32.mrf.mxu0
  %v1473 = vpop.f32.mrf.mxu0
  %v1474 = vadd.f32 0.0, %v1473
  %v1475 = vpop.f32.mrf.mxu0
  %1476 = vmatprep.mubr.bf16.mxu0 %v1228
  %1477 = vmatmul.mubr.bf16.gmra.mxu0 %v1227
  %v1478 = vpop.f32.mrf.mxu0
  %v1479 = vadd.f32 0.0, %v1478
  %v1480 = vpop.f32.mrf.mxu0
  %v1481 = vpop.f32.mrf.mxu0
  %v1482 = vadd.f32 0.0, %v1481
  %v1483 = vpop.f32.mrf.mxu0
  %1484 = vmatprep.mubr.bf16.mxu0 %v1231
  %1485 = vmatmul.mubr.bf16.gmra.mxu0 %v1230
  %v1486 = vpop.f32.mrf.mxu0
  %v1487 = vadd.f32 0.0, %v1486
  %v1488 = vpop.f32.mrf.mxu0
  %v1489 = vpop.f32.mrf.mxu0
  %v1490 = vadd.f32 0.0, %v1489
  %v1491 = vpop.f32.mrf.mxu0
  %1492 = vmatprep.mubr.bf16.mxu0 %v1234
  %1493 = vmatmul.mubr.bf16.gmra.mxu0 %v1233
  %v1494 = vpop.f32.mrf.mxu0
  %v1495 = vadd.f32 0.0, %v1494
  %v1496 = vpop.f32.mrf.mxu0
  %v1497 = vpop.f32.mrf.mxu0
  %v1498 = vadd.f32 0.0, %v1497
  %v1499 = vpop.f32.mrf.mxu0
  %1500 = vdwg.mxu0
  %1501 = vmatprep.subr.bf16.mxu0 0
  %1502 = vmatpush1.bf16.msra.mxu0 %v1379
  %1503 = vmatprep.subr.bf16.mxu0 0
  %1504 = vmatpush1.bf16.msra.mxu0 %v1378
  %1505 = vmatprep.subr.bf16.mxu0 0
  %1506 = vmatpush1.bf16.msra.mxu0 %v1377
  %1507 = vmatprep.subr.bf16.mxu0 0
  %1508 = vmatpush1.bf16.msra.mxu0 %v1376
  %1509 = vmatprep.subr.bf16.mxu0 0
  %1510 = vmatpush1.bf16.msra.mxu0 %v1375
  %1511 = vmatprep.subr.bf16.mxu0 0
  %1512 = vmatpush1.bf16.msra.mxu0 %v1374
  %1513 = vmatprep.subr.bf16.mxu0 0
  %1514 = vmatpush1.bf16.msra.mxu0 %v1373
  %1515 = vmatprep.subr.bf16.mxu0 0
  %1516 = vmatpush1.bf16.msra.mxu0 %v1372
  %1517 = vmatprep.subr.bf16.mxu0 0
  %1518 = vmatpush2.bf16.msra.mxu0 0
  %1519 = vmatprep.subr.bf16.mxu0 0
  %1520 = vmatpush2.bf16.msra.mxu0 0
  %1521 = vmatprep.subr.bf16.mxu0 0
  %1522 = vmatpush2.bf16.msra.mxu0 0
  %1523 = vmatprep.subr.bf16.mxu0 0
  %1524 = vmatpush2.bf16.msra.mxu0 0
  %1525 = vmatprep.subr.bf16.mxu0 0
  %1526 = vmatpush2.bf16.msra.mxu0 0
  %1527 = vmatprep.subr.bf16.mxu0 0
  %1528 = vmatpush2.bf16.msra.mxu0 0
  %1529 = vmatprep.subr.bf16.mxu0 0
  %1530 = vmatpush2.bf16.msra.mxu0 0
  %1531 = vmatprep.subr.bf16.mxu0 0
  %1532 = vmatpush2.bf16.msra.mxu0 0
  %1533 = vmatprep.mubr.bf16.mxu0 0
  %1534 = vmatmul.mubr.bf16.gmra.mxu0 %v1214
  %v1535 = vpop.f32.mrf.mxu0
  %v1536 = vadd.f32 %v1439, %v1535
  %v1537 = vpop.f32.mrf.mxu0
  %v1538 = vpop.f32.mrf.mxu0
  %v1539 = vadd.f32 %v1442, %v1538
  %v1540 = vpop.f32.mrf.mxu0
  %1541 = vmatprep.mubr.bf16.mxu0 0
  %1542 = vmatmul.mubr.bf16.gmra.mxu0 %v1217
  %v1543 = vpop.f32.mrf.mxu0
  %v1544 = vadd.f32 %v1447, %v1543
  %v1545 = vpop.f32.mrf.mxu0
  %v1546 = vpop.f32.mrf.mxu0
  %v1547 = vadd.f32 %v1450, %v1546
  %v1548 = vpop.f32.mrf.mxu0
  %1549 = vmatprep.mubr.bf16.mxu0 0
  %1550 = vmatmul.mubr.bf16.gmra.mxu0 %v1220
  %v1551 = vpop.f32.mrf.mxu0
  %v1552 = vadd.f32 %v1455, %v1551
  %v1553 = vpop.f32.mrf.mxu0
  %v1554 = vpop.f32.mrf.mxu0
  %v1555 = vadd.f32 %v1458, %v1554
  %v1556 = vpop.f32.mrf.mxu0
  %1557 = vmatprep.mubr.bf16.mxu0 0
  %1558 = vmatmul.mubr.bf16.gmra.mxu0 %v1223
  %v1559 = vpop.f32.mrf.mxu0
  %v1560 = vadd.f32 %v1463, %v1559
  %v1561 = vpop.f32.mrf.mxu0
  %v1562 = vpop.f32.mrf.mxu0
  %v1563 = vadd.f32 %v1466, %v1562
  %v1564 = vpop.f32.mrf.mxu0
  %1565 = vmatprep.mubr.bf16.mxu0 0
  %1566 = vmatmul.mubr.bf16.gmra.mxu0 %v1226
  %v1567 = vpop.f32.mrf.mxu0
  %v1568 = vadd.f32 %v1471, %v1567
  %v1569 = vpop.f32.mrf.mxu0
  %v1570 = vpop.f32.mrf.mxu0
  %v1571 = vadd.f32 %v1474, %v1570
  %v1572 = vpop.f32.mrf.mxu0
  %1573 = vmatprep.mubr.bf16.mxu0 0
  %1574 = vmatmul.mubr.bf16.gmra.mxu0 %v1229
  %v1575 = vpop.f32.mrf.mxu0
  %v1576 = vadd.f32 %v1479, %v1575
  %v1577 = vpop.f32.mrf.mxu0
  %v1578 = vpop.f32.mrf.mxu0
  %v1579 = vadd.f32 %v1482, %v1578
  %v1580 = vpop.f32.mrf.mxu0
  %1581 = vmatprep.mubr.bf16.mxu0 0
  %1582 = vmatmul.mubr.bf16.gmra.mxu0 %v1232
  %v1583 = vpop.f32.mrf.mxu0
  %v1584 = vadd.f32 %v1487, %v1583
  %v1585 = vpop.f32.mrf.mxu0
  %v1586 = vpop.f32.mrf.mxu0
  %v1587 = vadd.f32 %v1490, %v1586
  %v1588 = vpop.f32.mrf.mxu0
  %1589 = vmatprep.mubr.bf16.mxu0 0
  %1590 = vmatmul.mubr.bf16.gmra.mxu0 %v1235
  %v1591 = vpop.f32.mrf.mxu0
  %v1592 = vadd.f32 %v1495, %v1591
  %v1593 = vpop.f32.mrf.mxu0
  %v1594 = vpop.f32.mrf.mxu0
  %v1595 = vadd.f32 %v1498, %v1594
  %v1596 = vpop.f32.mrf.mxu0
  %1597 = vdwg.mxu0
  %v1598 = vsel %vm30, %v1536, 0.0
  %v1599 = vsel %vm30, %v1539, 0.0
  %v1600 = vadd.f32 %v1598, %v1599
  %v1601 = vsel %vm30, %v1544, 0.0
  %v1602 = vadd.f32 %v1600, %v1601
  %v1603 = vsel %vm30, %v1547, 0.0
  %v1604 = vadd.f32 %v1602, %v1603
  %v1605 = vsel %vm30, %v1552, 0.0
  %v1606 = vadd.f32 %v1604, %v1605
  %v1607 = vsel %vm30, %v1555, 0.0
  %v1608 = vadd.f32 %v1606, %v1607
  %v1609 = vsel %vm30, %v1560, 0.0
  %v1610 = vadd.f32 %v1608, %v1609
  %v1611 = vsel %vm30, %v1563, 0.0
  %v1612 = vadd.f32 %v1610, %v1611
  %v1613 = vsel %vm30, %v1568, 0.0
  %v1614 = vadd.f32 %v1612, %v1613
  %v1615 = vsel %vm30, %v1571, 0.0
  %v1616 = vadd.f32 %v1614, %v1615
  %v1617 = vsel %vm30, %v1576, 0.0
  %v1618 = vadd.f32 %v1616, %v1617
  %v1619 = vsel %vm30, %v1579, 0.0
  %v1620 = vadd.f32 %v1618, %v1619
  %v1621 = vsel %vm30, %v1584, 0.0
  %v1622 = vadd.f32 %v1620, %v1621
  %v1623 = vsel %vm30, %v1587, 0.0
  %v1624 = vadd.f32 %v1622, %v1623
  %v1625 = vsel %vm30, %v1592, 0.0
  %v1626 = vadd.f32 %v1624, %v1625
  %v1627 = vsel %vm30, %v1595, 0.0
  %v1628 = vadd.f32 %v1626, %v1627
  %v1629 = vrot.slane %v1628, 4
  %v1630 = vadd.f32 %v1628, %v1629
  %v1631 = vrot.slane %v1630, 2
  %v1632 = vadd.f32 %v1630, %v1631
  %v1633 = vrot.slane %v1632, 1
  %v1634 = vadd.f32 %v1632, %v1633
  %v1635 = vrcp.pop 128.0
  %v1636 = vmul.f32 %v1634, %v1635
  %v1637 = vmul.f32 %v1536, %v1536
  %v1638 = vmul.f32 %v1539, %v1539
  %v1639 = vmul.f32 %v1544, %v1544
  %v1640 = vmul.f32 %v1547, %v1547
  %v1641 = vmul.f32 %v1552, %v1552
  %v1642 = vmul.f32 %v1555, %v1555
  %v1643 = vmul.f32 %v1560, %v1560
  %v1644 = vmul.f32 %v1563, %v1563
  %v1645 = vmul.f32 %v1568, %v1568
  %v1646 = vmul.f32 %v1571, %v1571
  %v1647 = vmul.f32 %v1576, %v1576
  %v1648 = vmul.f32 %v1579, %v1579
  %v1649 = vmul.f32 %v1584, %v1584
  %v1650 = vmul.f32 %v1587, %v1587
  %v1651 = vmul.f32 %v1592, %v1592
  %v1652 = vmul.f32 %v1595, %v1595
  %v1653 = vsel %vm30, %v1637, 0.0
  %v1654 = vsel %vm30, %v1638, 0.0
  %v1655 = vadd.f32 %v1653, %v1654
  %v1656 = vsel %vm30, %v1639, 0.0
  %v1657 = vadd.f32 %v1655, %v1656
  %v1658 = vsel %vm30, %v1640, 0.0
  %v1659 = vadd.f32 %v1657, %v1658
  %v1660 = vsel %vm30, %v1641, 0.0
  %v1661 = vadd.f32 %v1659, %v1660
  %v1662 = vsel %vm30, %v1642, 0.0
  %v1663 = vadd.f32 %v1661, %v1662
  %v1664 = vsel %vm30, %v1643, 0.0
  %v1665 = vadd.f32 %v1663, %v1664
  %v1666 = vsel %vm30, %v1644, 0.0
  %v1667 = vadd.f32 %v1665, %v1666
  %v1668 = vsel %vm30, %v1645, 0.0
  %v1669 = vadd.f32 %v1667, %v1668
  %v1670 = vsel %vm30, %v1646, 0.0
  %v1671 = vadd.f32 %v1669, %v1670
  %v1672 = vsel %vm30, %v1647, 0.0
  %v1673 = vadd.f32 %v1671, %v1672
  %v1674 = vsel %vm30, %v1648, 0.0
  %v1675 = vadd.f32 %v1673, %v1674
  %v1676 = vsel %vm30, %v1649, 0.0
  %v1677 = vadd.f32 %v1675, %v1676
  %v1678 = vsel %vm30, %v1650, 0.0
  %v1679 = vadd.f32 %v1677, %v1678
  %v1680 = vsel %vm30, %v1651, 0.0
  %v1681 = vadd.f32 %v1679, %v1680
  %v1682 = vsel %vm30, %v1652, 0.0
  %v1683 = vadd.f32 %v1681, %v1682
  %v1684 = vrot.slane %v1683, 4
  %v1685 = vadd.f32 %v1683, %v1684
  %v1686 = vrot.slane %v1685, 2
  %v1687 = vadd.f32 %v1685, %v1686
  %v1688 = vrot.slane %v1687, 1
  %v1689 = vadd.f32 %v1687, %v1688
  %v1690 = vmul.f32 %v1689, %v1635
  %v1691 = vmul.f32 %v1636, %v1636
  %v1692 = vsub.f32 %v1690, %v1691
  %v1693 = vmax.f32 %v1692, 0.0
  %v1694 = vld [vmem:[%s4] sm:$0x1]
  %v1695 = vadd.f32 %v1693, 1e-05
  %v1696 = vrsqrt.pop %v1695
  %v1697 = vmul.f32 %v1694, %v1696
  %v1699 = vlaneseq
  %v1700 = vshrl.u32 %v1699, 7
  %v1701 = vsub.s32 0, %v1700
  %v1702 = vrot.slane %v1697, %v1701
  %v1704 = vmul.f32 %v1536, %v1702
  %v1705 = vmul.f32 %v1539, %v1702
  %v1706 = vmul.f32 %v1544, %v1702
  %v1707 = vmul.f32 %v1547, %v1702
  %v1708 = vmul.f32 %v1552, %v1702
  %v1709 = vmul.f32 %v1555, %v1702
  %v1710 = vmul.f32 %v1560, %v1702
  %v1711 = vmul.f32 %v1563, %v1702
  %v1712 = vmul.f32 %v1568, %v1702
  %v1713 = vmul.f32 %v1571, %v1702
  %v1714 = vmul.f32 %v1576, %v1702
  %v1715 = vmul.f32 %v1579, %v1702
  %v1716 = vmul.f32 %v1584, %v1702
  %v1717 = vmul.f32 %v1587, %v1702
  %v1718 = vmul.f32 %v1592, %v1702
  %v1719 = vmul.f32 %v1595, %v1702
  %v1720 = vld [vmem:[%s5] sm:$0x1]
  %v1721 = vmul.f32 %v1636, %v1697
  %v1722 = vsub.f32 %v1720, %v1721
  %v1724 = vlaneseq
  %v1725 = vshrl.u32 %v1724, 7
  %v1726 = vsub.s32 0, %v1725
  %v1727 = vrot.slane %v1722, %v1726
  %v1729 = vadd.f32 %v1704, %v1727
  %v1730 = vadd.f32 %v1705, %v1727
  %v1731 = vadd.f32 %v1706, %v1727
  %v1732 = vadd.f32 %v1707, %v1727
  %v1733 = vadd.f32 %v1708, %v1727
  %v1734 = vadd.f32 %v1709, %v1727
  %v1735 = vadd.f32 %v1710, %v1727
  %v1736 = vadd.f32 %v1711, %v1727
  %v1737 = vadd.f32 %v1712, %v1727
  %v1738 = vadd.f32 %v1713, %v1727
  %v1739 = vadd.f32 %v1714, %v1727
  %v1740 = vadd.f32 %v1715, %v1727
  %v1741 = vadd.f32 %v1716, %v1727
  %v1742 = vadd.f32 %v1717, %v1727
  %v1743 = vadd.f32 %v1718, %v1727
  %v1744 = vadd.f32 %v1719, %v1727
  %v1745 = vmax.f32 %v1729, 0.0
  %v1746 = vmax.f32 %v1730, 0.0
  %v1747 = vmax.f32 %v1731, 0.0
  %v1748 = vmax.f32 %v1732, 0.0
  %v1749 = vmax.f32 %v1733, 0.0
  %v1750 = vmax.f32 %v1734, 0.0
  %v1751 = vmax.f32 %v1735, 0.0
  %v1752 = vmax.f32 %v1736, 0.0
  %v1753 = vmax.f32 %v1737, 0.0
  %v1754 = vmax.f32 %v1738, 0.0
  %v1755 = vmax.f32 %v1739, 0.0
  %v1756 = vmax.f32 %v1740, 0.0
  %v1757 = vmax.f32 %v1741, 0.0
  %v1758 = vmax.f32 %v1742, 0.0
  %v1759 = vmax.f32 %v1743, 0.0
  %v1760 = vmax.f32 %v1744, 0.0
  %1761 = vst.msk [vmem:[#allocation2 + $0x8] sm:$0xff] %vm30, %v1745
  %1762 = vst.msk [vmem:[#allocation2 + $0x10] sm:$0xff] %vm30, %v1746
  %1763 = vst.msk [vmem:[#allocation2 + $0x18] sm:$0xff] %vm30, %v1747
  %1764 = vst.msk [vmem:[#allocation2 + $0x20] sm:$0xff] %vm30, %v1748
  %1765 = vst.msk [vmem:[#allocation2 + $0x28] sm:$0xff] %vm30, %v1749
  %1766 = vst.msk [vmem:[#allocation2 + $0x30] sm:$0xff] %vm30, %v1750
  %1767 = vst.msk [vmem:[#allocation2 + $0x38] sm:$0xff] %vm30, %v1751
  %1768 = vst.msk [vmem:[#allocation2 + $0x40] sm:$0xff] %vm30, %v1752
  %1769 = vst.msk [vmem:[#allocation2 + $0x48] sm:$0xff] %vm30, %v1753
  %1770 = vst.msk [vmem:[#allocation2 + $0x50] sm:$0xff] %vm30, %v1754
  %1771 = vst.msk [vmem:[#allocation2 + $0x58] sm:$0xff] %vm30, %v1755
  %1772 = vst.msk [vmem:[#allocation2 + $0x60] sm:$0xff] %vm30, %v1756
  %1773 = vst.msk [vmem:[#allocation2 + $0x68] sm:$0xff] %vm30, %v1757
  %1774 = vst.msk [vmem:[#allocation2 + $0x70] sm:$0xff] %vm30, %v1758
  %1775 = vst.msk [vmem:[#allocation2 + $0x78] sm:$0xff] %vm30, %v1759
  %1776 = vst.msk [vmem:[#allocation2 + $0x80] sm:$0xff] %vm30, %v1760
  %v1777 = vld [vmem:[#allocation2 + $0x3] sm:$0xff]
  %v1778 = vld [vmem:[#allocation2 + $0xb] sm:$0xff]
  %v1779 = vld [vmem:[#allocation2 + $0x13] sm:$0xff]
  %v1780 = vld [vmem:[#allocation2 + $0x1b] sm:$0xff]
  %v1781 = vld [vmem:[#allocation2 + $0x23] sm:$0xff]
  %v1782 = vld [vmem:[#allocation2 + $0x2b] sm:$0xff]
  %v1783 = vld [vmem:[#allocation2 + $0x33] sm:$0xff]
  %v1784 = vld [vmem:[#allocation2 + $0x3b] sm:$0xff]
  %v1785 = vld [vmem:[#allocation2 + $0x43] sm:$0xff]
  %v1786 = vld [vmem:[#allocation2 + $0x4b] sm:$0xff]
  %v1787 = vld [vmem:[#allocation2 + $0x53] sm:$0xff]
  %v1788 = vld [vmem:[#allocation2 + $0x5b] sm:$0xff]
  %v1789 = vld [vmem:[#allocation2 + $0x63] sm:$0xff]
  %v1790 = vld [vmem:[#allocation2 + $0x6b] sm:$0xff]
  %v1791 = vld [vmem:[#allocation2 + $0x73] sm:$0xff]
  %v1792 = vld [vmem:[#allocation2 + $0x7b] sm:$0xff]
  %v1793 = vld [vmem:[%s1] sm:$0xff]
  %v1794 = vld [vmem:[%s1 + $0x8] sm:$0xff]
  %v1795 = vld [vmem:[%s1 + $0x10] sm:$0xff]
  %v1796 = vld [vmem:[%s1 + $0x18] sm:$0xff]
  %v1797 = vld [vmem:[%s1 + $0x20] sm:$0xff]
  %v1798 = vld [vmem:[%s1 + $0x28] sm:$0xff]
  %v1799 = vld [vmem:[%s1 + $0x30] sm:$0xff]
  %v1800 = vld [vmem:[%s1 + $0x38] sm:$0xff]
  %v1801 = vld [vmem:[%s1 + $0x40] sm:$0xff]
  %v1802 = vld [vmem:[%s1 + $0x48] sm:$0xff]
  %v1803 = vld [vmem:[%s1 + $0x50] sm:$0xff]
  %v1804 = vld [vmem:[%s1 + $0x58] sm:$0xff]
  %v1805 = vld [vmem:[%s1 + $0x60] sm:$0xff]
  %v1806 = vld [vmem:[%s1 + $0x68] sm:$0xff]
  %v1807 = vld [vmem:[%s1 + $0x70] sm:$0xff]
  %v1808 = vld [vmem:[%s1 + $0x78] sm:$0xff]
  %v1809 = vmul.f32 %v1777, %v1793
  %v1810 = vmul.f32 %v1778, %v1794
  %v1811 = vmul.f32 %v1779, %v1795
  %v1812 = vmul.f32 %v1780, %v1796
  %v1813 = vmul.f32 %v1781, %v1797
  %v1814 = vmul.f32 %v1782, %v1798
  %v1815 = vmul.f32 %v1783, %v1799
  %v1816 = vmul.f32 %v1784, %v1800
  %v1817 = vmul.f32 %v1785, %v1801
  %v1818 = vmul.f32 %v1786, %v1802
  %v1819 = vmul.f32 %v1787, %v1803
  %v1820 = vmul.f32 %v1788, %v1804
  %v1821 = vmul.f32 %v1789, %v1805
  %v1822 = vmul.f32 %v1790, %v1806
  %v1823 = vmul.f32 %v1791, %v1807
  %v1824 = vmul.f32 %v1792, %v1808
  %v1825 = vpack.c.bf16 %v1810, %v1809
  %v1826 = vpack.c.bf16 %v1812, %v1811
  %v1827 = vpack.c.bf16 %v1814, %v1813
  %v1828 = vpack.c.bf16 %v1816, %v1815
  %v1829 = vpack.c.bf16 %v1818, %v1817
  %v1830 = vpack.c.bf16 %v1820, %v1819
  %v1831 = vpack.c.bf16 %v1822, %v1821
  %v1832 = vpack.c.bf16 %v1824, %v1823
  %v1833 = vld [vmem:[#allocation2 + $0x4] sm:$0xff]
  %v1834 = vld [vmem:[#allocation2 + $0xc] sm:$0xff]
  %v1835 = vld [vmem:[#allocation2 + $0x14] sm:$0xff]
  %v1836 = vld [vmem:[#allocation2 + $0x1c] sm:$0xff]
  %v1837 = vld [vmem:[#allocation2 + $0x24] sm:$0xff]
  %v1838 = vld [vmem:[#allocation2 + $0x2c] sm:$0xff]
  %v1839 = vld [vmem:[#allocation2 + $0x34] sm:$0xff]
  %v1840 = vld [vmem:[#allocation2 + $0x3c] sm:$0xff]
  %v1841 = vld [vmem:[#allocation2 + $0x44] sm:$0xff]
  %v1842 = vld [vmem:[#allocation2 + $0x4c] sm:$0xff]
  %v1843 = vld [vmem:[#allocation2 + $0x54] sm:$0xff]
  %v1844 = vld [vmem:[#allocation2 + $0x5c] sm:$0xff]
  %v1845 = vld [vmem:[#allocation2 + $0x64] sm:$0xff]
  %v1846 = vld [vmem:[#allocation2 + $0x6c] sm:$0xff]
  %v1847 = vld [vmem:[#allocation2 + $0x74] sm:$0xff]
  %v1848 = vld [vmem:[#allocation2 + $0x7c] sm:$0xff]
  %v1849 = vld [vmem:[%s105] sm:$0xff]
  %v1850 = vld [vmem:[%s105 + $0x8] sm:$0xff]
  %v1851 = vld [vmem:[%s105 + $0x10] sm:$0xff]
  %v1852 = vld [vmem:[%s105 + $0x18] sm:$0xff]
  %v1853 = vld [vmem:[%s105 + $0x20] sm:$0xff]
  %v1854 = vld [vmem:[%s105 + $0x28] sm:$0xff]
  %v1855 = vld [vmem:[%s105 + $0x30] sm:$0xff]
  %v1856 = vld [vmem:[%s105 + $0x38] sm:$0xff]
  %v1857 = vld [vmem:[%s105 + $0x40] sm:$0xff]
  %v1858 = vld [vmem:[%s105 + $0x48] sm:$0xff]
  %v1859 = vld [vmem:[%s105 + $0x50] sm:$0xff]
  %v1860 = vld [vmem:[%s105 + $0x58] sm:$0xff]
  %v1861 = vld [vmem:[%s105 + $0x60] sm:$0xff]
  %v1862 = vld [vmem:[%s105 + $0x68] sm:$0xff]
  %v1863 = vld [vmem:[%s105 + $0x70] sm:$0xff]
  %v1864 = vld [vmem:[%s105 + $0x78] sm:$0xff]
  %v1865 = vmul.f32 %v1833, %v1849
  %v1866 = vmul.f32 %v1834, %v1850
  %v1867 = vmul.f32 %v1835, %v1851
  %v1868 = vmul.f32 %v1836, %v1852
  %v1869 = vmul.f32 %v1837, %v1853
  %v1870 = vmul.f32 %v1838, %v1854
  %v1871 = vmul.f32 %v1839, %v1855
  %v1872 = vmul.f32 %v1840, %v1856
  %v1873 = vmul.f32 %v1841, %v1857
  %v1874 = vmul.f32 %v1842, %v1858
  %v1875 = vmul.f32 %v1843, %v1859
  %v1876 = vmul.f32 %v1844, %v1860
  %v1877 = vmul.f32 %v1845, %v1861
  %v1878 = vmul.f32 %v1846, %v1862
  %v1879 = vmul.f32 %v1847, %v1863
  %v1880 = vmul.f32 %v1848, %v1864
  %v1881 = vpack.c.bf16 %v1866, %v1865
  %v1882 = vpack.c.bf16 %v1868, %v1867
  %v1883 = vpack.c.bf16 %v1870, %v1869
  %v1884 = vpack.c.bf16 %v1872, %v1871
  %v1885 = vpack.c.bf16 %v1874, %v1873
  %v1886 = vpack.c.bf16 %v1876, %v1875
  %v1887 = vpack.c.bf16 %v1878, %v1877
  %v1888 = vpack.c.bf16 %v1880, %v1879
  %v1889 = vld [vmem:[#allocation2 + $0x5] sm:$0xff]
  %v1890 = vld [vmem:[#allocation2 + $0xd] sm:$0xff]
  %v1891 = vld [vmem:[#allocation2 + $0x15] sm:$0xff]
  %v1892 = vld [vmem:[#allocation2 + $0x1d] sm:$0xff]
  %v1893 = vld [vmem:[#allocation2 + $0x25] sm:$0xff]
  %v1894 = vld [vmem:[#allocation2 + $0x2d] sm:$0xff]
  %v1895 = vld [vmem:[#allocation2 + $0x35] sm:$0xff]
  %v1896 = vld [vmem:[#allocation2 + $0x3d] sm:$0xff]
  %v1897 = vld [vmem:[#allocation2 + $0x45] sm:$0xff]
  %v1898 = vld [vmem:[#allocation2 + $0x4d] sm:$0xff]
  %v1899 = vld [vmem:[#allocation2 + $0x55] sm:$0xff]
  %v1900 = vld [vmem:[#allocation2 + $0x5d] sm:$0xff]
  %v1901 = vld [vmem:[#allocation2 + $0x65] sm:$0xff]
  %v1902 = vld [vmem:[#allocation2 + $0x6d] sm:$0xff]
  %v1903 = vld [vmem:[#allocation2 + $0x75] sm:$0xff]
  %v1904 = vld [vmem:[#allocation2 + $0x7d] sm:$0xff]
  %v1905 = vld [vmem:[%s162] sm:$0xff]
  %v1906 = vld [vmem:[%s162 + $0x8] sm:$0xff]
  %v1907 = vld [vmem:[%s162 + $0x10] sm:$0xff]
  %v1908 = vld [vmem:[%s162 + $0x18] sm:$0xff]
  %v1909 = vld [vmem:[%s162 + $0x20] sm:$0xff]
  %v1910 = vld [vmem:[%s162 + $0x28] sm:$0xff]
  %v1911 = vld [vmem:[%s162 + $0x30] sm:$0xff]
  %v1912 = vld [vmem:[%s162 + $0x38] sm:$0xff]
  %v1913 = vld [vmem:[%s162 + $0x40] sm:$0xff]
  %v1914 = vld [vmem:[%s162 + $0x48] sm:$0xff]
  %v1915 = vld [vmem:[%s162 + $0x50] sm:$0xff]
  %v1916 = vld [vmem:[%s162 + $0x58] sm:$0xff]
  %v1917 = vld [vmem:[%s162 + $0x60] sm:$0xff]
  %v1918 = vld [vmem:[%s162 + $0x68] sm:$0xff]
  %v1919 = vld [vmem:[%s162 + $0x70] sm:$0xff]
  %v1920 = vld [vmem:[%s162 + $0x78] sm:$0xff]
  %v1921 = vmul.f32 %v1889, %v1905
  %v1922 = vmul.f32 %v1890, %v1906
  %v1923 = vmul.f32 %v1891, %v1907
  %v1924 = vmul.f32 %v1892, %v1908
  %v1925 = vmul.f32 %v1893, %v1909
  %v1926 = vmul.f32 %v1894, %v1910
  %v1927 = vmul.f32 %v1895, %v1911
  %v1928 = vmul.f32 %v1896, %v1912
  %v1929 = vmul.f32 %v1897, %v1913
  %v1930 = vmul.f32 %v1898, %v1914
  %v1931 = vmul.f32 %v1899, %v1915
  %v1932 = vmul.f32 %v1900, %v1916
  %v1933 = vmul.f32 %v1901, %v1917
  %v1934 = vmul.f32 %v1902, %v1918
  %v1935 = vmul.f32 %v1903, %v1919
  %v1936 = vmul.f32 %v1904, %v1920
  %v1937 = vpack.c.bf16 %v1922, %v1921
  %v1938 = vpack.c.bf16 %v1924, %v1923
  %v1939 = vpack.c.bf16 %v1926, %v1925
  %v1940 = vpack.c.bf16 %v1928, %v1927
  %v1941 = vpack.c.bf16 %v1930, %v1929
  %v1942 = vpack.c.bf16 %v1932, %v1931
  %v1943 = vpack.c.bf16 %v1934, %v1933
  %v1944 = vpack.c.bf16 %v1936, %v1935
  %v1945 = vld [vmem:[#allocation2 + $0x7] sm:$0xff]
  %v1946 = vld [vmem:[#allocation2 + $0xf] sm:$0xff]
  %v1947 = vld [vmem:[#allocation2 + $0x17] sm:$0xff]
  %v1948 = vld [vmem:[#allocation2 + $0x1f] sm:$0xff]
  %v1949 = vld [vmem:[#allocation2 + $0x27] sm:$0xff]
  %v1950 = vld [vmem:[#allocation2 + $0x2f] sm:$0xff]
  %v1951 = vld [vmem:[#allocation2 + $0x37] sm:$0xff]
  %v1952 = vld [vmem:[#allocation2 + $0x3f] sm:$0xff]
  %v1953 = vld [vmem:[#allocation2 + $0x47] sm:$0xff]
  %v1954 = vld [vmem:[#allocation2 + $0x4f] sm:$0xff]
  %v1955 = vld [vmem:[#allocation2 + $0x57] sm:$0xff]
  %v1956 = vld [vmem:[#allocation2 + $0x5f] sm:$0xff]
  %v1957 = vld [vmem:[#allocation2 + $0x67] sm:$0xff]
  %v1958 = vld [vmem:[#allocation2 + $0x6f] sm:$0xff]
  %v1959 = vld [vmem:[#allocation2 + $0x77] sm:$0xff]
  %v1960 = vld [vmem:[#allocation2 + $0x7f] sm:$0xff]
  %v1961 = vld [vmem:[%s219] sm:$0xff]
  %v1962 = vld [vmem:[%s219 + $0x8] sm:$0xff]
  %v1963 = vld [vmem:[%s219 + $0x10] sm:$0xff]
  %v1964 = vld [vmem:[%s219 + $0x18] sm:$0xff]
  %v1965 = vld [vmem:[%s219 + $0x20] sm:$0xff]
  %v1966 = vld [vmem:[%s219 + $0x28] sm:$0xff]
  %v1967 = vld [vmem:[%s219 + $0x30] sm:$0xff]
  %v1968 = vld [vmem:[%s219 + $0x38] sm:$0xff]
  %v1969 = vld [vmem:[%s219 + $0x40] sm:$0xff]
  %v1970 = vld [vmem:[%s219 + $0x48] sm:$0xff]
  %v1971 = vld [vmem:[%s219 + $0x50] sm:$0xff]
  %v1972 = vld [vmem:[%s219 + $0x58] sm:$0xff]
  %v1973 = vld [vmem:[%s219 + $0x60] sm:$0xff]
  %v1974 = vld [vmem:[%s219 + $0x68] sm:$0xff]
  %v1975 = vld [vmem:[%s219 + $0x70] sm:$0xff]
  %v1976 = vld [vmem:[%s219 + $0x78] sm:$0xff]
  %v1977 = vmul.f32 %v1945, %v1961
  %v1978 = vmul.f32 %v1946, %v1962
  %v1979 = vmul.f32 %v1947, %v1963
  %v1980 = vmul.f32 %v1948, %v1964
  %v1981 = vmul.f32 %v1949, %v1965
  %v1982 = vmul.f32 %v1950, %v1966
  %v1983 = vmul.f32 %v1951, %v1967
  %v1984 = vmul.f32 %v1952, %v1968
  %v1985 = vmul.f32 %v1953, %v1969
  %v1986 = vmul.f32 %v1954, %v1970
  %v1987 = vmul.f32 %v1955, %v1971
  %v1988 = vmul.f32 %v1956, %v1972
  %v1989 = vmul.f32 %v1957, %v1973
  %v1990 = vmul.f32 %v1958, %v1974
  %v1991 = vmul.f32 %v1959, %v1975
  %v1992 = vmul.f32 %v1960, %v1976
  %v1993 = vpack.c.bf16 %v1978, %v1977
  %v1994 = vpack.c.bf16 %v1980, %v1979
  %v1995 = vpack.c.bf16 %v1982, %v1981
  %v1996 = vpack.c.bf16 %v1984, %v1983
  %v1997 = vpack.c.bf16 %v1986, %v1985
  %v1998 = vpack.c.bf16 %v1988, %v1987
  %v1999 = vpack.c.bf16 %v1990, %v1989
  %v2000 = vpack.c.bf16 %v1992, %v1991
  %2009 = vrot.lane.b32.xlu0 %v1881, 32
  %v2010 = vpop.permute.xlu0 %2009
  %2011 = vrot.lane.b32.xlu0 %v1882, 32
  %v2012 = vpop.permute.xlu0 %2011
  %2013 = vrot.lane.b32.xlu0 %v1883, 32
  %v2014 = vpop.permute.xlu0 %2013
  %2015 = vrot.lane.b32.xlu0 %v1884, 32
  %v2016 = vpop.permute.xlu0 %2015
  %2017 = vrot.lane.b32.xlu0 %v1885, 32
  %v2018 = vpop.permute.xlu0 %2017
  %2019 = vrot.lane.b32.xlu0 %v1886, 32
  %v2020 = vpop.permute.xlu0 %2019
  %2021 = vrot.lane.b32.xlu0 %v1887, 32
  %v2022 = vpop.permute.xlu0 %2021
  %2023 = vrot.lane.b32.xlu0 %v1888, 32
  %v2024 = vpop.permute.xlu0 %2023
  %2033 = vrot.lane.b32.xlu0 %v1937, 64
  %v2034 = vpop.permute.xlu0 %2033
  %2035 = vrot.lane.b32.xlu0 %v1938, 64
  %v2036 = vpop.permute.xlu0 %2035
  %2037 = vrot.lane.b32.xlu0 %v1939, 64
  %v2038 = vpop.permute.xlu0 %2037
  %2039 = vrot.lane.b32.xlu0 %v1940, 64
  %v2040 = vpop.permute.xlu0 %2039
  %2041 = vrot.lane.b32.xlu0 %v1941, 64
  %v2042 = vpop.permute.xlu0 %2041
  %2043 = vrot.lane.b32.xlu0 %v1942, 64
  %v2044 = vpop.permute.xlu0 %2043
  %2045 = vrot.lane.b32.xlu0 %v1943, 64
  %v2046 = vpop.permute.xlu0 %2045
  %2047 = vrot.lane.b32.xlu0 %v1944, 64
  %v2048 = vpop.permute.xlu0 %2047
  %2057 = vrot.lane.b32.xlu0 %v1993, 96
  %v2058 = vpop.permute.xlu0 %2057
  %2059 = vrot.lane.b32.xlu0 %v1994, 96
  %v2060 = vpop.permute.xlu0 %2059
  %2061 = vrot.lane.b32.xlu0 %v1995, 96
  %v2062 = vpop.permute.xlu0 %2061
  %2063 = vrot.lane.b32.xlu0 %v1996, 96
  %v2064 = vpop.permute.xlu0 %2063
  %2065 = vrot.lane.b32.xlu0 %v1997, 96
  %v2066 = vpop.permute.xlu0 %2065
  %2067 = vrot.lane.b32.xlu0 %v1998, 96
  %v2068 = vpop.permute.xlu0 %2067
  %2069 = vrot.lane.b32.xlu0 %v1999, 96
  %v2070 = vpop.permute.xlu0 %2069
  %2071 = vrot.lane.b32.xlu0 %v2000, 96
  %v2072 = vpop.permute.xlu0 %2071
  %v2075 = vsel %vm30, %v1825, %v2010
  %v2078 = vsel %vm30, %v1826, %v2012
  %v2081 = vsel %vm30, %v1827, %v2014
  %v2084 = vsel %vm30, %v1828, %v2016
  %v2087 = vsel %vm30, %v1829, %v2018
  %v2090 = vsel %vm30, %v1830, %v2020
  %v2093 = vsel %vm30, %v1831, %v2022
  %v2096 = vsel %vm30, %v1832, %v2024
  %v2098 = vsel %vm356, %v2075, %v2034
  %v2100 = vsel %vm356, %v2078, %v2036
  %v2102 = vsel %vm356, %v2081, %v2038
  %v2104 = vsel %vm356, %v2084, %v2040
  %v2106 = vsel %vm356, %v2087, %v2042
  %v2108 = vsel %vm356, %v2090, %v2044
  %v2110 = vsel %vm356, %v2093, %v2046
  %v2112 = vsel %vm356, %v2096, %v2048
  %v2114 = vsel %vm373, %v2098, %v2058
  %v2116 = vsel %vm373, %v2100, %v2060
  %v2118 = vsel %vm373, %v2102, %v2062
  %v2120 = vsel %vm373, %v2104, %v2064
  %v2122 = vsel %vm373, %v2106, %v2066
  %v2124 = vsel %vm373, %v2108, %v2068
  %v2126 = vsel %vm373, %v2110, %v2070
  %v2128 = vsel %vm373, %v2112, %v2072
  %v2137 = vunpack.c.l.b16 %v2114
  %v2138 = vunpack.c.h.b16 %v2114
  %v2139 = vunpack.c.l.b16 %v2116
  %v2140 = vunpack.c.h.b16 %v2116
  %v2141 = vunpack.c.l.b16 %v2118
  %v2142 = vunpack.c.h.b16 %v2118
  %v2143 = vunpack.c.l.b16 %v2120
  %v2144 = vunpack.c.h.b16 %v2120
  %v2145 = vunpack.c.l.b16 %v2122
  %v2146 = vunpack.c.h.b16 %v2122
  %v2147 = vunpack.c.l.b16 %v2124
  %v2148 = vunpack.c.h.b16 %v2124
  %v2149 = vunpack.c.l.b16 %v2126
  %v2150 = vunpack.c.h.b16 %v2126
  %v2151 = vunpack.c.l.b16 %v2128
  %v2152 = vunpack.c.h.b16 %v2128
  %v2153 = vpack.c.b16 %v2137, %v2137
  %v2154 = vpack.c.b16 %v2138, %v2138
  %v2155 = vpack.c.b16 %v2139, %v2139
  %v2156 = vpack.c.b16 %v2140, %v2140
  %v2157 = vpack.c.b16 %v2141, %v2141
  %v2158 = vpack.c.b16 %v2142, %v2142
  %v2159 = vpack.c.b16 %v2143, %v2143
  %v2160 = vpack.c.b16 %v2144, %v2144
  %v2161 = vpack.c.b16 %v2145, %v2145
  %v2162 = vpack.c.b16 %v2146, %v2146
  %v2163 = vpack.c.b16 %v2147, %v2147
  %v2164 = vpack.c.b16 %v2148, %v2148
  %v2165 = vpack.c.b16 %v2149, %v2149
  %v2166 = vpack.c.b16 %v2150, %v2150
  %v2167 = vpack.c.b16 %v2151, %v2151
  %v2168 = vpack.c.b16 %v2152, %v2152
  %2185 = vst [vmem:[#allocation3] sm:$0xf] %v2153
  %2186 = vst [vmem:[#allocation3 + $0xc] sm:$0xf] %v2154
  %2187 = vst [vmem:[#allocation3 + $0x18] sm:$0xf] %v2155
  %2188 = vst [vmem:[#allocation3 + $0x24] sm:$0xf] %v2156
  %2189 = vst [vmem:[#allocation3 + $0x30] sm:$0xf] %v2157
  %2190 = vst [vmem:[#allocation3 + $0x3c] sm:$0xf] %v2158
  %2191 = vst [vmem:[#allocation3 + $0x48] sm:$0xf] %v2159
  %2192 = vst [vmem:[#allocation3 + $0x54] sm:$0xf] %v2160
  %2193 = vst [vmem:[#allocation3 + $0x60] sm:$0xf] %v2161
  %2194 = vst [vmem:[#allocation3 + $0x6c] sm:$0xf] %v2162
  %2195 = vst [vmem:[#allocation3 + $0x78] sm:$0xf] %v2163
  %2196 = vst [vmem:[#allocation3 + $0x84] sm:$0xf] %v2164
  %2197 = vst [vmem:[#allocation3 + $0x90] sm:$0xf] %v2165
  %2198 = vst [vmem:[#allocation3 + $0x9c] sm:$0xf] %v2166
  %2199 = vst [vmem:[#allocation3 + $0xa8] sm:$0xf] %v2167
  %2200 = vst [vmem:[#allocation3 + $0xb4] sm:$0xf] %v2168
  %v2201 = vld [vmem:[#allocation2 + $0x8] sm:$0xff]
  %v2202 = vld [vmem:[#allocation2 + $0x10] sm:$0xff]
  %v2203 = vld [vmem:[#allocation2 + $0x18] sm:$0xff]
  %v2204 = vld [vmem:[#allocation2 + $0x20] sm:$0xff]
  %v2205 = vld [vmem:[#allocation2 + $0x28] sm:$0xff]
  %v2206 = vld [vmem:[#allocation2 + $0x30] sm:$0xff]
  %v2207 = vld [vmem:[#allocation2 + $0x38] sm:$0xff]
  %v2208 = vld [vmem:[#allocation2 + $0x40] sm:$0xff]
  %v2209 = vld [vmem:[#allocation2 + $0x48] sm:$0xff]
  %v2210 = vld [vmem:[#allocation2 + $0x50] sm:$0xff]
  %v2211 = vld [vmem:[#allocation2 + $0x58] sm:$0xff]
  %v2212 = vld [vmem:[#allocation2 + $0x60] sm:$0xff]
  %v2213 = vld [vmem:[#allocation2 + $0x68] sm:$0xff]
  %v2214 = vld [vmem:[#allocation2 + $0x70] sm:$0xff]
  %v2215 = vld [vmem:[#allocation2 + $0x78] sm:$0xff]
  %v2216 = vld [vmem:[#allocation2 + $0x80] sm:$0xff]
  %v2217 = vld [vmem:[%s478] sm:$0xff]
  %v2218 = vld [vmem:[%s478 + $0x8] sm:$0xff]
  %v2219 = vld [vmem:[%s478 + $0x10] sm:$0xff]
  %v2220 = vld [vmem:[%s478 + $0x18] sm:$0xff]
  %v2221 = vld [vmem:[%s478 + $0x20] sm:$0xff]
  %v2222 = vld [vmem:[%s478 + $0x28] sm:$0xff]
  %v2223 = vld [vmem:[%s478 + $0x30] sm:$0xff]
  %v2224 = vld [vmem:[%s478 + $0x38] sm:$0xff]
  %v2225 = vld [vmem:[%s478 + $0x40] sm:$0xff]
  %v2226 = vld [vmem:[%s478 + $0x48] sm:$0xff]
  %v2227 = vld [vmem:[%s478 + $0x50] sm:$0xff]
  %v2228 = vld [vmem:[%s478 + $0x58] sm:$0xff]
  %v2229 = vld [vmem:[%s478 + $0x60] sm:$0xff]
  %v2230 = vld [vmem:[%s478 + $0x68] sm:$0xff]
  %v2231 = vld [vmem:[%s478 + $0x70] sm:$0xff]
  %v2232 = vld [vmem:[%s478 + $0x78] sm:$0xff]
  %v2233 = vmul.f32 %v2201, %v2217
  %v2234 = vmul.f32 %v2202, %v2218
  %v2235 = vmul.f32 %v2203, %v2219
  %v2236 = vmul.f32 %v2204, %v2220
  %v2237 = vmul.f32 %v2205, %v2221
  %v2238 = vmul.f32 %v2206, %v2222
  %v2239 = vmul.f32 %v2207, %v2223
  %v2240 = vmul.f32 %v2208, %v2224
  %v2241 = vmul.f32 %v2209, %v2225
  %v2242 = vmul.f32 %v2210, %v2226
  %v2243 = vmul.f32 %v2211, %v2227
  %v2244 = vmul.f32 %v2212, %v2228
  %v2245 = vmul.f32 %v2213, %v2229
  %v2246 = vmul.f32 %v2214, %v2230
  %v2247 = vmul.f32 %v2215, %v2231
  %v2248 = vmul.f32 %v2216, %v2232
  %v2249 = vpack.c.bf16 %v2234, %v2233
  %v2250 = vpack.c.bf16 %v2236, %v2235
  %v2251 = vpack.c.bf16 %v2238, %v2237
  %v2252 = vpack.c.bf16 %v2240, %v2239
  %v2253 = vpack.c.bf16 %v2242, %v2241
  %v2254 = vpack.c.bf16 %v2244, %v2243
  %v2255 = vpack.c.bf16 %v2246, %v2245
  %v2256 = vpack.c.bf16 %v2248, %v2247
  %v2257 = vld [vmem:[#allocation2 + $0x9] sm:$0xff]
  %v2258 = vld [vmem:[#allocation2 + $0x11] sm:$0xff]
  %v2259 = vld [vmem:[#allocation2 + $0x19] sm:$0xff]
  %v2260 = vld [vmem:[#allocation2 + $0x21] sm:$0xff]
  %v2261 = vld [vmem:[#allocation2 + $0x29] sm:$0xff]
  %v2262 = vld [vmem:[#allocation2 + $0x31] sm:$0xff]
  %v2263 = vld [vmem:[#allocation2 + $0x39] sm:$0xff]
  %v2264 = vld [vmem:[#allocation2 + $0x41] sm:$0xff]
  %v2265 = vld [vmem:[#allocation2 + $0x49] sm:$0xff]
  %v2266 = vld [vmem:[#allocation2 + $0x51] sm:$0xff]
  %v2267 = vld [vmem:[#allocation2 + $0x59] sm:$0xff]
  %v2268 = vld [vmem:[#allocation2 + $0x61] sm:$0xff]
  %v2269 = vld [vmem:[#allocation2 + $0x69] sm:$0xff]
  %v2270 = vld [vmem:[#allocation2 + $0x71] sm:$0xff]
  %v2271 = vld [vmem:[#allocation2 + $0x79] sm:$0xff]
  %v2272 = vld [vmem:[#allocation2 + $0x81] sm:$0xff]
  %v2273 = vld [vmem:[%s535] sm:$0xff]
  %v2274 = vld [vmem:[%s535 + $0x8] sm:$0xff]
  %v2275 = vld [vmem:[%s535 + $0x10] sm:$0xff]
  %v2276 = vld [vmem:[%s535 + $0x18] sm:$0xff]
  %v2277 = vld [vmem:[%s535 + $0x20] sm:$0xff]
  %v2278 = vld [vmem:[%s535 + $0x28] sm:$0xff]
  %v2279 = vld [vmem:[%s535 + $0x30] sm:$0xff]
  %v2280 = vld [vmem:[%s535 + $0x38] sm:$0xff]
  %v2281 = vld [vmem:[%s535 + $0x40] sm:$0xff]
  %v2282 = vld [vmem:[%s535 + $0x48] sm:$0xff]
  %v2283 = vld [vmem:[%s535 + $0x50] sm:$0xff]
  %v2284 = vld [vmem:[%s535 + $0x58] sm:$0xff]
  %v2285 = vld [vmem:[%s535 + $0x60] sm:$0xff]
  %v2286 = vld [vmem:[%s535 + $0x68] sm:$0xff]
  %v2287 = vld [vmem:[%s535 + $0x70] sm:$0xff]
  %v2288 = vld [vmem:[%s535 + $0x78] sm:$0xff]
  %v2289 = vmul.f32 %v2257, %v2273
  %v2290 = vmul.f32 %v2258, %v2274
  %v2291 = vmul.f32 %v2259, %v2275
  %v2292 = vmul.f32 %v2260, %v2276
  %v2293 = vmul.f32 %v2261, %v2277
  %v2294 = vmul.f32 %v2262, %v2278
  %v2295 = vmul.f32 %v2263, %v2279
  %v2296 = vmul.f32 %v2264, %v2280
  %v2297 = vmul.f32 %v2265, %v2281
  %v2298 = vmul.f32 %v2266, %v2282
  %v2299 = vmul.f32 %v2267, %v2283
  %v2300 = vmul.f32 %v2268, %v2284
  %v2301 = vmul.f32 %v2269, %v2285
  %v2302 = vmul.f32 %v2270, %v2286
  %v2303 = vmul.f32 %v2271, %v2287
  %v2304 = vmul.f32 %v2272, %v2288
  %v2305 = vpack.c.bf16 %v2290, %v2289
  %v2306 = vpack.c.bf16 %v2292, %v2291
  %v2307 = vpack.c.bf16 %v2294, %v2293
  %v2308 = vpack.c.bf16 %v2296, %v2295
  %v2309 = vpack.c.bf16 %v2298, %v2297
  %v2310 = vpack.c.bf16 %v2300, %v2299
  %v2311 = vpack.c.bf16 %v2302, %v2301
  %v2312 = vpack.c.bf16 %v2304, %v2303
  %v2313 = vld [vmem:[#allocation2 + $0xb] sm:$0xff]
  %v2314 = vld [vmem:[#allocation2 + $0x13] sm:$0xff]
  %v2315 = vld [vmem:[#allocation2 + $0x1b] sm:$0xff]
  %v2316 = vld [vmem:[#allocation2 + $0x23] sm:$0xff]
  %v2317 = vld [vmem:[#allocation2 + $0x2b] sm:$0xff]
  %v2318 = vld [vmem:[#allocation2 + $0x33] sm:$0xff]
  %v2319 = vld [vmem:[#allocation2 + $0x3b] sm:$0xff]
  %v2320 = vld [vmem:[#allocation2 + $0x43] sm:$0xff]
  %v2321 = vld [vmem:[#allocation2 + $0x4b] sm:$0xff]
  %v2322 = vld [vmem:[#allocation2 + $0x53] sm:$0xff]
  %v2323 = vld [vmem:[#allocation2 + $0x5b] sm:$0xff]
  %v2324 = vld [vmem:[#allocation2 + $0x63] sm:$0xff]
  %v2325 = vld [vmem:[#allocation2 + $0x6b] sm:$0xff]
  %v2326 = vld [vmem:[#allocation2 + $0x73] sm:$0xff]
  %v2327 = vld [vmem:[#allocation2 + $0x7b] sm:$0xff]
  %v2328 = vld [vmem:[#allocation2 + $0x83] sm:$0xff]
  %v2329 = vld [vmem:[%s592] sm:$0xff]
  %v2330 = vld [vmem:[%s592 + $0x8] sm:$0xff]
  %v2331 = vld [vmem:[%s592 + $0x10] sm:$0xff]
  %v2332 = vld [vmem:[%s592 + $0x18] sm:$0xff]
  %v2333 = vld [vmem:[%s592 + $0x20] sm:$0xff]
  %v2334 = vld [vmem:[%s592 + $0x28] sm:$0xff]
  %v2335 = vld [vmem:[%s592 + $0x30] sm:$0xff]
  %v2336 = vld [vmem:[%s592 + $0x38] sm:$0xff]
  %v2337 = vld [vmem:[%s592 + $0x40] sm:$0xff]
  %v2338 = vld [vmem:[%s592 + $0x48] sm:$0xff]
  %v2339 = vld [vmem:[%s592 + $0x50] sm:$0xff]
  %v2340 = vld [vmem:[%s592 + $0x58] sm:$0xff]
  %v2341 = vld [vmem:[%s592 + $0x60] sm:$0xff]
  %v2342 = vld [vmem:[%s592 + $0x68] sm:$0xff]
  %v2343 = vld [vmem:[%s592 + $0x70] sm:$0xff]
  %v2344 = vld [vmem:[%s592 + $0x78] sm:$0xff]
  %v2345 = vmul.f32 %v2313, %v2329
  %v2346 = vmul.f32 %v2314, %v2330
  %v2347 = vmul.f32 %v2315, %v2331
  %v2348 = vmul.f32 %v2316, %v2332
  %v2349 = vmul.f32 %v2317, %v2333
  %v2350 = vmul.f32 %v2318, %v2334
  %v2351 = vmul.f32 %v2319, %v2335
  %v2352 = vmul.f32 %v2320, %v2336
  %v2353 = vmul.f32 %v2321, %v2337
  %v2354 = vmul.f32 %v2322, %v2338
  %v2355 = vmul.f32 %v2323, %v2339
  %v2356 = vmul.f32 %v2324, %v2340
  %v2357 = vmul.f32 %v2325, %v2341
  %v2358 = vmul.f32 %v2326, %v2342
  %v2359 = vmul.f32 %v2327, %v2343
  %v2360 = vmul.f32 %v2328, %v2344
  %v2361 = vpack.c.bf16 %v2346, %v2345
  %v2362 = vpack.c.bf16 %v2348, %v2347
  %v2363 = vpack.c.bf16 %v2350, %v2349
  %v2364 = vpack.c.bf16 %v2352, %v2351
  %v2365 = vpack.c.bf16 %v2354, %v2353
  %v2366 = vpack.c.bf16 %v2356, %v2355
  %v2367 = vpack.c.bf16 %v2358, %v2357
  %v2368 = vpack.c.bf16 %v2360, %v2359
  %v2369 = vld [vmem:[#allocation2 + $0xc] sm:$0xff]
  %v2370 = vld [vmem:[#allocation2 + $0x14] sm:$0xff]
  %v2371 = vld [vmem:[#allocation2 + $0x1c] sm:$0xff]
  %v2372 = vld [vmem:[#allocation2 + $0x24] sm:$0xff]
  %v2373 = vld [vmem:[#allocation2 + $0x2c] sm:$0xff]
  %v2374 = vld [vmem:[#allocation2 + $0x34] sm:$0xff]
  %v2375 = vld [vmem:[#allocation2 + $0x3c] sm:$0xff]
  %v2376 = vld [vmem:[#allocation2 + $0x44] sm:$0xff]
  %v2377 = vld [vmem:[#allocation2 + $0x4c] sm:$0xff]
  %v2378 = vld [vmem:[#allocation2 + $0x54] sm:$0xff]
  %v2379 = vld [vmem:[#allocation2 + $0x5c] sm:$0xff]
  %v2380 = vld [vmem:[#allocation2 + $0x64] sm:$0xff]
  %v2381 = vld [vmem:[#allocation2 + $0x6c] sm:$0xff]
  %v2382 = vld [vmem:[#allocation2 + $0x74] sm:$0xff]
  %v2383 = vld [vmem:[#allocation2 + $0x7c] sm:$0xff]
  %v2384 = vld [vmem:[#allocation2 + $0x84] sm:$0xff]
  %v2385 = vld [vmem:[%s649] sm:$0xff]
  %v2386 = vld [vmem:[%s649 + $0x8] sm:$0xff]
  %v2387 = vld [vmem:[%s649 + $0x10] sm:$0xff]
  %v2388 = vld [vmem:[%s649 + $0x18] sm:$0xff]
  %v2389 = vld [vmem:[%s649 + $0x20] sm:$0xff]
  %v2390 = vld [vmem:[%s649 + $0x28] sm:$0xff]
  %v2391 = vld [vmem:[%s649 + $0x30] sm:$0xff]
  %v2392 = vld [vmem:[%s649 + $0x38] sm:$0xff]
  %v2393 = vld [vmem:[%s649 + $0x40] sm:$0xff]
  %v2394 = vld [vmem:[%s649 + $0x48] sm:$0xff]
  %v2395 = vld [vmem:[%s649 + $0x50] sm:$0xff]
  %v2396 = vld [vmem:[%s649 + $0x58] sm:$0xff]
  %v2397 = vld [vmem:[%s649 + $0x60] sm:$0xff]
  %v2398 = vld [vmem:[%s649 + $0x68] sm:$0xff]
  %v2399 = vld [vmem:[%s649 + $0x70] sm:$0xff]
  %v2400 = vld [vmem:[%s649 + $0x78] sm:$0xff]
  %v2401 = vmul.f32 %v2369, %v2385
  %v2402 = vmul.f32 %v2370, %v2386
  %v2403 = vmul.f32 %v2371, %v2387
  %v2404 = vmul.f32 %v2372, %v2388
  %v2405 = vmul.f32 %v2373, %v2389
  %v2406 = vmul.f32 %v2374, %v2390
  %v2407 = vmul.f32 %v2375, %v2391
  %v2408 = vmul.f32 %v2376, %v2392
  %v2409 = vmul.f32 %v2377, %v2393
  %v2410 = vmul.f32 %v2378, %v2394
  %v2411 = vmul.f32 %v2379, %v2395
  %v2412 = vmul.f32 %v2380, %v2396
  %v2413 = vmul.f32 %v2381, %v2397
  %v2414 = vmul.f32 %v2382, %v2398
  %v2415 = vmul.f32 %v2383, %v2399
  %v2416 = vmul.f32 %v2384, %v2400
  %v2417 = vpack.c.bf16 %v2402, %v2401
  %v2418 = vpack.c.bf16 %v2404, %v2403
  %v2419 = vpack.c.bf16 %v2406, %v2405
  %v2420 = vpack.c.bf16 %v2408, %v2407
  %v2421 = vpack.c.bf16 %v2410, %v2409
  %v2422 = vpack.c.bf16 %v2412, %v2411
  %v2423 = vpack.c.bf16 %v2414, %v2413
  %v2424 = vpack.c.bf16 %v2416, %v2415
  %2433 = vrot.lane.b32.xlu0 %v2305, 32
  %v2434 = vpop.permute.xlu0 %2433
  %2435 = vrot.lane.b32.xlu0 %v2306, 32
  %v2436 = vpop.permute.xlu0 %2435
  %2437 = vrot.lane.b32.xlu0 %v2307, 32
  %v2438 = vpop.permute.xlu0 %2437
  %2439 = vrot.lane.b32.xlu0 %v2308, 32
  %v2440 = vpop.permute.xlu0 %2439
  %2441 = vrot.lane.b32.xlu0 %v2309, 32
  %v2442 = vpop.permute.xlu0 %2441
  %2443 = vrot.lane.b32.xlu0 %v2310, 32
  %v2444 = vpop.permute.xlu0 %2443
  %2445 = vrot.lane.b32.xlu0 %v2311, 32
  %v2446 = vpop.permute.xlu0 %2445
  %2447 = vrot.lane.b32.xlu0 %v2312, 32
  %v2448 = vpop.permute.xlu0 %2447
  %2457 = vrot.lane.b32.xlu0 %v2361, 64
  %v2458 = vpop.permute.xlu0 %2457
  %2459 = vrot.lane.b32.xlu0 %v2362, 64
  %v2460 = vpop.permute.xlu0 %2459
  %2461 = vrot.lane.b32.xlu0 %v2363, 64
  %v2462 = vpop.permute.xlu0 %2461
  %2463 = vrot.lane.b32.xlu0 %v2364, 64
  %v2464 = vpop.permute.xlu0 %2463
  %2465 = vrot.lane.b32.xlu0 %v2365, 64
  %v2466 = vpop.permute.xlu0 %2465
  %2467 = vrot.lane.b32.xlu0 %v2366, 64
  %v2468 = vpop.permute.xlu0 %2467
  %2469 = vrot.lane.b32.xlu0 %v2367, 64
  %v2470 = vpop.permute.xlu0 %2469
  %2471 = vrot.lane.b32.xlu0 %v2368, 64
  %v2472 = vpop.permute.xlu0 %2471
  %2481 = vrot.lane.b32.xlu0 %v2417, 96
  %v2482 = vpop.permute.xlu0 %2481
  %2483 = vrot.lane.b32.xlu0 %v2418, 96
  %v2484 = vpop.permute.xlu0 %2483
  %2485 = vrot.lane.b32.xlu0 %v2419, 96
  %v2486 = vpop.permute.xlu0 %2485
  %2487 = vrot.lane.b32.xlu0 %v2420, 96
  %v2488 = vpop.permute.xlu0 %2487
  %2489 = vrot.lane.b32.xlu0 %v2421, 96
  %v2490 = vpop.permute.xlu0 %2489
  %2491 = vrot.lane.b32.xlu0 %v2422, 96
  %v2492 = vpop.permute.xlu0 %2491
  %2493 = vrot.lane.b32.xlu0 %v2423, 96
  %v2494 = vpop.permute.xlu0 %2493
  %2495 = vrot.lane.b32.xlu0 %v2424, 96
  %v2496 = vpop.permute.xlu0 %2495
  %v2499 = vsel %vm30, %v2249, %v2434
  %v2502 = vsel %vm30, %v2250, %v2436
  %v2505 = vsel %vm30, %v2251, %v2438
  %v2508 = vsel %vm30, %v2252, %v2440
  %v2511 = vsel %vm30, %v2253, %v2442
  %v2514 = vsel %vm30, %v2254, %v2444
  %v2517 = vsel %vm30, %v2255, %v2446
  %v2520 = vsel %vm30, %v2256, %v2448
  %v2522 = vsel %vm356, %v2499, %v2458
  %v2524 = vsel %vm356, %v2502, %v2460
  %v2526 = vsel %vm356, %v2505, %v2462
  %v2528 = vsel %vm356, %v2508, %v2464
  %v2530 = vsel %vm356, %v2511, %v2466
  %v2532 = vsel %vm356, %v2514, %v2468
  %v2534 = vsel %vm356, %v2517, %v2470
  %v2536 = vsel %vm356, %v2520, %v2472
  %v2538 = vsel %vm373, %v2522, %v2482
  %v2540 = vsel %vm373, %v2524, %v2484
  %v2542 = vsel %vm373, %v2526, %v2486
  %v2544 = vsel %vm373, %v2528, %v2488
  %v2546 = vsel %vm373, %v2530, %v2490
  %v2548 = vsel %vm373, %v2532, %v2492
  %v2550 = vsel %vm373, %v2534, %v2494
  %v2552 = vsel %vm373, %v2536, %v2496
  %v2561 = vunpack.c.l.b16 %v2538
  %v2562 = vunpack.c.h.b16 %v2538
  %v2563 = vunpack.c.l.b16 %v2540
  %v2564 = vunpack.c.h.b16 %v2540
  %v2565 = vunpack.c.l.b16 %v2542
  %v2566 = vunpack.c.h.b16 %v2542
  %v2567 = vunpack.c.l.b16 %v2544
  %v2568 = vunpack.c.h.b16 %v2544
  %v2569 = vunpack.c.l.b16 %v2546
  %v2570 = vunpack.c.h.b16 %v2546
  %v2571 = vunpack.c.l.b16 %v2548
  %v2572 = vunpack.c.h.b16 %v2548
  %v2573 = vunpack.c.l.b16 %v2550
  %v2574 = vunpack.c.h.b16 %v2550
  %v2575 = vunpack.c.l.b16 %v2552
  %v2576 = vunpack.c.h.b16 %v2552
  %v2577 = vpack.c.b16 %v2561, %v2561
  %v2578 = vpack.c.b16 %v2562, %v2562
  %v2579 = vpack.c.b16 %v2563, %v2563
  %v2580 = vpack.c.b16 %v2564, %v2564
  %v2581 = vpack.c.b16 %v2565, %v2565
  %v2582 = vpack.c.b16 %v2566, %v2566
  %v2583 = vpack.c.b16 %v2567, %v2567
  %v2584 = vpack.c.b16 %v2568, %v2568
  %v2585 = vpack.c.b16 %v2569, %v2569
  %v2586 = vpack.c.b16 %v2570, %v2570
  %v2587 = vpack.c.b16 %v2571, %v2571
  %v2588 = vpack.c.b16 %v2572, %v2572
  %v2589 = vpack.c.b16 %v2573, %v2573
  %v2590 = vpack.c.b16 %v2574, %v2574
  %v2591 = vpack.c.b16 %v2575, %v2575
  %v2592 = vpack.c.b16 %v2576, %v2576
  %2609 = vst [vmem:[#allocation3 + $0x4] sm:$0xf] %v2577
  %2610 = vst [vmem:[#allocation3 + $0x10] sm:$0xf] %v2578
  %2611 = vst [vmem:[#allocation3 + $0x1c] sm:$0xf] %v2579
  %2612 = vst [vmem:[#allocation3 + $0x28] sm:$0xf] %v2580
  %2613 = vst [vmem:[#allocation3 + $0x34] sm:$0xf] %v2581
  %2614 = vst [vmem:[#allocation3 + $0x40] sm:$0xf] %v2582
  %2615 = vst [vmem:[#allocation3 + $0x4c] sm:$0xf] %v2583
  %2616 = vst [vmem:[#allocation3 + $0x58] sm:$0xf] %v2584
  %2617 = vst [vmem:[#allocation3 + $0x64] sm:$0xf] %v2585
  %2618 = vst [vmem:[#allocation3 + $0x70] sm:$0xf] %v2586
  %2619 = vst [vmem:[#allocation3 + $0x7c] sm:$0xf] %v2587
  %2620 = vst [vmem:[#allocation3 + $0x88] sm:$0xf] %v2588
  %2621 = vst [vmem:[#allocation3 + $0x94] sm:$0xf] %v2589
  %2622 = vst [vmem:[#allocation3 + $0xa0] sm:$0xf] %v2590
  %2623 = vst [vmem:[#allocation3 + $0xac] sm:$0xf] %v2591
  %2624 = vst [vmem:[#allocation3 + $0xb8] sm:$0xf] %v2592
  %v2625 = vld [vmem:[#allocation2 + $0xd] sm:$0xff]
  %v2626 = vld [vmem:[#allocation2 + $0x15] sm:$0xff]
  %v2627 = vld [vmem:[#allocation2 + $0x1d] sm:$0xff]
  %v2628 = vld [vmem:[#allocation2 + $0x25] sm:$0xff]
  %v2629 = vld [vmem:[#allocation2 + $0x2d] sm:$0xff]
  %v2630 = vld [vmem:[#allocation2 + $0x35] sm:$0xff]
  %v2631 = vld [vmem:[#allocation2 + $0x3d] sm:$0xff]
  %v2632 = vld [vmem:[#allocation2 + $0x45] sm:$0xff]
  %v2633 = vld [vmem:[#allocation2 + $0x4d] sm:$0xff]
  %v2634 = vld [vmem:[#allocation2 + $0x55] sm:$0xff]
  %v2635 = vld [vmem:[#allocation2 + $0x5d] sm:$0xff]
  %v2636 = vld [vmem:[#allocation2 + $0x65] sm:$0xff]
  %v2637 = vld [vmem:[#allocation2 + $0x6d] sm:$0xff]
  %v2638 = vld [vmem:[#allocation2 + $0x75] sm:$0xff]
  %v2639 = vld [vmem:[#allocation2 + $0x7d] sm:$0xff]
  %v2640 = vld [vmem:[#allocation2 + $0x85] sm:$0xff]
  %v2641 = vld [vmem:[%s906] sm:$0xff]
  %v2642 = vld [vmem:[%s906 + $0x8] sm:$0xff]
  %v2643 = vld [vmem:[%s906 + $0x10] sm:$0xff]
  %v2644 = vld [vmem:[%s906 + $0x18] sm:$0xff]
  %v2645 = vld [vmem:[%s906 + $0x20] sm:$0xff]
  %v2646 = vld [vmem:[%s906 + $0x28] sm:$0xff]
  %v2647 = vld [vmem:[%s906 + $0x30] sm:$0xff]
  %v2648 = vld [vmem:[%s906 + $0x38] sm:$0xff]
  %v2649 = vld [vmem:[%s906 + $0x40] sm:$0xff]
  %v2650 = vld [vmem:[%s906 + $0x48] sm:$0xff]
  %v2651 = vld [vmem:[%s906 + $0x50] sm:$0xff]
  %v2652 = vld [vmem:[%s906 + $0x58] sm:$0xff]
  %v2653 = vld [vmem:[%s906 + $0x60] sm:$0xff]
  %v2654 = vld [vmem:[%s906 + $0x68] sm:$0xff]
  %v2655 = vld [vmem:[%s906 + $0x70] sm:$0xff]
  %v2656 = vld [vmem:[%s906 + $0x78] sm:$0xff]
  %v2657 = vmul.f32 %v2625, %v2641
  %v2658 = vmul.f32 %v2626, %v2642
  %v2659 = vmul.f32 %v2627, %v2643
  %v2660 = vmul.f32 %v2628, %v2644
  %v2661 = vmul.f32 %v2629, %v2645
  %v2662 = vmul.f32 %v2630, %v2646
  %v2663 = vmul.f32 %v2631, %v2647
  %v2664 = vmul.f32 %v2632, %v2648
  %v2665 = vmul.f32 %v2633, %v2649
  %v2666 = vmul.f32 %v2634, %v2650
  %v2667 = vmul.f32 %v2635, %v2651
  %v2668 = vmul.f32 %v2636, %v2652
  %v2669 = vmul.f32 %v2637, %v2653
  %v2670 = vmul.f32 %v2638, %v2654
  %v2671 = vmul.f32 %v2639, %v2655
  %v2672 = vmul.f32 %v2640, %v2656
  %v2673 = vpack.c.bf16 %v2658, %v2657
  %v2674 = vpack.c.bf16 %v2660, %v2659
  %v2675 = vpack.c.bf16 %v2662, %v2661
  %v2676 = vpack.c.bf16 %v2664, %v2663
  %v2677 = vpack.c.bf16 %v2666, %v2665
  %v2678 = vpack.c.bf16 %v2668, %v2667
  %v2679 = vpack.c.bf16 %v2670, %v2669
  %v2680 = vpack.c.bf16 %v2672, %v2671
  %v2682 = vsel %vm30, %v2673, 0
  %v2684 = vsel %vm30, %v2674, 0
  %v2686 = vsel %vm30, %v2675, 0
  %v2688 = vsel %vm30, %v2676, 0
  %v2690 = vsel %vm30, %v2677, 0
  %v2692 = vsel %vm30, %v2678, 0
  %v2694 = vsel %vm30, %v2679, 0
  %v2696 = vsel %vm30, %v2680, 0
  %v2697 = vsel %vm356, %v2682, 0
  %v2698 = vsel %vm356, %v2684, 0
  %v2699 = vsel %vm356, %v2686, 0
  %v2700 = vsel %vm356, %v2688, 0
  %v2701 = vsel %vm356, %v2690, 0
  %v2702 = vsel %vm356, %v2692, 0
  %v2703 = vsel %vm356, %v2694, 0
  %v2704 = vsel %vm356, %v2696, 0
  %v2705 = vsel %vm373, %v2697, 0
  %v2706 = vsel %vm373, %v2698, 0
  %v2707 = vsel %vm373, %v2699, 0
  %v2708 = vsel %vm373, %v2700, 0
  %v2709 = vsel %vm373, %v2701, 0
  %v2710 = vsel %vm373, %v2702, 0
  %v2711 = vsel %vm373, %v2703, 0
  %v2712 = vsel %vm373, %v2704, 0
  %v2721 = vunpack.c.l.b16 %v2705
  %v2722 = vunpack.c.h.b16 %v2705
  %v2723 = vunpack.c.l.b16 %v2706
  %v2724 = vunpack.c.h.b16 %v2706
  %v2725 = vunpack.c.l.b16 %v2707
  %v2726 = vunpack.c.h.b16 %v2707
  %v2727 = vunpack.c.l.b16 %v2708
  %v2728 = vunpack.c.h.b16 %v2708
  %v2729 = vunpack.c.l.b16 %v2709
  %v2730 = vunpack.c.h.b16 %v2709
  %v2731 = vunpack.c.l.b16 %v2710
  %v2732 = vunpack.c.h.b16 %v2710
  %v2733 = vunpack.c.l.b16 %v2711
  %v2734 = vunpack.c.h.b16 %v2711
  %v2735 = vunpack.c.l.b16 %v2712
  %v2736 = vunpack.c.h.b16 %v2712
  %v2737 = vpack.c.b16 %v2721, %v2721
  %v2738 = vpack.c.b16 %v2722, %v2722
  %v2739 = vpack.c.b16 %v2723, %v2723
  %v2740 = vpack.c.b16 %v2724, %v2724
  %v2741 = vpack.c.b16 %v2725, %v2725
  %v2742 = vpack.c.b16 %v2726, %v2726
  %v2743 = vpack.c.b16 %v2727, %v2727
  %v2744 = vpack.c.b16 %v2728, %v2728
  %v2745 = vpack.c.b16 %v2729, %v2729
  %v2746 = vpack.c.b16 %v2730, %v2730
  %v2747 = vpack.c.b16 %v2731, %v2731
  %v2748 = vpack.c.b16 %v2732, %v2732
  %v2749 = vpack.c.b16 %v2733, %v2733
  %v2750 = vpack.c.b16 %v2734, %v2734
  %v2751 = vpack.c.b16 %v2735, %v2735
  %v2752 = vpack.c.b16 %v2736, %v2736
  %2769 = vst [vmem:[#allocation3 + $0x8] sm:$0xf] %v2737
  %2770 = vst [vmem:[#allocation3 + $0x14] sm:$0xf] %v2738
  %2771 = vst [vmem:[#allocation3 + $0x20] sm:$0xf] %v2739
  %2772 = vst [vmem:[#allocation3 + $0x2c] sm:$0xf] %v2740
  %2773 = vst [vmem:[#allocation3 + $0x38] sm:$0xf] %v2741
  %2774 = vst [vmem:[#allocation3 + $0x44] sm:$0xf] %v2742
  %2775 = vst [vmem:[#allocation3 + $0x50] sm:$0xf] %v2743
  %2776 = vst [vmem:[#allocation3 + $0x5c] sm:$0xf] %v2744
  %2777 = vst [vmem:[#allocation3 + $0x68] sm:$0xf] %v2745
  %2778 = vst [vmem:[#allocation3 + $0x74] sm:$0xf] %v2746
  %2779 = vst [vmem:[#allocation3 + $0x80] sm:$0xf] %v2747
  %2780 = vst [vmem:[#allocation3 + $0x8c] sm:$0xf] %v2748
  %2781 = vst [vmem:[#allocation3 + $0x98] sm:$0xf] %v2749
  %2782 = vst [vmem:[#allocation3 + $0xa4] sm:$0xf] %v2750
  %2783 = vst [vmem:[#allocation3 + $0xb0] sm:$0xf] %v2751
  %2784 = vst [vmem:[#allocation3 + $0xbc] sm:$0xf] %v2752
  %v2785 = vld [vmem:[#allocation3] sm:$0xff]
  %v2786 = vld [vmem:[#allocation3 + $0x8] sm:$0xf]
  %v2787 = vld [vmem:[#allocation3 + $0xc] sm:$0xff]
  %v2788 = vld [vmem:[#allocation3 + $0x14] sm:$0xf]
  %v2789 = vld [vmem:[#allocation3 + $0x18] sm:$0xff]
  %v2790 = vld [vmem:[#allocation3 + $0x20] sm:$0xf]
  %v2791 = vld [vmem:[#allocation3 + $0x24] sm:$0xff]
  %v2792 = vld [vmem:[#allocation3 + $0x2c] sm:$0xf]
  %v2793 = vld [vmem:[#allocation3 + $0x30] sm:$0xff]
  %v2794 = vld [vmem:[#allocation3 + $0x38] sm:$0xf]
  %v2795 = vld [vmem:[#allocation3 + $0x3c] sm:$0xff]
  %v2796 = vld [vmem:[#allocation3 + $0x44] sm:$0xf]
  %v2797 = vld [vmem:[#allocation3 + $0x48] sm:$0xff]
  %v2798 = vld [vmem:[#allocation3 + $0x50] sm:$0xf]
  %v2799 = vld [vmem:[#allocation3 + $0x54] sm:$0xff]
  %v2800 = vld [vmem:[#allocation3 + $0x5c] sm:$0xf]
  %v2801 = vld [vmem:[#allocation3 + $0x60] sm:$0xff]
  %v2802 = vld [vmem:[#allocation3 + $0x68] sm:$0xf]
  %v2803 = vld [vmem:[#allocation3 + $0x6c] sm:$0xff]
  %v2804 = vld [vmem:[#allocation3 + $0x74] sm:$0xf]
  %v2805 = vld [vmem:[#allocation3 + $0x78] sm:$0xff]
  %v2806 = vld [vmem:[#allocation3 + $0x80] sm:$0xf]
  %v2807 = vld [vmem:[#allocation3 + $0x84] sm:$0xff]
  %v2808 = vld [vmem:[#allocation3 + $0x8c] sm:$0xf]
  %v2809 = vld [vmem:[#allocation3 + $0x90] sm:$0xff]
  %v2810 = vld [vmem:[#allocation3 + $0x98] sm:$0xf]
  %v2811 = vld [vmem:[#allocation3 + $0x9c] sm:$0xff]
  %v2812 = vld [vmem:[#allocation3 + $0xa4] sm:$0xf]
  %v2813 = vld [vmem:[#allocation3 + $0xa8] sm:$0xff]
  %v2814 = vld [vmem:[#allocation3 + $0xb0] sm:$0xf]
  %v2815 = vld [vmem:[#allocation3 + $0xb4] sm:$0xff]
  %v2816 = vld [vmem:[#allocation3 + $0xbc] sm:$0xf]
  %s2817 = scalar_lea.vmem %s2, 192
  %v2818 = vld [vmem:[%s2817] sm:$0xf]
  %v2819 = vld [vmem:[%s2817 + $0x4] sm:$0xf]
  %v2820 = vld [vmem:[%s2817 + $0x8] sm:$0xf]
  %v2821 = vld [vmem:[%s2817 + $0xc] sm:$0xf]
  %v2822 = vld [vmem:[%s2817 + $0x10] sm:$0xf]
  %v2823 = vld [vmem:[%s2817 + $0x14] sm:$0xf]
  %v2824 = vld [vmem:[%s2817 + $0x18] sm:$0xf]
  %v2825 = vld [vmem:[%s2817 + $0x1c] sm:$0xf]
  %v2826 = vld [vmem:[%s2817 + $0x20] sm:$0xf]
  %v2827 = vld [vmem:[%s2817 + $0x24] sm:$0xf]
  %v2828 = vld [vmem:[%s2817 + $0x28] sm:$0xf]
  %v2829 = vld [vmem:[%s2817 + $0x2c] sm:$0xf]
  %v2830 = vld [vmem:[%s2817 + $0x30] sm:$0xf]
  %v2831 = vld [vmem:[%s2817 + $0x34] sm:$0xf]
  %v2832 = vld [vmem:[%s2817 + $0x38] sm:$0xf]
  %v2833 = vld [vmem:[%s2817 + $0x3c] sm:$0xf]
  %v2834 = vld [vmem:[%s2817 + $0x40] sm:$0xf]
  %v2835 = vld [vmem:[%s2817 + $0x44] sm:$0xf]
  %v2836 = vld [vmem:[%s2817 + $0x48] sm:$0xf]
  %v2837 = vld [vmem:[%s2817 + $0x4c] sm:$0xf]
  %v2838 = vld [vmem:[%s2817 + $0x50] sm:$0xf]
  %v2839 = vld [vmem:[%s2817 + $0x54] sm:$0xf]
  %v2840 = vld [vmem:[%s2817 + $0x58] sm:$0xf]
  %v2841 = vld [vmem:[%s2817 + $0x5c] sm:$0xf]
  %v2842 = vld [vmem:[%s2817 + $0x60] sm:$0xf]
  %v2843 = vld [vmem:[%s2817 + $0x64] sm:$0xf]
  %v2844 = vld [vmem:[%s2817 + $0x68] sm:$0xf]
  %v2845 = vld [vmem:[%s2817 + $0x6c] sm:$0xf]
  %v2846 = vld [vmem:[%s2817 + $0x70] sm:$0xf]
  %v2847 = vld [vmem:[%s2817 + $0x74] sm:$0xf]
  %v2848 = vld [vmem:[%s2817 + $0x78] sm:$0xf]
  %v2849 = vld [vmem:[%s2817 + $0x7c] sm:$0xf]
  %v2850 = vld [vmem:[%s2817 + $0x80] sm:$0xf]
  %v2851 = vld [vmem:[%s2817 + $0x84] sm:$0xf]
  %v2852 = vld [vmem:[%s2817 + $0x88] sm:$0xf]
  %v2853 = vld [vmem:[%s2817 + $0x8c] sm:$0xf]
  %v2854 = vld [vmem:[%s2817 + $0x90] sm:$0xf]
  %v2855 = vld [vmem:[%s2817 + $0x94] sm:$0xf]
  %v2856 = vld [vmem:[%s2817 + $0x98] sm:$0xf]
  %v2857 = vld [vmem:[%s2817 + $0x9c] sm:$0xf]
  %v2858 = vld [vmem:[%s2817 + $0xa0] sm:$0xf]
  %v2859 = vld [vmem:[%s2817 + $0xa4] sm:$0xf]
  %v2860 = vld [vmem:[%s2817 + $0xa8] sm:$0xf]
  %v2861 = vld [vmem:[%s2817 + $0xac] sm:$0xf]
  %v2862 = vld [vmem:[%s2817 + $0xb0] sm:$0xf]
  %v2863 = vld [vmem:[%s2817 + $0xb4] sm:$0xf]
  %v2864 = vld [vmem:[%s2817 + $0xb8] sm:$0xf]
  %v2865 = vld [vmem:[%s2817 + $0xbc] sm:$0xf]
  %v2898 = vunpack.c.l.b16 %v2785
  %v2899 = vunpack.c.h.b16 %v2785
  %v2900 = vunpack.c.l.b16 %v2786
  %v2901 = vunpack.c.l.b16 %v2787
  %v2902 = vunpack.c.h.b16 %v2787
  %v2903 = vunpack.c.l.b16 %v2788
  %v2904 = vunpack.c.l.b16 %v2789
  %v2905 = vunpack.c.h.b16 %v2789
  %v2906 = vunpack.c.l.b16 %v2790
  %v2907 = vunpack.c.l.b16 %v2791
  %v2908 = vunpack.c.h.b16 %v2791
  %v2909 = vunpack.c.l.b16 %v2792
  %v2910 = vunpack.c.l.b16 %v2793
  %v2911 = vunpack.c.h.b16 %v2793
  %v2912 = vunpack.c.l.b16 %v2794
  %v2913 = vunpack.c.l.b16 %v2795
  %v2914 = vunpack.c.h.b16 %v2795
  %v2915 = vunpack.c.l.b16 %v2796
  %v2916 = vunpack.c.l.b16 %v2797
  %v2917 = vunpack.c.h.b16 %v2797
  %v2918 = vunpack.c.l.b16 %v2798
  %v2919 = vunpack.c.l.b16 %v2799
  %v2920 = vunpack.c.h.b16 %v2799
  %v2921 = vunpack.c.l.b16 %v2800
  %v2922 = vunpack.c.l.b16 %v2801
  %v2923 = vunpack.c.h.b16 %v2801
  %v2924 = vunpack.c.l.b16 %v2802
  %v2925 = vunpack.c.l.b16 %v2803
  %v2926 = vunpack.c.h.b16 %v2803
  %v2927 = vunpack.c.l.b16 %v2804
  %v2928 = vunpack.c.l.b16 %v2805
  %v2929 = vunpack.c.h.b16 %v2805
  %v2930 = vunpack.c.l.b16 %v2806
  %v2931 = vunpack.c.l.b16 %v2807
  %v2932 = vunpack.c.h.b16 %v2807
  %v2933 = vunpack.c.l.b16 %v2808
  %v2934 = vunpack.c.l.b16 %v2809
  %v2935 = vunpack.c.h.b16 %v2809
  %v2936 = vunpack.c.l.b16 %v2810
  %v2937 = vunpack.c.l.b16 %v2811
  %v2938 = vunpack.c.h.b16 %v2811
  %v2939 = vunpack.c.l.b16 %v2812
  %v2940 = vunpack.c.l.b16 %v2813
  %v2941 = vunpack.c.h.b16 %v2813
  %v2942 = vunpack.c.l.b16 %v2814
  %v2943 = vunpack.c.l.b16 %v2815
  %v2944 = vunpack.c.h.b16 %v2815
  %v2945 = vunpack.c.l.b16 %v2816
  %v2946 = vpack.c.b16 %v2901, %v2898
  %v2947 = vpack.c.b16 %v2902, %v2899
  %v2948 = vpack.c.b16 %v2903, %v2900
  %v2949 = vpack.c.b16 %v2907, %v2904
  %v2950 = vpack.c.b16 %v2908, %v2905
  %v2951 = vpack.c.b16 %v2909, %v2906
  %v2952 = vpack.c.b16 %v2913, %v2910
  %v2953 = vpack.c.b16 %v2914, %v2911
  %v2954 = vpack.c.b16 %v2915, %v2912
  %v2955 = vpack.c.b16 %v2919, %v2916
  %v2956 = vpack.c.b16 %v2920, %v2917
  %v2957 = vpack.c.b16 %v2921, %v2918
  %v2958 = vpack.c.b16 %v2925, %v2922
  %v2959 = vpack.c.b16 %v2926, %v2923
  %v2960 = vpack.c.b16 %v2927, %v2924
  %v2961 = vpack.c.b16 %v2931, %v2928
  %v2962 = vpack.c.b16 %v2932, %v2929
  %v2963 = vpack.c.b16 %v2933, %v2930
  %v2964 = vpack.c.b16 %v2937, %v2934
  %v2965 = vpack.c.b16 %v2938, %v2935
  %v2966 = vpack.c.b16 %v2939, %v2936
  %v2967 = vpack.c.b16 %v2943, %v2940
  %v2968 = vpack.c.b16 %v2944, %v2941
  %v2969 = vpack.c.b16 %v2945, %v2942
  %v3042 = vunpack.c.l.b16 %v2818
  %v3043 = vunpack.c.l.b16 %v2819
  %v3044 = vunpack.c.l.b16 %v2820
  %v3045 = vunpack.c.l.b16 %v2821
  %v3046 = vunpack.c.l.b16 %v2822
  %v3047 = vunpack.c.l.b16 %v2823
  %v3048 = vunpack.c.l.b16 %v2824
  %v3049 = vunpack.c.l.b16 %v2825
  %v3050 = vunpack.c.l.b16 %v2826
  %v3051 = vunpack.c.l.b16 %v2827
  %v3052 = vunpack.c.l.b16 %v2828
  %v3053 = vunpack.c.l.b16 %v2829
  %v3054 = vunpack.c.l.b16 %v2830
  %v3055 = vunpack.c.l.b16 %v2831
  %v3056 = vunpack.c.l.b16 %v2832
  %v3057 = vunpack.c.l.b16 %v2833
  %v3058 = vunpack.c.l.b16 %v2834
  %v3059 = vunpack.c.l.b16 %v2835
  %v3060 = vunpack.c.l.b16 %v2836
  %v3061 = vunpack.c.l.b16 %v2837
  %v3062 = vunpack.c.l.b16 %v2838
  %v3063 = vunpack.c.l.b16 %v2839
  %v3064 = vunpack.c.l.b16 %v2840
  %v3065 = vunpack.c.l.b16 %v2841
  %v3066 = vunpack.c.l.b16 %v2842
  %v3067 = vunpack.c.l.b16 %v2843
  %v3068 = vunpack.c.l.b16 %v2844
  %v3069 = vunpack.c.l.b16 %v2845
  %v3070 = vunpack.c.l.b16 %v2846
  %v3071 = vunpack.c.l.b16 %v2847
  %v3072 = vunpack.c.l.b16 %v2848
  %v3073 = vunpack.c.l.b16 %v2849
  %v3074 = vunpack.c.l.b16 %v2850
  %v3075 = vunpack.c.l.b16 %v2851
  %v3076 = vunpack.c.l.b16 %v2852
  %v3077 = vunpack.c.l.b16 %v2853
  %v3078 = vunpack.c.l.b16 %v2854
  %v3079 = vunpack.c.l.b16 %v2855
  %v3080 = vunpack.c.l.b16 %v2856
  %v3081 = vunpack.c.l.b16 %v2857
  %v3082 = vunpack.c.l.b16 %v2858
  %v3083 = vunpack.c.l.b16 %v2859
  %v3084 = vunpack.c.l.b16 %v2860
  %v3085 = vunpack.c.l.b16 %v2861
  %v3086 = vunpack.c.l.b16 %v2862
  %v3087 = vunpack.c.l.b16 %v2863
  %v3088 = vunpack.c.l.b16 %v2864
  %v3089 = vunpack.c.l.b16 %v2865
  %v3090 = vpack.c.b16 %v3043, %v3042
  %v3091 = vpack.c.b16 %v3045, %v3044
  %v3092 = vpack.c.b16 %v3047, %v3046
  %v3093 = vpack.c.b16 %v3049, %v3048
  %v3094 = vpack.c.b16 %v3051, %v3050
  %v3095 = vpack.c.b16 %v3053, %v3052
  %v3096 = vpack.c.b16 %v3055, %v3054
  %v3097 = vpack.c.b16 %v3057, %v3056
  %v3098 = vpack.c.b16 %v3059, %v3058
  %v3099 = vpack.c.b16 %v3061, %v3060
  %v3100 = vpack.c.b16 %v3063, %v3062
  %v3101 = vpack.c.b16 %v3065, %v3064
  %v3102 = vpack.c.b16 %v3067, %v3066
  %v3103 = vpack.c.b16 %v3069, %v3068
  %v3104 = vpack.c.b16 %v3071, %v3070
  %v3105 = vpack.c.b16 %v3073, %v3072
  %v3106 = vpack.c.b16 %v3075, %v3074
  %v3107 = vpack.c.b16 %v3077, %v3076
  %v3108 = vpack.c.b16 %v3079, %v3078
  %v3109 = vpack.c.b16 %v3081, %v3080
  %v3110 = vpack.c.b16 %v3083, %v3082
  %v3111 = vpack.c.b16 %v3085, %v3084
  %v3112 = vpack.c.b16 %v3087, %v3086
  %v3113 = vpack.c.b16 %v3089, %v3088
  %3138 = vmatprep.subr.bf16.mxu0 0
  %3139 = vmatpush1.bf16.msra.mxu0 %v3097
  %3140 = vmatprep.subr.bf16.mxu0 0
  %3141 = vmatpush1.bf16.msra.mxu0 %v3096
  %3142 = vmatprep.subr.bf16.mxu0 0
  %3143 = vmatpush1.bf16.msra.mxu0 %v3095
  %3144 = vmatprep.subr.bf16.mxu0 0
  %3145 = vmatpush1.bf16.msra.mxu0 %v3094
  %3146 = vmatprep.subr.bf16.mxu0 0
  %3147 = vmatpush1.bf16.msra.mxu0 %v3093
  %3148 = vmatprep.subr.bf16.mxu0 0
  %3149 = vmatpush1.bf16.msra.mxu0 %v3092
  %3150 = vmatprep.subr.bf16.mxu0 0
  %3151 = vmatpush1.bf16.msra.mxu0 %v3091
  %3152 = vmatprep.subr.bf16.mxu0 0
  %3153 = vmatpush1.bf16.msra.mxu0 %v3090
  %3154 = vmatprep.subr.bf16.mxu0 0
  %3155 = vmatpush2.bf16.msra.mxu0 %v3105
  %3156 = vmatprep.subr.bf16.mxu0 0
  %3157 = vmatpush2.bf16.msra.mxu0 %v3104
  %3158 = vmatprep.subr.bf16.mxu0 0
  %3159 = vmatpush2.bf16.msra.mxu0 %v3103
  %3160 = vmatprep.subr.bf16.mxu0 0
  %3161 = vmatpush2.bf16.msra.mxu0 %v3102
  %3162 = vmatprep.subr.bf16.mxu0 0
  %3163 = vmatpush2.bf16.msra.mxu0 %v3101
  %3164 = vmatprep.subr.bf16.mxu0 0
  %3165 = vmatpush2.bf16.msra.mxu0 %v3100
  %3166 = vmatprep.subr.bf16.mxu0 0
  %3167 = vmatpush2.bf16.msra.mxu0 %v3099
  %3168 = vmatprep.subr.bf16.mxu0 0
  %3169 = vmatpush2.bf16.msra.mxu0 %v3098
  %3170 = vmatprep.mubr.bf16.mxu0 %v2947
  %3171 = vmatmul.mubr.bf16.gmra.mxu0 %v2946
  %v3172 = vpop.f32.mrf.mxu0
  %v3173 = vadd.f32 0.0, %v3172
  %v3174 = vpop.f32.mrf.mxu0
  %v3175 = vpop.f32.mrf.mxu0
  %v3176 = vadd.f32 0.0, %v3175
  %v3177 = vpop.f32.mrf.mxu0
  %3178 = vmatprep.mubr.bf16.mxu0 %v2950
  %3179 = vmatmul.mubr.bf16.gmra.mxu0 %v2949
  %v3180 = vpop.f32.mrf.mxu0
  %v3181 = vadd.f32 0.0, %v3180
  %v3182 = vpop.f32.mrf.mxu0
  %v3183 = vpop.f32.mrf.mxu0
  %v3184 = vadd.f32 0.0, %v3183
  %v3185 = vpop.f32.mrf.mxu0
  %3186 = vmatprep.mubr.bf16.mxu0 %v2953
  %3187 = vmatmul.mubr.bf16.gmra.mxu0 %v2952
  %v3188 = vpop.f32.mrf.mxu0
  %v3189 = vadd.f32 0.0, %v3188
  %v3190 = vpop.f32.mrf.mxu0
  %v3191 = vpop.f32.mrf.mxu0
  %v3192 = vadd.f32 0.0, %v3191
  %v3193 = vpop.f32.mrf.mxu0
  %3194 = vmatprep.mubr.bf16.mxu0 %v2956
  %3195 = vmatmul.mubr.bf16.gmra.mxu0 %v2955
  %v3196 = vpop.f32.mrf.mxu0
  %v3197 = vadd.f32 0.0, %v3196
  %v3198 = vpop.f32.mrf.mxu0
  %v3199 = vpop.f32.mrf.mxu0
  %v3200 = vadd.f32 0.0, %v3199
  %v3201 = vpop.f32.mrf.mxu0
  %3202 = vmatprep.mubr.bf16.mxu0 %v2959
  %3203 = vmatmul.mubr.bf16.gmra.mxu0 %v2958
  %v3204 = vpop.f32.mrf.mxu0
  %v3205 = vadd.f32 0.0, %v3204
  %v3206 = vpop.f32.mrf.mxu0
  %v3207 = vpop.f32.mrf.mxu0
  %v3208 = vadd.f32 0.0, %v3207
  %v3209 = vpop.f32.mrf.mxu0
  %3210 = vmatprep.mubr.bf16.mxu0 %v2962
  %3211 = vmatmul.mubr.bf16.gmra.mxu0 %v2961
  %v3212 = vpop.f32.mrf.mxu0
  %v3213 = vadd.f32 0.0, %v3212
  %v3214 = vpop.f32.mrf.mxu0
  %v3215 = vpop.f32.mrf.mxu0
  %v3216 = vadd.f32 0.0, %v3215
  %v3217 = vpop.f32.mrf.mxu0
  %3218 = vmatprep.mubr.bf16.mxu0 %v2965
  %3219 = vmatmul.mubr.bf16.gmra.mxu0 %v2964
  %v3220 = vpop.f32.mrf.mxu0
  %v3221 = vadd.f32 0.0, %v3220
  %v3222 = vpop.f32.mrf.mxu0
  %v3223 = vpop.f32.mrf.mxu0
  %v3224 = vadd.f32 0.0, %v3223
  %v3225 = vpop.f32.mrf.mxu0
  %3226 = vmatprep.mubr.bf16.mxu0 %v2968
  %3227 = vmatmul.mubr.bf16.gmra.mxu0 %v2967
  %v3228 = vpop.f32.mrf.mxu0
  %v3229 = vadd.f32 0.0, %v3228
  %v3230 = vpop.f32.mrf.mxu0
  %v3231 = vpop.f32.mrf.mxu0
  %v3232 = vadd.f32 0.0, %v3231
  %v3233 = vpop.f32.mrf.mxu0
  %3234 = vdwg.mxu0
  %3235 = vmatprep.subr.bf16.mxu0 0
  %3236 = vmatpush1.bf16.msra.mxu0 %v3113
  %3237 = vmatprep.subr.bf16.mxu0 0
  %3238 = vmatpush1.bf16.msra.mxu0 %v3112
  %3239 = vmatprep.subr.bf16.mxu0 0
  %3240 = vmatpush1.bf16.msra.mxu0 %v3111
  %3241 = vmatprep.subr.bf16.mxu0 0
  %3242 = vmatpush1.bf16.msra.mxu0 %v3110
  %3243 = vmatprep.subr.bf16.mxu0 0
  %3244 = vmatpush1.bf16.msra.mxu0 %v3109
  %3245 = vmatprep.subr.bf16.mxu0 0
  %3246 = vmatpush1.bf16.msra.mxu0 %v3108
  %3247 = vmatprep.subr.bf16.mxu0 0
  %3248 = vmatpush1.bf16.msra.mxu0 %v3107
  %3249 = vmatprep.subr.bf16.mxu0 0
  %3250 = vmatpush1.bf16.msra.mxu0 %v3106
  %3251 = vmatprep.subr.bf16.mxu0 0
  %3252 = vmatpush2.bf16.msra.mxu0 0
  %3253 = vmatprep.subr.bf16.mxu0 0
  %3254 = vmatpush2.bf16.msra.mxu0 0
  %3255 = vmatprep.subr.bf16.mxu0 0
  %3256 = vmatpush2.bf16.msra.mxu0 0
  %3257 = vmatprep.subr.bf16.mxu0 0
  %3258 = vmatpush2.bf16.msra.mxu0 0
  %3259 = vmatprep.subr.bf16.mxu0 0
  %3260 = vmatpush2.bf16.msra.mxu0 0
  %3261 = vmatprep.subr.bf16.mxu0 0
  %3262 = vmatpush2.bf16.msra.mxu0 0
  %3263 = vmatprep.subr.bf16.mxu0 0
  %3264 = vmatpush2.bf16.msra.mxu0 0
  %3265 = vmatprep.subr.bf16.mxu0 0
  %3266 = vmatpush2.bf16.msra.mxu0 0
  %3267 = vmatprep.mubr.bf16.mxu0 0
  %3268 = vmatmul.mubr.bf16.gmra.mxu0 %v2948
  %v3269 = vpop.f32.mrf.mxu0
  %v3270 = vadd.f32 %v3173, %v3269
  %v3271 = vpop.f32.mrf.mxu0
  %v3272 = vpop.f32.mrf.mxu0
  %v3273 = vadd.f32 %v3176, %v3272
  %v3274 = vpop.f32.mrf.mxu0
  %3275 = vmatprep.mubr.bf16.mxu0 0
  %3276 = vmatmul.mubr.bf16.gmra.mxu0 %v2951
  %v3277 = vpop.f32.mrf.mxu0
  %v3278 = vadd.f32 %v3181, %v3277
  %v3279 = vpop.f32.mrf.mxu0
  %v3280 = vpop.f32.mrf.mxu0
  %v3281 = vadd.f32 %v3184, %v3280
  %v3282 = vpop.f32.mrf.mxu0
  %3283 = vmatprep.mubr.bf16.mxu0 0
  %3284 = vmatmul.mubr.bf16.gmra.mxu0 %v2954
  %v3285 = vpop.f32.mrf.mxu0
  %v3286 = vadd.f32 %v3189, %v3285
  %v3287 = vpop.f32.mrf.mxu0
  %v3288 = vpop.f32.mrf.mxu0
  %v3289 = vadd.f32 %v3192, %v3288
  %v3290 = vpop.f32.mrf.mxu0
  %3291 = vmatprep.mubr.bf16.mxu0 0
  %3292 = vmatmul.mubr.bf16.gmra.mxu0 %v2957
  %v3293 = vpop.f32.mrf.mxu0
  %v3294 = vadd.f32 %v3197, %v3293
  %v3295 = vpop.f32.mrf.mxu0
  %v3296 = vpop.f32.mrf.mxu0
  %v3297 = vadd.f32 %v3200, %v3296
  %v3298 = vpop.f32.mrf.mxu0
  %3299 = vmatprep.mubr.bf16.mxu0 0
  %3300 = vmatmul.mubr.bf16.gmra.mxu0 %v2960
  %v3301 = vpop.f32.mrf.mxu0
  %v3302 = vadd.f32 %v3205, %v3301
  %v3303 = vpop.f32.mrf.mxu0
  %v3304 = vpop.f32.mrf.mxu0
  %v3305 = vadd.f32 %v3208, %v3304
  %v3306 = vpop.f32.mrf.mxu0
  %3307 = vmatprep.mubr.bf16.mxu0 0
  %3308 = vmatmul.mubr.bf16.gmra.mxu0 %v2963
  %v3309 = vpop.f32.mrf.mxu0
  %v3310 = vadd.f32 %v3213, %v3309
  %v3311 = vpop.f32.mrf.mxu0
  %v3312 = vpop.f32.mrf.mxu0
  %v3313 = vadd.f32 %v3216, %v3312
  %v3314 = vpop.f32.mrf.mxu0
  %3315 = vmatprep.mubr.bf16.mxu0 0
  %3316 = vmatmul.mubr.bf16.gmra.mxu0 %v2966
  %v3317 = vpop.f32.mrf.mxu0
  %v3318 = vadd.f32 %v3221, %v3317
  %v3319 = vpop.f32.mrf.mxu0
  %v3320 = vpop.f32.mrf.mxu0
  %v3321 = vadd.f32 %v3224, %v3320
  %v3322 = vpop.f32.mrf.mxu0
  %3323 = vmatprep.mubr.bf16.mxu0 0
  %3324 = vmatmul.mubr.bf16.gmra.mxu0 %v2969
  %v3325 = vpop.f32.mrf.mxu0
  %v3326 = vadd.f32 %v3229, %v3325
  %v3327 = vpop.f32.mrf.mxu0
  %v3328 = vpop.f32.mrf.mxu0
  %v3329 = vadd.f32 %v3232, %v3328
  %v3330 = vpop.f32.mrf.mxu0
  %3331 = vdwg.mxu0
  %v3332 = vsel %vm30, %v3270, 0.0
  %v3333 = vsel %vm30, %v3273, 0.0
  %v3334 = vadd.f32 %v3332, %v3333
  %v3335 = vsel %vm30, %v3278, 0.0
  %v3336 = vadd.f32 %v3334, %v3335
  %v3337 = vsel %vm30, %v3281, 0.0
  %v3338 = vadd.f32 %v3336, %v3337
  %v3339 = vsel %vm30, %v3286, 0.0
  %v3340 = vadd.f32 %v3338, %v3339
  %v3341 = vsel %vm30, %v3289, 0.0
  %v3342 = vadd.f32 %v3340, %v3341
  %v3343 = vsel %vm30, %v3294, 0.0
  %v3344 = vadd.f32 %v3342, %v3343
  %v3345 = vsel %vm30, %v3297, 0.0
  %v3346 = vadd.f32 %v3344, %v3345
  %v3347 = vsel %vm30, %v3302, 0.0
  %v3348 = vadd.f32 %v3346, %v3347
  %v3349 = vsel %vm30, %v3305, 0.0
  %v3350 = vadd.f32 %v3348, %v3349
  %v3351 = vsel %vm30, %v3310, 0.0
  %v3352 = vadd.f32 %v3350, %v3351
  %v3353 = vsel %vm30, %v3313, 0.0
  %v3354 = vadd.f32 %v3352, %v3353
  %v3355 = vsel %vm30, %v3318, 0.0
  %v3356 = vadd.f32 %v3354, %v3355
  %v3357 = vsel %vm30, %v3321, 0.0
  %v3358 = vadd.f32 %v3356, %v3357
  %v3359 = vsel %vm30, %v3326, 0.0
  %v3360 = vadd.f32 %v3358, %v3359
  %v3361 = vsel %vm30, %v3329, 0.0
  %v3362 = vadd.f32 %v3360, %v3361
  %v3363 = vrot.slane %v3362, 4
  %v3364 = vadd.f32 %v3362, %v3363
  %v3365 = vrot.slane %v3364, 2
  %v3366 = vadd.f32 %v3364, %v3365
  %v3367 = vrot.slane %v3366, 1
  %v3368 = vadd.f32 %v3366, %v3367
  %v3369 = vmul.f32 %v3368, %v1635
  %v3370 = vmul.f32 %v3270, %v3270
  %v3371 = vmul.f32 %v3273, %v3273
  %v3372 = vmul.f32 %v3278, %v3278
  %v3373 = vmul.f32 %v3281, %v3281
  %v3374 = vmul.f32 %v3286, %v3286
  %v3375 = vmul.f32 %v3289, %v3289
  %v3376 = vmul.f32 %v3294, %v3294
  %v3377 = vmul.f32 %v3297, %v3297
  %v3378 = vmul.f32 %v3302, %v3302
  %v3379 = vmul.f32 %v3305, %v3305
  %v3380 = vmul.f32 %v3310, %v3310
  %v3381 = vmul.f32 %v3313, %v3313
  %v3382 = vmul.f32 %v3318, %v3318
  %v3383 = vmul.f32 %v3321, %v3321
  %v3384 = vmul.f32 %v3326, %v3326
  %v3385 = vmul.f32 %v3329, %v3329
  %v3386 = vsel %vm30, %v3370, 0.0
  %v3387 = vsel %vm30, %v3371, 0.0
  %v3388 = vadd.f32 %v3386, %v3387
  %v3389 = vsel %vm30, %v3372, 0.0
  %v3390 = vadd.f32 %v3388, %v3389
  %v3391 = vsel %vm30, %v3373, 0.0
  %v3392 = vadd.f32 %v3390, %v3391
  %v3393 = vsel %vm30, %v3374, 0.0
  %v3394 = vadd.f32 %v3392, %v3393
  %v3395 = vsel %vm30, %v3375, 0.0
  %v3396 = vadd.f32 %v3394, %v3395
  %v3397 = vsel %vm30, %v3376, 0.0
  %v3398 = vadd.f32 %v3396, %v3397
  %v3399 = vsel %vm30, %v3377, 0.0
  %v3400 = vadd.f32 %v3398, %v3399
  %v3401 = vsel %vm30, %v3378, 0.0
  %v3402 = vadd.f32 %v3400, %v3401
  %v3403 = vsel %vm30, %v3379, 0.0
  %v3404 = vadd.f32 %v3402, %v3403
  %v3405 = vsel %vm30, %v3380, 0.0
  %v3406 = vadd.f32 %v3404, %v3405
  %v3407 = vsel %vm30, %v3381, 0.0
  %v3408 = vadd.f32 %v3406, %v3407
  %v3409 = vsel %vm30, %v3382, 0.0
  %v3410 = vadd.f32 %v3408, %v3409
  %v3411 = vsel %vm30, %v3383, 0.0
  %v3412 = vadd.f32 %v3410, %v3411
  %v3413 = vsel %vm30, %v3384, 0.0
  %v3414 = vadd.f32 %v3412, %v3413
  %v3415 = vsel %vm30, %v3385, 0.0
  %v3416 = vadd.f32 %v3414, %v3415
  %v3417 = vrot.slane %v3416, 4
  %v3418 = vadd.f32 %v3416, %v3417
  %v3419 = vrot.slane %v3418, 2
  %v3420 = vadd.f32 %v3418, %v3419
  %v3421 = vrot.slane %v3420, 1
  %v3422 = vadd.f32 %v3420, %v3421
  %v3423 = vmul.f32 %v3422, %v1635
  %v3424 = vmul.f32 %v3369, %v3369
  %v3425 = vsub.f32 %v3423, %v3424
  %v3426 = vmax.f32 %v3425, 0.0
  %s3427 = scalar_lea.vmem %s4, 1
  %v3428 = vld [vmem:[%s3427] sm:$0x1]
  %v3429 = vadd.f32 %v3426, 1e-05
  %v3430 = vrsqrt.pop %v3429
  %v3431 = vmul.f32 %v3428, %v3430
  %v3433 = vlaneseq
  %v3434 = vshrl.u32 %v3433, 7
  %v3435 = vsub.s32 0, %v3434
  %v3436 = vrot.slane %v3431, %v3435
  %v3438 = vmul.f32 %v3270, %v3436
  %v3439 = vmul.f32 %v3273, %v3436
  %v3440 = vmul.f32 %v3278, %v3436
  %v3441 = vmul.f32 %v3281, %v3436
  %v3442 = vmul.f32 %v3286, %v3436
  %v3443 = vmul.f32 %v3289, %v3436
  %v3444 = vmul.f32 %v3294, %v3436
  %v3445 = vmul.f32 %v3297, %v3436
  %v3446 = vmul.f32 %v3302, %v3436
  %v3447 = vmul.f32 %v3305, %v3436
  %v3448 = vmul.f32 %v3310, %v3436
  %v3449 = vmul.f32 %v3313, %v3436
  %v3450 = vmul.f32 %v3318, %v3436
  %v3451 = vmul.f32 %v3321, %v3436
  %v3452 = vmul.f32 %v3326, %v3436
  %v3453 = vmul.f32 %v3329, %v3436
  %s3454 = scalar_lea.vmem %s5, 1
  %v3455 = vld [vmem:[%s3454] sm:$0x1]
  %v3456 = vmul.f32 %v3369, %v3431
  %v3457 = vsub.f32 %v3455, %v3456
  %v3459 = vlaneseq
  %v3460 = vshrl.u32 %v3459, 7
  %v3461 = vsub.s32 0, %v3460
  %v3462 = vrot.slane %v3457, %v3461
  %v3464 = vadd.f32 %v3438, %v3462
  %v3465 = vadd.f32 %v3439, %v3462
  %v3466 = vadd.f32 %v3440, %v3462
  %v3467 = vadd.f32 %v3441, %v3462
  %v3468 = vadd.f32 %v3442, %v3462
  %v3469 = vadd.f32 %v3443, %v3462
  %v3470 = vadd.f32 %v3444, %v3462
  %v3471 = vadd.f32 %v3445, %v3462
  %v3472 = vadd.f32 %v3446, %v3462
  %v3473 = vadd.f32 %v3447, %v3462
  %v3474 = vadd.f32 %v3448, %v3462
  %v3475 = vadd.f32 %v3449, %v3462
  %v3476 = vadd.f32 %v3450, %v3462
  %v3477 = vadd.f32 %v3451, %v3462
  %v3478 = vadd.f32 %v3452, %v3462
  %v3479 = vadd.f32 %v3453, %v3462
  %v3480 = vmax.f32 %v3464, 0.0
  %v3481 = vmax.f32 %v3465, 0.0
  %v3482 = vmax.f32 %v3466, 0.0
  %v3483 = vmax.f32 %v3467, 0.0
  %v3484 = vmax.f32 %v3468, 0.0
  %v3485 = vmax.f32 %v3469, 0.0
  %v3486 = vmax.f32 %v3470, 0.0
  %v3487 = vmax.f32 %v3471, 0.0
  %v3488 = vmax.f32 %v3472, 0.0
  %v3489 = vmax.f32 %v3473, 0.0
  %v3490 = vmax.f32 %v3474, 0.0
  %v3491 = vmax.f32 %v3475, 0.0
  %v3492 = vmax.f32 %v3476, 0.0
  %v3493 = vmax.f32 %v3477, 0.0
  %v3494 = vmax.f32 %v3478, 0.0
  %v3495 = vmax.f32 %v3479, 0.0
  %3496 = vst.msk [vmem:[#allocation2 + $0x8] sm:$0xff] %vm30, %v3480
  %3497 = vst.msk [vmem:[#allocation2 + $0x10] sm:$0xff] %vm30, %v3481
  %3498 = vst.msk [vmem:[#allocation2 + $0x18] sm:$0xff] %vm30, %v3482
  %3499 = vst.msk [vmem:[#allocation2 + $0x20] sm:$0xff] %vm30, %v3483
  %3500 = vst.msk [vmem:[#allocation2 + $0x28] sm:$0xff] %vm30, %v3484
  %3501 = vst.msk [vmem:[#allocation2 + $0x30] sm:$0xff] %vm30, %v3485
  %3502 = vst.msk [vmem:[#allocation2 + $0x38] sm:$0xff] %vm30, %v3486
  %3503 = vst.msk [vmem:[#allocation2 + $0x40] sm:$0xff] %vm30, %v3487
  %3504 = vst.msk [vmem:[#allocation2 + $0x48] sm:$0xff] %vm30, %v3488
  %3505 = vst.msk [vmem:[#allocation2 + $0x50] sm:$0xff] %vm30, %v3489
  %3506 = vst.msk [vmem:[#allocation2 + $0x58] sm:$0xff] %vm30, %v3490
  %3507 = vst.msk [vmem:[#allocation2 + $0x60] sm:$0xff] %vm30, %v3491
  %3508 = vst.msk [vmem:[#allocation2 + $0x68] sm:$0xff] %vm30, %v3492
  %3509 = vst.msk [vmem:[#allocation2 + $0x70] sm:$0xff] %vm30, %v3493
  %3510 = vst.msk [vmem:[#allocation2 + $0x78] sm:$0xff] %vm30, %v3494
  %3511 = vst.msk [vmem:[#allocation2 + $0x80] sm:$0xff] %vm30, %v3495
  %s3512 = scalar_lea.vmem [#allocation2], 8
  %v3513 = vld [vmem:[%s3512] ss:$16 sm:$0x3]
  %v3514 = vld [vmem:[%s3512] ss:$16 sm:$0xc]
  %v3515 = vor.u32 %v3513, %v3514
  %v3516 = vld [vmem:[%s3512] ss:$16 sm:$0x30]
  %v3517 = vor.u32 %v3515, %v3516
  %v3518 = vld [vmem:[%s3512] ss:$16 sm:$0xc0]
  %v3519 = vor.u32 %v3517, %v3518
  %v3520 = vpack.c.bf16 %v3519, %v3519
  %s3521 = scalar_lea.vmem [#allocation2], 9
  %v3522 = vld [vmem:[%s3521] ss:$16 sm:$0x3]
  %v3523 = vld [vmem:[%s3521] ss:$16 sm:$0xc]
  %v3524 = vor.u32 %v3522, %v3523
  %v3525 = vld [vmem:[%s3521] ss:$16 sm:$0x30]
  %v3526 = vor.u32 %v3524, %v3525
  %v3527 = vld [vmem:[%s3521] ss:$16 sm:$0xc0]
  %v3528 = vor.u32 %v3526, %v3527
  %v3529 = vpack.c.bf16 %v3528, %v3528
  %s3530 = scalar_lea.vmem [#allocation2], 10
  %v3531 = vld [vmem:[%s3530] ss:$16 sm:$0x3]
  %v3532 = vld [vmem:[%s3530] ss:$16 sm:$0xc]
  %v3533 = vor.u32 %v3531, %v3532
  %v3534 = vld [vmem:[%s3530] ss:$16 sm:$0x30]
  %v3535 = vor.u32 %v3533, %v3534
  %v3536 = vld [vmem:[%s3530] ss:$16 sm:$0xc0]
  %v3537 = vor.u32 %v3535, %v3536
  %v3538 = vpack.c.bf16 %v3537, %v3537
  %s3539 = scalar_lea.vmem [#allocation2], 11
  %v3540 = vld [vmem:[%s3539] ss:$16 sm:$0x3]
  %v3541 = vld [vmem:[%s3539] ss:$16 sm:$0xc]
  %v3542 = vor.u32 %v3540, %v3541
  %v3543 = vld [vmem:[%s3539] ss:$16 sm:$0x30]
  %v3544 = vor.u32 %v3542, %v3543
  %v3545 = vld [vmem:[%s3539] ss:$16 sm:$0xc0]
  %v3546 = vor.u32 %v3544, %v3545
  %v3547 = vpack.c.bf16 %v3546, %v3546
  %3549 = vrot.lane.b32.xlu0 %v3529, 32
  %v3550 = vpop.permute.xlu0 %3549
  %3552 = vrot.lane.b32.xlu0 %v3538, 64
  %v3553 = vpop.permute.xlu0 %3552
  %3555 = vrot.lane.b32.xlu0 %v3547, 96
  %v3556 = vpop.permute.xlu0 %3555
  %v3559 = vsel %vm30, %v3520, %v3550
  %v3561 = vsel %vm356, %v3559, %v3553
  %v3563 = vsel %vm373, %v3561, %v3556
  %3565 = vst [vmem:[#allocation4] sm:$0xf] %v3563
  %s3566 = scalar_lea.vmem [#allocation2], 12
  %v3567 = vld [vmem:[%s3566] ss:$16 sm:$0x3]
  %v3568 = vld [vmem:[%s3566] ss:$16 sm:$0xc]
  %v3569 = vor.u32 %v3567, %v3568
  %v3570 = vld [vmem:[%s3566] ss:$16 sm:$0x30]
  %v3571 = vor.u32 %v3569, %v3570
  %v3572 = vld [vmem:[%s3566] ss:$16 sm:$0xc0]
  %v3573 = vor.u32 %v3571, %v3572
  %v3574 = vpack.c.bf16 %v3573, %v3573
  %s3575 = scalar_lea.vmem [#allocation2], 13
  %v3576 = vld [vmem:[%s3575] ss:$16 sm:$0x3]
  %v3577 = vld [vmem:[%s3575] ss:$16 sm:$0xc]
  %v3578 = vor.u32 %v3576, %v3577
  %v3579 = vld [vmem:[%s3575] ss:$16 sm:$0x30]
  %v3580 = vor.u32 %v3578, %v3579
  %v3581 = vld [vmem:[%s3575] ss:$16 sm:$0xc0]
  %v3582 = vor.u32 %v3580, %v3581
  %v3583 = vpack.c.bf16 %v3582, %v3582
  %s3584 = scalar_lea.vmem [#allocation2], 14
  %v3585 = vld [vmem:[%s3584] ss:$16 sm:$0x3]
  %v3586 = vld [vmem:[%s3584] ss:$16 sm:$0xc]
  %v3587 = vor.u32 %v3585, %v3586
  %v3588 = vld [vmem:[%s3584] ss:$16 sm:$0x30]
  %v3589 = vor.u32 %v3587, %v3588
  %v3590 = vld [vmem:[%s3584] ss:$16 sm:$0xc0]
  %v3591 = vor.u32 %v3589, %v3590
  %v3592 = vpack.c.bf16 %v3591, %v3591
  %s3593 = scalar_lea.vmem [#allocation2], 15
  %v3594 = vld [vmem:[%s3593] ss:$16 sm:$0x3]
  %v3595 = vld [vmem:[%s3593] ss:$16 sm:$0xc]
  %v3596 = vor.u32 %v3594, %v3595
  %v3597 = vld [vmem:[%s3593] ss:$16 sm:$0x30]
  %v3598 = vor.u32 %v3596, %v3597
  %v3599 = vld [vmem:[%s3593] ss:$16 sm:$0xc0]
  %v3600 = vor.u32 %v3598, %v3599
  %v3601 = vpack.c.bf16 %v3600, %v3600
  %3603 = vrot.lane.b32.xlu0 %v3583, 32
  %v3604 = vpop.permute.xlu0 %3603
  %3606 = vrot.lane.b32.xlu0 %v3592, 64
  %v3607 = vpop.permute.xlu0 %3606
  %3609 = vrot.lane.b32.xlu0 %v3601, 96
  %v3610 = vpop.permute.xlu0 %3609
  %v3613 = vsel %vm30, %v3574, %v3604
  %v3615 = vsel %vm356, %v3613, %v3607
  %v3617 = vsel %vm373, %v3615, %v3610
  %3619 = vst [vmem:[#allocation4 + $0x4] sm:$0xf] %v3617
  %s3620 = scalar_lea.vmem [#allocation2], 16
  %v3621 = vld [vmem:[%s3620] ss:$16 sm:$0x3]
  %v3622 = vld [vmem:[%s3620] ss:$16 sm:$0xc]
  %v3623 = vor.u32 %v3621, %v3622
  %v3624 = vld [vmem:[%s3620] ss:$16 sm:$0x30]
  %v3625 = vor.u32 %v3623, %v3624
  %v3626 = vld [vmem:[%s3620] ss:$16 sm:$0xc0]
  %v3627 = vor.u32 %v3625, %v3626
  %v3628 = vpack.c.bf16 %v3627, %v3627
  %s3629 = scalar_lea.vmem [#allocation2], 17
  %v3630 = vld [vmem:[%s3629] ss:$16 sm:$0x3]
  %v3631 = vld [vmem:[%s3629] ss:$16 sm:$0xc]
  %v3632 = vor.u32 %v3630, %v3631
  %v3633 = vld [vmem:[%s3629] ss:$16 sm:$0x30]
  %v3634 = vor.u32 %v3632, %v3633
  %v3635 = vld [vmem:[%s3629] ss:$16 sm:$0xc0]
  %v3636 = vor.u32 %v3634, %v3635
  %v3637 = vpack.c.bf16 %v3636, %v3636
  %s3638 = scalar_lea.vmem [#allocation2], 18
  %v3639 = vld [vmem:[%s3638] ss:$16 sm:$0x3]
  %v3640 = vld [vmem:[%s3638] ss:$16 sm:$0xc]
  %v3641 = vor.u32 %v3639, %v3640
  %v3642 = vld [vmem:[%s3638] ss:$16 sm:$0x30]
  %v3643 = vor.u32 %v3641, %v3642
  %v3644 = vld [vmem:[%s3638] ss:$16 sm:$0xc0]
  %v3645 = vor.u32 %v3643, %v3644
  %v3646 = vpack.c.bf16 %v3645, %v3645
  %s3647 = scalar_lea.vmem [#allocation2], 19
  %v3648 = vld [vmem:[%s3647] ss:$16 sm:$0x3]
  %v3649 = vld [vmem:[%s3647] ss:$16 sm:$0xc]
  %v3650 = vor.u32 %v3648, %v3649
  %v3651 = vld [vmem:[%s3647] ss:$16 sm:$0x30]
  %v3652 = vor.u32 %v3650, %v3651
  %v3653 = vld [vmem:[%s3647] ss:$16 sm:$0xc0]
  %v3654 = vor.u32 %v3652, %v3653
  %v3655 = vpack.c.bf16 %v3654, %v3654
  %3657 = vrot.lane.b32.xlu0 %v3637, 32
  %v3658 = vpop.permute.xlu0 %3657
  %3660 = vrot.lane.b32.xlu0 %v3646, 64
  %v3661 = vpop.permute.xlu0 %3660
  %3663 = vrot.lane.b32.xlu0 %v3655, 96
  %v3664 = vpop.permute.xlu0 %3663
  %v3667 = vsel %vm30, %v3628, %v3658
  %v3669 = vsel %vm356, %v3667, %v3661
  %v3671 = vsel %vm373, %v3669, %v3664
  %3673 = vst [vmem:[#allocation4 + $0x8] sm:$0xf] %v3671
  %s3674 = scalar_lea.vmem [#allocation2], 20
  %v3675 = vld [vmem:[%s3674] ss:$16 sm:$0x3]
  %v3676 = vld [vmem:[%s3674] ss:$16 sm:$0xc]
  %v3677 = vor.u32 %v3675, %v3676
  %v3678 = vld [vmem:[%s3674] ss:$16 sm:$0x30]
  %v3679 = vor.u32 %v3677, %v3678
  %v3680 = vld [vmem:[%s3674] ss:$16 sm:$0xc0]
  %v3681 = vor.u32 %v3679, %v3680
  %v3682 = vpack.c.bf16 %v3681, %v3681
  %s3683 = scalar_lea.vmem [#allocation2], 21
  %v3684 = vld [vmem:[%s3683] ss:$16 sm:$0x3]
  %v3685 = vld [vmem:[%s3683] ss:$16 sm:$0xc]
  %v3686 = vor.u32 %v3684, %v3685
  %v3687 = vld [vmem:[%s3683] ss:$16 sm:$0x30]
  %v3688 = vor.u32 %v3686, %v3687
  %v3689 = vld [vmem:[%s3683] ss:$16 sm:$0xc0]
  %v3690 = vor.u32 %v3688, %v3689
  %v3691 = vpack.c.bf16 %v3690, %v3690
  %s3692 = scalar_lea.vmem [#allocation2], 22
  %v3693 = vld [vmem:[%s3692] ss:$16 sm:$0x3]
  %v3694 = vld [vmem:[%s3692] ss:$16 sm:$0xc]
  %v3695 = vor.u32 %v3693, %v3694
  %v3696 = vld [vmem:[%s3692] ss:$16 sm:$0x30]
  %v3697 = vor.u32 %v3695, %v3696
  %v3698 = vld [vmem:[%s3692] ss:$16 sm:$0xc0]
  %v3699 = vor.u32 %v3697, %v3698
  %v3700 = vpack.c.bf16 %v3699, %v3699
  %s3701 = scalar_lea.vmem [#allocation2], 23
  %v3702 = vld [vmem:[%s3701] ss:$16 sm:$0x3]
  %v3703 = vld [vmem:[%s3701] ss:$16 sm:$0xc]
  %v3704 = vor.u32 %v3702, %v3703
  %v3705 = vld [vmem:[%s3701] ss:$16 sm:$0x30]
  %v3706 = vor.u32 %v3704, %v3705
  %v3707 = vld [vmem:[%s3701] ss:$16 sm:$0xc0]
  %v3708 = vor.u32 %v3706, %v3707
  %v3709 = vpack.c.bf16 %v3708, %v3708
  %3711 = vrot.lane.b32.xlu0 %v3691, 32
  %v3712 = vpop.permute.xlu0 %3711
  %3714 = vrot.lane.b32.xlu0 %v3700, 64
  %v3715 = vpop.permute.xlu0 %3714
  %3717 = vrot.lane.b32.xlu0 %v3709, 96
  %v3718 = vpop.permute.xlu0 %3717
  %v3721 = vsel %vm30, %v3682, %v3712
  %v3723 = vsel %vm356, %v3721, %v3715
  %v3725 = vsel %vm373, %v3723, %v3718
  %3727 = vst [vmem:[#allocation4 + $0xc] sm:$0xf] %v3725
  %v3728 = vld [vmem:[#allocation4] sm:$0xff]
  %v3729 = vld [vmem:[#allocation4 + $0x8] sm:$0xff]
  %v3730 = vld [vmem:[%s6] sm:$0xf]
  %v3731 = vld [vmem:[%s6 + $0x4] sm:$0xf]
  %v3732 = vld [vmem:[%s6 + $0x8] sm:$0xf]
  %v3733 = vld [vmem:[%s6 + $0xc] sm:$0xf]
  %v3734 = vld [vmem:[%s6 + $0x10] sm:$0xf]
  %v3735 = vld [vmem:[%s6 + $0x14] sm:$0xf]
  %v3736 = vld [vmem:[%s6 + $0x18] sm:$0xf]
  %v3737 = vld [vmem:[%s6 + $0x1c] sm:$0xf]
  %v3738 = vld [vmem:[%s6 + $0x20] sm:$0xf]
  %v3739 = vld [vmem:[%s6 + $0x24] sm:$0xf]
  %v3740 = vld [vmem:[%s6 + $0x28] sm:$0xf]
  %v3741 = vld [vmem:[%s6 + $0x2c] sm:$0xf]
  %v3742 = vld [vmem:[%s6 + $0x30] sm:$0xf]
  %v3743 = vld [vmem:[%s6 + $0x34] sm:$0xf]
  %v3744 = vld [vmem:[%s6 + $0x38] sm:$0xf]
  %v3745 = vld [vmem:[%s6 + $0x3c] sm:$0xf]
  %v3746 = vld [vmem:[%s6 + $0x40] sm:$0xf]
  %v3747 = vld [vmem:[%s6 + $0x44] sm:$0xf]
  %v3748 = vld [vmem:[%s6 + $0x48] sm:$0xf]
  %v3749 = vld [vmem:[%s6 + $0x4c] sm:$0xf]
  %v3750 = vld [vmem:[%s6 + $0x50] sm:$0xf]
  %v3751 = vld [vmem:[%s6 + $0x54] sm:$0xf]
  %v3752 = vld [vmem:[%s6 + $0x58] sm:$0xf]
  %v3753 = vld [vmem:[%s6 + $0x5c] sm:$0xf]
  %v3754 = vld [vmem:[%s6 + $0x60] sm:$0xf]
  %v3755 = vld [vmem:[%s6 + $0x64] sm:$0xf]
  %v3756 = vld [vmem:[%s6 + $0x68] sm:$0xf]
  %v3757 = vld [vmem:[%s6 + $0x6c] sm:$0xf]
  %v3758 = vld [vmem:[%s6 + $0x70] sm:$0xf]
  %v3759 = vld [vmem:[%s6 + $0x74] sm:$0xf]
  %v3760 = vld [vmem:[%s6 + $0x78] sm:$0xf]
  %v3761 = vld [vmem:[%s6 + $0x7c] sm:$0xf]
  %v3762 = vld [vmem:[%s6 + $0x80] sm:$0xf]
  %v3763 = vld [vmem:[%s6 + $0x84] sm:$0xf]
  %v3764 = vld [vmem:[%s6 + $0x88] sm:$0xf]
  %v3765 = vld [vmem:[%s6 + $0x8c] sm:$0xf]
  %v3766 = vld [vmem:[%s6 + $0x90] sm:$0xf]
  %v3767 = vld [vmem:[%s6 + $0x94] sm:$0xf]
  %v3768 = vld [vmem:[%s6 + $0x98] sm:$0xf]
  %v3769 = vld [vmem:[%s6 + $0x9c] sm:$0xf]
  %v3770 = vld [vmem:[%s6 + $0xa0] sm:$0xf]
  %v3771 = vld [vmem:[%s6 + $0xa4] sm:$0xf]
  %v3772 = vld [vmem:[%s6 + $0xa8] sm:$0xf]
  %v3773 = vld [vmem:[%s6 + $0xac] sm:$0xf]
  %v3774 = vld [vmem:[%s6 + $0xb0] sm:$0xf]
  %v3775 = vld [vmem:[%s6 + $0xb4] sm:$0xf]
  %v3776 = vld [vmem:[%s6 + $0xb8] sm:$0xf]
  %v3777 = vld [vmem:[%s6 + $0xbc] sm:$0xf]
  %v3778 = vld [vmem:[%s6 + $0xc0] sm:$0xf]
  %v3779 = vld [vmem:[%s6 + $0xc4] sm:$0xf]
  %v3780 = vld [vmem:[%s6 + $0xc8] sm:$0xf]
  %v3781 = vld [vmem:[%s6 + $0xcc] sm:$0xf]
  %v3782 = vld [vmem:[%s6 + $0xd0] sm:$0xf]
  %v3783 = vld [vmem:[%s6 + $0xd4] sm:$0xf]
  %v3784 = vld [vmem:[%s6 + $0xd8] sm:$0xf]
  %v3785 = vld [vmem:[%s6 + $0xdc] sm:$0xf]
  %v3786 = vld [vmem:[%s6 + $0xe0] sm:$0xf]
  %v3787 = vld [vmem:[%s6 + $0xe4] sm:$0xf]
  %v3788 = vld [vmem:[%s6 + $0xe8] sm:$0xf]
  %v3789 = vld [vmem:[%s6 + $0xec] sm:$0xf]
  %v3790 = vld [vmem:[%s6 + $0xf0] sm:$0xf]
  %v3791 = vld [vmem:[%s6 + $0xf4] sm:$0xf]
  %v3792 = vld [vmem:[%s6 + $0xf8] sm:$0xf]
  %v3793 = vld [vmem:[%s6 + $0xfc] sm:$0xf]
  %v3794 = vld [vmem:[%s7] sm:$0x1]
  %v3796 = vlaneseq
  %v3797 = vshrl.u32 %v3796, 7
  %v3798 = vsub.s32 0, %v3797
  %v3799 = vrot.slane %v3794, %v3798
  %v3803 = vunpack.c.l.b16 %v3728
  %v3804 = vunpack.c.h.b16 %v3728
  %v3805 = vunpack.c.l.b16 %v3729
  %v3806 = vunpack.c.h.b16 %v3729
  %v3807 = vpack.c.b16 %v3803, %v3803
  %v3808 = vpack.c.b16 %v3804, %v3804
  %v3809 = vpack.c.b16 %v3805, %v3805
  %v3810 = vpack.c.b16 %v3806, %v3806
  %v3879 = vunpack.c.l.b16 %v3730
  %v3880 = vunpack.c.l.b16 %v3731
  %v3881 = vunpack.c.l.b16 %v3732
  %v3882 = vunpack.c.l.b16 %v3733
  %v3883 = vunpack.c.l.b16 %v3734
  %v3884 = vunpack.c.l.b16 %v3735
  %v3885 = vunpack.c.l.b16 %v3736
  %v3886 = vunpack.c.l.b16 %v3737
  %v3887 = vunpack.c.l.b16 %v3738
  %v3888 = vunpack.c.l.b16 %v3739
  %v3889 = vunpack.c.l.b16 %v3740
  %v3890 = vunpack.c.l.b16 %v3741
  %v3891 = vunpack.c.l.b16 %v3742
  %v3892 = vunpack.c.l.b16 %v3743
  %v3893 = vunpack.c.l.b16 %v3744
  %v3894 = vunpack.c.l.b16 %v3745
  %v3895 = vunpack.c.l.b16 %v3746
  %v3896 = vunpack.c.l.b16 %v3747
  %v3897 = vunpack.c.l.b16 %v3748
  %v3898 = vunpack.c.l.b16 %v3749
  %v3899 = vunpack.c.l.b16 %v3750
  %v3900 = vunpack.c.l.b16 %v3751
  %v3901 = vunpack.c.l.b16 %v3752
  %v3902 = vunpack.c.l.b16 %v3753
  %v3903 = vunpack.c.l.b16 %v3754
  %v3904 = vunpack.c.l.b16 %v3755
  %v3905 = vunpack.c.l.b16 %v3756
  %v3906 = vunpack.c.l.b16 %v3757
  %v3907 = vunpack.c.l.b16 %v3758
  %v3908 = vunpack.c.l.b16 %v3759
  %v3909 = vunpack.c.l.b16 %v3760
  %v3910 = vunpack.c.l.b16 %v3761
  %v3911 = vunpack.c.l.b16 %v3762
  %v3912 = vunpack.c.l.b16 %v3763
  %v3913 = vunpack.c.l.b16 %v3764
  %v3914 = vunpack.c.l.b16 %v3765
  %v3915 = vunpack.c.l.b16 %v3766
  %v3916 = vunpack.c.l.b16 %v3767
  %v3917 = vunpack.c.l.b16 %v3768
  %v3918 = vunpack.c.l.b16 %v3769
  %v3919 = vunpack.c.l.b16 %v3770
  %v3920 = vunpack.c.l.b16 %v3771
  %v3921 = vunpack.c.l.b16 %v3772
  %v3922 = vunpack.c.l.b16 %v3773
  %v3923 = vunpack.c.l.b16 %v3774
  %v3924 = vunpack.c.l.b16 %v3775
  %v3925 = vunpack.c.l.b16 %v3776
  %v3926 = vunpack.c.l.b16 %v3777
  %v3927 = vunpack.c.l.b16 %v3778
  %v3928 = vunpack.c.l.b16 %v3779
  %v3929 = vunpack.c.l.b16 %v3780
  %v3930 = vunpack.c.l.b16 %v3781
  %v3931 = vunpack.c.l.b16 %v3782
  %v3932 = vunpack.c.l.b16 %v3783
  %v3933 = vunpack.c.l.b16 %v3784
  %v3934 = vunpack.c.l.b16 %v3785
  %v3935 = vunpack.c.l.b16 %v3786
  %v3936 = vunpack.c.l.b16 %v3787
  %v3937 = vunpack.c.l.b16 %v3788
  %v3938 = vunpack.c.l.b16 %v3789
  %v3939 = vunpack.c.l.b16 %v3790
  %v3940 = vunpack.c.l.b16 %v3791
  %v3941 = vunpack.c.l.b16 %v3792
  %v3942 = vunpack.c.l.b16 %v3793
  %v3943 = vpack.c.b16 %v3880, %v3879
  %v3944 = vpack.c.b16 %v3882, %v3881
  %v3945 = vpack.c.b16 %v3884, %v3883
  %v3946 = vpack.c.b16 %v3886, %v3885
  %v3947 = vpack.c.b16 %v3888, %v3887
  %v3948 = vpack.c.b16 %v3890, %v3889
  %v3949 = vpack.c.b16 %v3892, %v3891
  %v3950 = vpack.c.b16 %v3894, %v3893
  %v3951 = vpack.c.b16 %v3896, %v3895
  %v3952 = vpack.c.b16 %v3898, %v3897
  %v3953 = vpack.c.b16 %v3900, %v3899
  %v3954 = vpack.c.b16 %v3902, %v3901
  %v3955 = vpack.c.b16 %v3904, %v3903
  %v3956 = vpack.c.b16 %v3906, %v3905
  %v3957 = vpack.c.b16 %v3908, %v3907
  %v3958 = vpack.c.b16 %v3910, %v3909
  %v3959 = vpack.c.b16 %v3912, %v3911
  %v3960 = vpack.c.b16 %v3914, %v3913
  %v3961 = vpack.c.b16 %v3916, %v3915
  %v3962 = vpack.c.b16 %v3918, %v3917
  %v3963 = vpack.c.b16 %v3920, %v3919
  %v3964 = vpack.c.b16 %v3922, %v3921
  %v3965 = vpack.c.b16 %v3924, %v3923
  %v3966 = vpack.c.b16 %v3926, %v3925
  %v3967 = vpack.c.b16 %v3928, %v3927
  %v3968 = vpack.c.b16 %v3930, %v3929
  %v3969 = vpack.c.b16 %v3932, %v3931
  %v3970 = vpack.c.b16 %v3934, %v3933
  %v3971 = vpack.c.b16 %v3936, %v3935
  %v3972 = vpack.c.b16 %v3938, %v3937
  %v3973 = vpack.c.b16 %v3940, %v3939
  %v3974 = vpack.c.b16 %v3942, %v3941
  %4007 = vmatprep.subr.bf16.mxu0 0
  %4008 = vmatpush1.bf16.msra.mxu0 %v3950
  %4009 = vmatprep.subr.bf16.mxu0 0
  %4010 = vmatpush1.bf16.msra.mxu0 %v3949
  %4011 = vmatprep.subr.bf16.mxu0 0
  %4012 = vmatpush1.bf16.msra.mxu0 %v3948
  %4013 = vmatprep.subr.bf16.mxu0 0
  %4014 = vmatpush1.bf16.msra.mxu0 %v3947
  %4015 = vmatprep.subr.bf16.mxu0 0
  %4016 = vmatpush1.bf16.msra.mxu0 %v3946
  %4017 = vmatprep.subr.bf16.mxu0 0
  %4018 = vmatpush1.bf16.msra.mxu0 %v3945
  %4019 = vmatprep.subr.bf16.mxu0 0
  %4020 = vmatpush1.bf16.msra.mxu0 %v3944
  %4021 = vmatprep.subr.bf16.mxu0 0
  %4022 = vmatpush1.bf16.msra.mxu0 %v3943
  %4023 = vmatprep.subr.bf16.mxu0 0
  %4024 = vmatpush2.bf16.msra.mxu0 %v3958
  %4025 = vmatprep.subr.bf16.mxu0 0
  %4026 = vmatpush2.bf16.msra.mxu0 %v3957
  %4027 = vmatprep.subr.bf16.mxu0 0
  %4028 = vmatpush2.bf16.msra.mxu0 %v3956
  %4029 = vmatprep.subr.bf16.mxu0 0
  %4030 = vmatpush2.bf16.msra.mxu0 %v3955
  %4031 = vmatprep.subr.bf16.mxu0 0
  %4032 = vmatpush2.bf16.msra.mxu0 %v3954
  %4033 = vmatprep.subr.bf16.mxu0 0
  %4034 = vmatpush2.bf16.msra.mxu0 %v3953
  %4035 = vmatprep.subr.bf16.mxu0 0
  %4036 = vmatpush2.bf16.msra.mxu0 %v3952
  %4037 = vmatprep.subr.bf16.mxu0 0
  %4038 = vmatpush2.bf16.msra.mxu0 %v3951
  %4039 = vmatprep.mubr.bf16.mxu0 %v3808
  %4040 = vmatmul.mubr.bf16.gmra.mxu0 %v3807
  %v4041 = vpop.f32.mrf.mxu0
  %v4042 = vadd.f32 %v3799, %v4041
  %v4043 = vpop.f32.mrf.mxu0
  %v4044 = vpop.f32.mrf.mxu0
  %v4045 = vpop.f32.mrf.mxu0
  %4046 = vdwg.mxu0
  %4047 = vmatprep.subr.bf16.mxu0 0
  %4048 = vmatpush1.bf16.msra.mxu0 %v3966
  %4049 = vmatprep.subr.bf16.mxu0 0
  %4050 = vmatpush1.bf16.msra.mxu0 %v3965
  %4051 = vmatprep.subr.bf16.mxu0 0
  %4052 = vmatpush1.bf16.msra.mxu0 %v3964
  %4053 = vmatprep.subr.bf16.mxu0 0
  %4054 = vmatpush1.bf16.msra.mxu0 %v3963
  %4055 = vmatprep.subr.bf16.mxu0 0
  %4056 = vmatpush1.bf16.msra.mxu0 %v3962
  %4057 = vmatprep.subr.bf16.mxu0 0
  %4058 = vmatpush1.bf16.msra.mxu0 %v3961
  %4059 = vmatprep.subr.bf16.mxu0 0
  %4060 = vmatpush1.bf16.msra.mxu0 %v3960
  %4061 = vmatprep.subr.bf16.mxu0 0
  %4062 = vmatpush1.bf16.msra.mxu0 %v3959
  %4063 = vmatprep.subr.bf16.mxu0 0
  %4064 = vmatpush2.bf16.msra.mxu0 %v3974
  %4065 = vmatprep.subr.bf16.mxu0 0
  %4066 = vmatpush2.bf16.msra.mxu0 %v3973
  %4067 = vmatprep.subr.bf16.mxu0 0
  %4068 = vmatpush2.bf16.msra.mxu0 %v3972
  %4069 = vmatprep.subr.bf16.mxu0 0
  %4070 = vmatpush2.bf16.msra.mxu0 %v3971
  %4071 = vmatprep.subr.bf16.mxu0 0
  %4072 = vmatpush2.bf16.msra.mxu0 %v3970
  %4073 = vmatprep.subr.bf16.mxu0 0
  %4074 = vmatpush2.bf16.msra.mxu0 %v3969
  %4075 = vmatprep.subr.bf16.mxu0 0
  %4076 = vmatpush2.bf16.msra.mxu0 %v3968
  %4077 = vmatprep.subr.bf16.mxu0 0
  %4078 = vmatpush2.bf16.msra.mxu0 %v3967
  %4079 = vmatprep.mubr.bf16.mxu0 %v3810
  %4080 = vmatmul.mubr.bf16.gmra.mxu0 %v3809
  %v4081 = vpop.f32.mrf.mxu0
  %v4082 = vadd.f32 %v4042, %v4081
  %v4083 = vpop.f32.mrf.mxu0
  %v4084 = vpop.f32.mrf.mxu0
  %v4085 = vpop.f32.mrf.mxu0
  %4086 = vdwg.mxu0
  %4087 = vst [vmem:[%s8] sm:$0xff] %v4082
  // Predicated region
  $region34: #{normal_actor_critic_forward.1} parent=0 // pred_check
    _
  $region35: #{normal_actor_critic_forward.1} parent=0 // pred_check_branch
    %4089 = sbr.rel (0) target = $region37
  $region36: #{normal_actor_critic_forward.1} parent=0 // pred_region
    _
  $region37: #{normal_actor_critic_forward.1} parent=0 // pred_fallthru
    _
  // Predicated region
  $region38: #{normal_actor_critic_forward.1} parent=0 // pred_check
    _
  $region39: #{normal_actor_critic_forward.1} parent=0 // pred_check_branch
    %4091 = sbr.rel (0) target = $region41
  $region40: #{normal_actor_critic_forward.1} parent=0 // pred_region
    _
  $region41: #{normal_actor_critic_forward.1} parent=0 // pred_fallthru
    _

</llo_original>
